<compile_context>
chip_gen: v7x
topology: tpu7x:2x2x1
jax: 0.10.0
libtpu: 0.0.40
codegen_flags: <defaults>
</compile_context>

<pallas_src>
import functools

import jax
import jax.numpy as jnp
from jax.experimental import pallas as pl
from jax.experimental.pallas import tpu as pltpu

MEAN = 0.59685254
STD = 0.16043035
KSIZE = 9                 # SSIM uniform kernel size (gaussian_kernel=False)
PAD = (KSIZE - 1) // 2    # reflection pad used for the full SSIM image
CUT = 1                   # self.cut in the original module


# ---------------------------------------------------------------------------
# Kernel 1: autoencoder stand-in (pixelwise 2-layer 1x1-conv MLP) fused with
# the channel means of both x and clean.  Lane axis = H*W (lane dense).
# TODO(synk): ResNetAutoEncoder(256, load=True) definition / weights are not
# provided; a deterministic pixelwise conv1x1 autoencoder is used instead.
# ---------------------------------------------------------------------------
def _autoenc_means_kernel(x_ref, w1_ref, b1_ref, w2_ref, b2_ref,
                          imean_ref, cmean_ref):
    x = x_ref[0]                                                # (C, THW)
    imean_ref[0] = jnp.mean(x, axis=0, keepdims=True)           # mean(x, dim=1)
    h = jnp.maximum(
        jnp.dot(w1_ref[...], x, preferred_element_type=jnp.float32)
        + b1_ref[...], 0.0)                                     # (HID, THW)
    clean = (jnp.dot(w2_ref[...], h, preferred_element_type=jnp.float32)
             + b2_ref[...])                                     # (C, THW)
    cmean_ref[0] = jnp.mean(clean, axis=0, keepdims=True)       # mean(clean, dim=1)


def autoencoder_channel_means(x, params, tile_hw=2048):
    """Returns (mean(x, dim=1), mean(autoenc(x), dim=1)) as (N, H, W) maps."""
    n, c, h, w = x.shape
    w1, b1, w2, b2 = params                    # (HID,C), (HID,1), (C,HID), (C,1)
    hid = w1.shape[0]
    hw = h * w
    thw = min(tile_hw, pl.cdiv(hw, 128) * 128)        # lane-aligned tile
    hw_pad = pl.cdiv(hw, thw) * thw
    xr = x.reshape(n, c, hw)
    if hw_pad != hw:                                   # no divisibility assert
        xr = jnp.pad(xr, ((0, 0), (0, 0), (0, hw_pad - hw)))

    imean, cmean = pl.pallas_call(
        _autoenc_means_kernel,
        out_shape=(jax.ShapeDtypeStruct((n, 1, hw_pad), jnp.float32),
                   jax.ShapeDtypeStruct((n, 1, hw_pad), jnp.float32)),
        grid_spec=pltpu.PrefetchScalarGridSpec(
            num_scalar_prefetch=0,
            grid=(n, hw_pad // thw),
            in_specs=[
                pl.BlockSpec((1, c, thw), lambda i, j: (i, 0, j)),
                pl.BlockSpec((hid, c), lambda i, j: (0, 0)),
                pl.BlockSpec((hid, 1), lambda i, j: (0, 0)),
                pl.BlockSpec((c, hid), lambda i, j: (0, 0)),
                pl.BlockSpec((c, 1), lambda i, j: (0, 0)),
            ],
            out_specs=[
                pl.BlockSpec((1, 1, thw), lambda i, j: (i, 0, j)),
                pl.BlockSpec((1, 1, thw), lambda i, j: (i, 0, j)),
            ],
        ),
        compiler_params=pltpu.CompilerParams(
            dimension_semantics=("parallel", "parallel")),
    )(xr, w1, b1, w2, b2)

    imean = imean.reshape(n, hw_pad)[:, :hw].reshape(n, h, w)
    cmean = cmean.reshape(n, hw_pad)[:, :hw].reshape(n, h, w)
    return imean, cmean


# ---------------------------------------------------------------------------
# Kernel 2: SSIM full-image map (uniform 9x9 window, reflection-padded input),
# matching torchmetrics SSIM(gaussian_kernel=False, return_full_image=True).
# One batch element per grid step; separable box filter via static shifts.
# TODO(synk): for production-size images (>~1K px) this should be row-striped
# with a 2*PAD halo so the working set fits v7x's 64 MiB VMEM.
# ---------------------------------------------------------------------------
def _ssim_kernel(c_ref, p_ref, t_ref, o_ref, *, hh, ww):
    k = KSIZE
    inv = 1.0 / (k * k)
    p = p_ref[0]
    t = t_ref[0]

    def ufilt(img):
        acc = img[:, 0:ww]
        for dj in range(1, k):
            acc = acc + img[:, dj:dj + ww]
        out = acc[0:hh, :]
        for di in range(1, k):
            out = out + acc[di:di + hh, :]
        return out * inv

    mu_p = ufilt(p)
    mu_t = ufilt(t)
    mu_pp = ufilt(p * p)
    mu_tt = ufilt(t * t)
    mu_pt = ufilt(p * t)

    c1 = c_ref[0]
    c2 = c_ref[1]
    sigma_p = mu_pp - mu_p * mu_p
    sigma_t = mu_tt - mu_t * mu_t
    sigma_pt = mu_pt - mu_p * mu_t
    num = (2.0 * mu_p * mu_t + c1) * (2.0 * sigma_pt + c2)
    den = (mu_p * mu_p + mu_t * mu_t + c1) * (sigma_p + sigma_t + c2)
    o_ref[0] = num / den


def ssim_full_image(pred, target, c1, c2):
    n, h, w = pred.shape
    pp = jnp.pad(pred, ((0, 0), (PAD, PAD), (PAD, PAD)), mode="reflect")
    tp = jnp.pad(target, ((0, 0), (PAD, PAD), (PAD, PAD)), mode="reflect")
    hp, wp = h + 2 * PAD, w + 2 * PAD
    cvals = jnp.stack([c1, c2]).astype(jnp.float32)
    kern = functools.partial(_ssim_kernel, hh=h, ww=w)
    # Raise scoped VMEM explicitly (v5e default is only 16 MiB).
    vmem_bytes = int(min(64 * 2**20, max(32 * 2**20, 24 * hp * wp * 4)))
    return pl.pallas_call(
        kern,
        out_shape=jax.ShapeDtypeStruct((n, h, w), jnp.float32),
        grid_spec=pltpu.PrefetchScalarGridSpec(
            num_scalar_prefetch=0,
            grid=(n,),
            in_specs=[
                pl.BlockSpec(memory_space=pltpu.SMEM),           # [c1, c2]
                pl.BlockSpec((1, hp, wp), lambda i: (i, 0, 0)),  # padded pred
                pl.BlockSpec((1, hp, wp), lambda i: (i, 0, 0)),  # padded target
            ],
            out_specs=pl.BlockSpec((1, h, w), lambda i: (i, 0, 0)),
        ),
        compiler_params=pltpu.CompilerParams(
            dimension_semantics=("parallel",),
            vmem_limit_bytes=vmem_bytes),
    )(cvals, pp, tp)


# ---------------------------------------------------------------------------
# Kernel 3 (fused): per-batch threshold + normalization + channel-0 overwrite.
# The output HBM buffer is aliased with `identity`; only the channel-0 plane
# is DMA'd and rewritten, channels 1..C-1 stay untouched in HBM.
# ---------------------------------------------------------------------------
def _thrwrite_kernel(thr_ref, ssim_ref, id_ref, o_ref, *, crop):
    i = pl.program_id(0)
    thr = thr_ref[i]
    s = ssim_ref[0]                     # (H, W) full SSIM map
    plane = id_ref[0, 0]                # (H, W) identity channel 0
    hh, ww = s.shape
    norm = ((s < thr).astype(jnp.float32) - MEAN) / STD
    rows = jax.lax.broadcasted_iota(jnp.int32, (hh, ww), 0)
    cols = jax.lax.broadcasted_iota(jnp.int32, (hh, ww), 1)
    inside = ((rows >= CUT) & (rows < CUT + crop) &
              (cols >= CUT) & (cols < CUT + crop))
    o_ref[0, 0] = jnp.where(inside, norm, plane)


def threshold_write_channel0(ssim_map, thresholds, identity, crop):
    n, c, h, w = identity.shape
    return pl.pallas_call(
        functools.partial(_thrwrite_kernel, crop=crop),
        out_shape=jax.ShapeDtypeStruct((n, c, h, w), identity.dtype),
        grid_spec=pltpu.PrefetchScalarGridSpec(
            num_scalar_prefetch=0,
            grid=(n,),
            in_specs=[
                pl.BlockSpec(memory_space=pltpu.SMEM),              # thresholds
                pl.BlockSpec((1, h, w), lambda i: (i, 0, 0)),       # ssim map
                pl.BlockSpec((1, 1, h, w), lambda i: (i, 0, 0, 0)), # identity ch0
            ],
            out_specs=pl.BlockSpec((1, 1, h, w), lambda i: (i, 0, 0, 0)),
        ),
        input_output_aliases={2: 0},    # output buffer IS identity's buffer
        compiler_params=pltpu.CompilerParams(
            dimension_semantics=("parallel",)),
    )(thresholds.astype(jnp.float32), ssim_map, identity)


# ---------------------------------------------------------------------------
# Otsu threshold (skimage.filters.threshold_otsu, 256 bins), vectorized
# broadcast-compare histogram (no scatter-add slow path).
# TODO(synk): small 256-bin reduction kept in plain JAX glue rather than Pallas.
# ---------------------------------------------------------------------------
def _otsu_threshold(img, nbins=256):
    vmin = img.min()
    vmax = img.max()
    span = jnp.maximum(vmax - vmin, 1e-12)
    flat = img.reshape(-1)
    idx = jnp.clip(
        jnp.floor((flat - vmin) / span * nbins), 0, nbins - 1
    ).astype(jnp.int32)
    bins = jnp.arange(nbins, dtype=jnp.int32)
    counts = jnp.sum((idx[:, None] == bins[None, :]).astype(jnp.float32), axis=0)
    centers = vmin + (span / nbins) * (jnp.arange(nbins, dtype=jnp.float32) + 0.5)
    w1 = jnp.cumsum(counts)
    w2 = jnp.cumsum(counts[::-1])[::-1]
    m1 = jnp.cumsum(counts * centers) / jnp.maximum(w1, 1e-12)
    m2 = (jnp.cumsum((counts * centers)[::-1]) / jnp.maximum(w2[::-1], 1e-12))[::-1]
    var12 = w1[:-1] * w2[1:] * (m1[:-1] - m2[1:]) ** 2
    return centers[jnp.argmax(var12)]


# ---------------------------------------------------------------------------
# Full forward pass (mirrors SegmentationModel.forward).
# ---------------------------------------------------------------------------
def segmentation_forward(x, params):
    n, c, h, w = x.shape
    identity = x

    # clean = self.model(x); image = mean(x, 1); clean_m = mean(clean, 1)
    image, clean_m = autoencoder_channel_means(x, params)

    # torchmetrics data_range=None -> max of the two per-tensor ranges
    data_range = jnp.maximum(image.max() - image.min(),
                             clean_m.max() - clean_m.min())
    c1 = (0.01 * data_range) ** 2
    c2 = (0.03 * data_range) ** 2

    ssim_map = ssim_full_image(image, clean_m, c1, c2)    # (N, H, W)

    crop = min(300 + CUT, h) - CUT                        # dif[:, :, cut:300+cut, ...]
    dif = ssim_map[:, CUT:CUT + crop, CUT:CUT + crop]
    thresholds = jax.vmap(_otsu_threshold)(dif)           # per-image Otsu

    # TODO(synk): original does `identity[:, 0] = dif[:, 0]` (assumes the cropped
    # SSIM map covers the full spatial extent); here channel 0 is overwritten on
    # the corresponding cropped region, fused + aliased into identity's buffer.
    out = threshold_write_channel0(ssim_map, thresholds, identity, crop)
    return out


if __name__ == "__main__":
    key = jax.random.PRNGKey(0)
    kx, k1, k2, k3, k4 = jax.random.split(key, 5)

    N, C, H, W = 2, 4, 32, 32
    HID = 32

    x = jax.random.uniform(kx, (N, C, H, W), dtype=jnp.float32)
    params = (
        0.1 * jax.random.normal(k1, (HID, C), dtype=jnp.float32),   # W1
        0.05 * jax.random.normal(k2, (HID, 1), dtype=jnp.float32),  # b1
        0.1 * jax.random.normal(k3, (C, HID), dtype=jnp.float32),   # W2
        0.05 * jax.random.normal(k4, (C, 1), dtype=jnp.float32),    # b2
    )

    out = jax.jit(segmentation_forward)(x, params)
    jax.block_until_ready(out)
    assert out.shape == (N, C, H, W) and out.dtype == jnp.float32
    print("KERNEL_OK")
</pallas_src>

<mosaic_0001>
module attributes {stable_mosaic.version = 11 : i64} {
  func.func @_autoenc_means_kernel(%arg0: i32, %arg1: i32, %arg2: memref<1x4x1024xf32, #tpu.memory_space<vmem>>, %arg3: memref<32x4xf32, #tpu.memory_space<vmem>>, %arg4: memref<32x1xf32, #tpu.memory_space<vmem>>, %arg5: memref<4x32xf32, #tpu.memory_space<vmem>>, %arg6: memref<4x1xf32, #tpu.memory_space<vmem>>, %arg7: memref<1x1x1024xf32, #tpu.memory_space<vmem>>, %arg8: memref<1x1x1024xf32, #tpu.memory_space<vmem>>) attributes {dimension_semantics = [#tpu.dimension_semantics<parallel>, #tpu.dimension_semantics<parallel>], iteration_bounds = array<i64: 2, 1>, scalar_prefetch = 0 : i64, scratch_operands = 0 : i64, tpu.core_type = #tpu.core_type<tc>, window_params = [{transform_indices = @transform_0, window_bounds = array<i64: 1, 4, 1024>}, {pipeline_mode = #tpu.pipeline_mode<synchronous>, transform_indices = @transform_1, window_bounds = array<i64: 32, 4>}, {pipeline_mode = #tpu.pipeline_mode<synchronous>, transform_indices = @transform_2, window_bounds = array<i64: 32, 1>}, {pipeline_mode = #tpu.pipeline_mode<synchronous>, transform_indices = @transform_3, window_bounds = array<i64: 4, 32>}, {pipeline_mode = #tpu.pipeline_mode<synchronous>, transform_indices = @transform_4, window_bounds = array<i64: 4, 1>}, {transform_indices = @transform_5, window_bounds = array<i64: 1, 1, 1024>}, {transform_indices = @transform_6, window_bounds = array<i64: 1, 1, 1024>}]} {
    %c0 = arith.constant 0 : index
    %c0_0 = arith.constant 0 : index
    %c0_1 = arith.constant 0 : index
    %0 = vector.load %arg2[%c0, %c0_0, %c0_1] : memref<1x4x1024xf32, #tpu.memory_space<vmem>>, vector<1x4x1024xf32>
    %1 = vector.shape_cast %0 : vector<1x4x1024xf32> to vector<4x1024xf32>
    %cst = arith.constant dense<0.000000e+00> : vector<1024xf32>
    %2 = vector.multi_reduction <add>, %1, %cst [0] : vector<4x1024xf32> to vector<1024xf32>
    %3 = vector.shape_cast %2 : vector<1024xf32> to vector<1x1024xf32>
    %cst_2 = arith.constant 4.000000e+00 : f32
    %4 = vector.broadcast %cst_2 : f32 to vector<1x1024xf32>
    %5 = arith.divf %3, %4 : vector<1x1024xf32>
    %c0_3 = arith.constant 0 : index
    %c0_4 = arith.constant 0 : index
    %c0_5 = arith.constant 0 : index
    %6 = vector.load %arg7[%c0_3, %c0_4, %c0_5] : memref<1x1x1024xf32, #tpu.memory_space<vmem>>, vector<1x1x1024xf32>
    %7 = vector.shape_cast %6 : vector<1x1x1024xf32> to vector<1x1024xf32>
    %8 = vector.shape_cast %5 : vector<1x1024xf32> to vector<1x1x1024xf32>
    tpu.vector_store %arg7[%c0_3, %c0_4, %c0_5], %8 {strides = array<i32>} : memref<1x1x1024xf32, #tpu.memory_space<vmem>>, vector<1x1x1024xf32>,
    %c0_6 = arith.constant 0 : index
    %c0_7 = arith.constant 0 : index
    %9 = vector.load %arg3[%c0_6, %c0_7] : memref<32x4xf32, #tpu.memory_space<vmem>>, vector<32x4xf32>
    %cst_8 = arith.constant dense<0.000000e+00> : vector<32x1024xf32>
    %10 = tpu.matmul %9, %1, %cst_8 {dimension_numbers = #tpu.dot_dimension_numbers<[1], [0], [0], [1], [0, 0, 1, 1], [], []>} : vector<32x4xf32>, vector<4x1024xf32>, vector<32x1024xf32> -> vector<32x1024xf32>
    %c0_9 = arith.constant 0 : index
    %c0_10 = arith.constant 0 : index
    %11 = vector.load %arg4[%c0_9, %c0_10] : memref<32x1xf32, #tpu.memory_space<vmem>>, vector<32x1xf32>
    %12 = vector.broadcast %11 : vector<32x1xf32> to vector<32x1024xf32>
    %13 = arith.addf %10, %12 : vector<32x1024xf32>
    %cst_11 = arith.constant 0.000000e+00 : f32
    %14 = vector.broadcast %cst_11 : f32 to vector<32x1024xf32>
    %15 = arith.maximumf %13, %14 : vector<32x1024xf32>
    %c0_12 = arith.constant 0 : index
    %c0_13 = arith.constant 0 : index
    %16 = vector.load %arg5[%c0_12, %c0_13] : memref<4x32xf32, #tpu.memory_space<vmem>>, vector<4x32xf32>
    %cst_14 = arith.constant dense<0.000000e+00> : vector<4x1024xf32>
    %17 = tpu.matmul %16, %15, %cst_14 {dimension_numbers = #tpu.dot_dimension_numbers<[1], [0], [0], [1], [0, 0, 1, 1], [], []>} : vector<4x32xf32>, vector<32x1024xf32>, vector<4x1024xf32> -> vector<4x1024xf32>
    %c0_15 = arith.constant 0 : index
    %c0_16 = arith.constant 0 : index
    %18 = vector.load %arg6[%c0_15, %c0_16] : memref<4x1xf32, #tpu.memory_space<vmem>>, vector<4x1xf32>
    %19 = vector.broadcast %18 : vector<4x1xf32> to vector<4x1024xf32>
    %20 = arith.addf %17, %19 : vector<4x1024xf32>
    %cst_17 = arith.constant dense<0.000000e+00> : vector<1024xf32>
    %21 = vector.multi_reduction <add>, %20, %cst_17 [0] : vector<4x1024xf32> to vector<1024xf32>
    %22 = vector.shape_cast %21 : vector<1024xf32> to vector<1x1024xf32>
    %cst_18 = arith.constant 4.000000e+00 : f32
    %23 = vector.broadcast %cst_18 : f32 to vector<1x1024xf32>
    %24 = arith.divf %22, %23 : vector<1x1024xf32>
    %c0_19 = arith.constant 0 : index
    %c0_20 = arith.constant 0 : index
    %c0_21 = arith.constant 0 : index
    %25 = vector.load %arg8[%c0_19, %c0_20, %c0_21] : memref<1x1x1024xf32, #tpu.memory_space<vmem>>, vector<1x1x1024xf32>
    %26 = vector.shape_cast %25 : vector<1x1x1024xf32> to vector<1x1024xf32>
    %27 = vector.shape_cast %24 : vector<1x1024xf32> to vector<1x1x1024xf32>
    tpu.vector_store %arg8[%c0_19, %c0_20, %c0_21], %27 {strides = array<i32>} : memref<1x1x1024xf32, #tpu.memory_space<vmem>>, vector<1x1x1024xf32>,
    return
  }
  func.func @transform_0(%arg0: i32, %arg1: i32) -> (i32, i32, i32) {
    %c0_i32 = arith.constant 0 : i32
    %c0_i32_0 = arith.constant 0 : i32
    return %arg0, %c0_i32, %arg1 : i32, i32, i32
  }
  func.func @transform_1(%arg0: i32, %arg1: i32) -> (i32, i32) {
    %c0_i32 = arith.constant 0 : i32
    %c0_i32_0 = arith.constant 0 : i32
    %c0_i32_1 = arith.constant 0 : i32
    return %c0_i32, %c0_i32_0 : i32, i32
  }
  func.func @transform_2(%arg0: i32, %arg1: i32) -> (i32, i32) {
    %c0_i32 = arith.constant 0 : i32
    %c0_i32_0 = arith.constant 0 : i32
    %c0_i32_1 = arith.constant 0 : i32
    return %c0_i32, %c0_i32_0 : i32, i32
  }
  func.func @transform_3(%arg0: i32, %arg1: i32) -> (i32, i32) {
    %c0_i32 = arith.constant 0 : i32
    %c0_i32_0 = arith.constant 0 : i32
    %c0_i32_1 = arith.constant 0 : i32
    return %c0_i32, %c0_i32_0 : i32, i32
  }
  func.func @transform_4(%arg0: i32, %arg1: i32) -> (i32, i32) {
    %c0_i32 = arith.constant 0 : i32
    %c0_i32_0 = arith.constant 0 : i32
    %c0_i32_1 = arith.constant 0 : i32
    return %c0_i32, %c0_i32_0 : i32, i32
  }
  func.func @transform_5(%arg0: i32, %arg1: i32) -> (i32, i32, i32) {
    %c0_i32 = arith.constant 0 : i32
    %c0_i32_0 = arith.constant 0 : i32
    return %arg0, %c0_i32, %arg1 : i32, i32, i32
  }
  func.func @transform_6(%arg0: i32, %arg1: i32) -> (i32, i32, i32) {
    %c0_i32 = arith.constant 0 : i32
    %c0_i32_0 = arith.constant 0 : i32
    return %arg0, %c0_i32, %arg1 : i32, i32, i32
  }
}

module attributes {stable_mosaic.version = 11 : i64} {
  func.func @_ssim_kernel(%arg0: i32, %arg1: memref<2xf32, #tpu.memory_space<smem>>, %arg2: memref<1x40x40xf32, #tpu.memory_space<vmem>>, %arg3: memref<1x40x40xf32, #tpu.memory_space<vmem>>, %arg4: memref<1x32x32xf32, #tpu.memory_space<vmem>>) attributes {dimension_semantics = [#tpu.dimension_semantics<parallel>], iteration_bounds = array<i64: 2>, scalar_prefetch = 0 : i64, scratch_operands = 0 : i64, tpu.core_type = #tpu.core_type<tc>, window_params = [{transform_indices = @transform_0, window_bounds = array<i64: 2>}, {transform_indices = @transform_1, window_bounds = array<i64: 1, 40, 40>}, {transform_indices = @transform_2, window_bounds = array<i64: 1, 40, 40>}, {transform_indices = @transform_3, window_bounds = array<i64: 1, 32, 32>}]} {
    %c0 = arith.constant 0 : index
    %c0_0 = arith.constant 0 : index
    %c0_1 = arith.constant 0 : index
    %0 = vector.load %arg2[%c0, %c0_0, %c0_1] : memref<1x40x40xf32, #tpu.memory_space<vmem>>, vector<1x40x40xf32>
    %1 = vector.shape_cast %0 : vector<1x40x40xf32> to vector<40x40xf32>
    %c0_2 = arith.constant 0 : index
    %c0_3 = arith.constant 0 : index
    %c0_4 = arith.constant 0 : index
    %2 = vector.load %arg3[%c0_2, %c0_3, %c0_4] : memref<1x40x40xf32, #tpu.memory_space<vmem>>, vector<1x40x40xf32>
    %3 = vector.shape_cast %2 : vector<1x40x40xf32> to vector<40x40xf32>
    %4 = vector.extract_strided_slice %1 {offsets = [0, 0], sizes = [40, 32], strides = [1, 1]} : vector<40x40xf32> to vector<40x32xf32>
    %5 = vector.extract_strided_slice %1 {offsets = [0, 1], sizes = [40, 32], strides = [1, 1]} : vector<40x40xf32> to vector<40x32xf32>
    %6 = arith.addf %4, %5 : vector<40x32xf32>
    %7 = vector.extract_strided_slice %1 {offsets = [0, 2], sizes = [40, 32], strides = [1, 1]} : vector<40x40xf32> to vector<40x32xf32>
    %8 = arith.addf %6, %7 : vector<40x32xf32>
    %9 = vector.extract_strided_slice %1 {offsets = [0, 3], sizes = [40, 32], strides = [1, 1]} : vector<40x40xf32> to vector<40x32xf32>
    %10 = arith.addf %8, %9 : vector<40x32xf32>
    %11 = vector.extract_strided_slice %1 {offsets = [0, 4], sizes = [40, 32], strides = [1, 1]} : vector<40x40xf32> to vector<40x32xf32>
    %12 = arith.addf %10, %11 : vector<40x32xf32>
    %13 = vector.extract_strided_slice %1 {offsets = [0, 5], sizes = [40, 32], strides = [1, 1]} : vector<40x40xf32> to vector<40x32xf32>
    %14 = arith.addf %12, %13 : vector<40x32xf32>
    %15 = vector.extract_strided_slice %1 {offsets = [0, 6], sizes = [40, 32], strides = [1, 1]} : vector<40x40xf32> to vector<40x32xf32>
    %16 = arith.addf %14, %15 : vector<40x32xf32>
    %17 = vector.extract_strided_slice %1 {offsets = [0, 7], sizes = [40, 32], strides = [1, 1]} : vector<40x40xf32> to vector<40x32xf32>
    %18 = arith.addf %16, %17 : vector<40x32xf32>
    %19 = vector.extract_strided_slice %1 {offsets = [0, 8], sizes = [40, 32], strides = [1, 1]} : vector<40x40xf32> to vector<40x32xf32>
    %20 = arith.addf %18, %19 : vector<40x32xf32>
    %21 = vector.extract_strided_slice %20 {offsets = [0, 0], sizes = [32, 32], strides = [1, 1]} : vector<40x32xf32> to vector<32x32xf32>
    %22 = vector.extract_strided_slice %20 {offsets = [1, 0], sizes = [32, 32], strides = [1, 1]} : vector<40x32xf32> to vector<32x32xf32>
    %23 = arith.addf %21, %22 : vector<32x32xf32>
    %24 = vector.extract_strided_slice %20 {offsets = [2, 0], sizes = [32, 32], strides = [1, 1]} : vector<40x32xf32> to vector<32x32xf32>
    %25 = arith.addf %23, %24 : vector<32x32xf32>
    %26 = vector.extract_strided_slice %20 {offsets = [3, 0], sizes = [32, 32], strides = [1, 1]} : vector<40x32xf32> to vector<32x32xf32>
    %27 = arith.addf %25, %26 : vector<32x32xf32>
    %28 = vector.extract_strided_slice %20 {offsets = [4, 0], sizes = [32, 32], strides = [1, 1]} : vector<40x32xf32> to vector<32x32xf32>
    %29 = arith.addf %27, %28 : vector<32x32xf32>
    %30 = vector.extract_strided_slice %20 {offsets = [5, 0], sizes = [32, 32], strides = [1, 1]} : vector<40x32xf32> to vector<32x32xf32>
    %31 = arith.addf %29, %30 : vector<32x32xf32>
    %32 = vector.extract_strided_slice %20 {offsets = [6, 0], sizes = [32, 32], strides = [1, 1]} : vector<40x32xf32> to vector<32x32xf32>
    %33 = arith.addf %31, %32 : vector<32x32xf32>
    %34 = vector.extract_strided_slice %20 {offsets = [7, 0], sizes = [32, 32], strides = [1, 1]} : vector<40x32xf32> to vector<32x32xf32>
    %35 = arith.addf %33, %34 : vector<32x32xf32>
    %36 = vector.extract_strided_slice %20 {offsets = [8, 0], sizes = [32, 32], strides = [1, 1]} : vector<40x32xf32> to vector<32x32xf32>
    %37 = arith.addf %35, %36 : vector<32x32xf32>
    %cst = arith.constant 0.0123456791 : f32
    %38 = vector.broadcast %cst : f32 to vector<32x32xf32>
    %39 = arith.mulf %37, %38 : vector<32x32xf32>
    %40 = vector.extract_strided_slice %3 {offsets = [0, 0], sizes = [40, 32], strides = [1, 1]} : vector<40x40xf32> to vector<40x32xf32>
    %41 = vector.extract_strided_slice %3 {offsets = [0, 1], sizes = [40, 32], strides = [1, 1]} : vector<40x40xf32> to vector<40x32xf32>
    %42 = arith.addf %40, %41 : vector<40x32xf32>
    %43 = vector.extract_strided_slice %3 {offsets = [0, 2], sizes = [40, 32], strides = [1, 1]} : vector<40x40xf32> to vector<40x32xf32>
    %44 = arith.addf %42, %43 : vector<40x32xf32>
    %45 = vector.extract_strided_slice %3 {offsets = [0, 3], sizes = [40, 32], strides = [1, 1]} : vector<40x40xf32> to vector<40x32xf32>
    %46 = arith.addf %44, %45 : vector<40x32xf32>
    %47 = vector.extract_strided_slice %3 {offsets = [0, 4], sizes = [40, 32], strides = [1, 1]} : vector<40x40xf32> to vector<40x32xf32>
    %48 = arith.addf %46, %47 : vector<40x32xf32>
    %49 = vector.extract_strided_slice %3 {offsets = [0, 5], sizes = [40, 32], strides = [1, 1]} : vector<40x40xf32> to vector<40x32xf32>
    %50 = arith.addf %48, %49 : vector<40x32xf32>
    %51 = vector.extract_strided_slice %3 {offsets = [0, 6], sizes = [40, 32], strides = [1, 1]} : vector<40x40xf32> to vector<40x32xf32>
    %52 = arith.addf %50, %51 : vector<40x32xf32>
    %53 = vector.extract_strided_slice %3 {offsets = [0, 7], sizes = [40, 32], strides = [1, 1]} : vector<40x40xf32> to vector<40x32xf32>
    %54 = arith.addf %52, %53 : vector<40x32xf32>
    %55 = vector.extract_strided_slice %3 {offsets = [0, 8], sizes = [40, 32], strides = [1, 1]} : vector<40x40xf32> to vector<40x32xf32>
    %56 = arith.addf %54, %55 : vector<40x32xf32>
    %57 = vector.extract_strided_slice %56 {offsets = [0, 0], sizes = [32, 32], strides = [1, 1]} : vector<40x32xf32> to vector<32x32xf32>
    %58 = vector.extract_strided_slice %56 {offsets = [1, 0], sizes = [32, 32], strides = [1, 1]} : vector<40x32xf32> to vector<32x32xf32>
    %59 = arith.addf %57, %58 : vector<32x32xf32>
    %60 = vector.extract_strided_slice %56 {offsets = [2, 0], sizes = [32, 32], strides = [1, 1]} : vector<40x32xf32> to vector<32x32xf32>
    %61 = arith.addf %59, %60 : vector<32x32xf32>
    %62 = vector.extract_strided_slice %56 {offsets = [3, 0], sizes = [32, 32], strides = [1, 1]} : vector<40x32xf32> to vector<32x32xf32>
    %63 = arith.addf %61, %62 : vector<32x32xf32>
    %64 = vector.extract_strided_slice %56 {offsets = [4, 0], sizes = [32, 32], strides = [1, 1]} : vector<40x32xf32> to vector<32x32xf32>
    %65 = arith.addf %63, %64 : vector<32x32xf32>
    %66 = vector.extract_strided_slice %56 {offsets = [5, 0], sizes = [32, 32], strides = [1, 1]} : vector<40x32xf32> to vector<32x32xf32>
    %67 = arith.addf %65, %66 : vector<32x32xf32>
    %68 = vector.extract_strided_slice %56 {offsets = [6, 0], sizes = [32, 32], strides = [1, 1]} : vector<40x32xf32> to vector<32x32xf32>
    %69 = arith.addf %67, %68 : vector<32x32xf32>
    %70 = vector.extract_strided_slice %56 {offsets = [7, 0], sizes = [32, 32], strides = [1, 1]} : vector<40x32xf32> to vector<32x32xf32>
    %71 = arith.addf %69, %70 : vector<32x32xf32>
    %72 = vector.extract_strided_slice %56 {offsets = [8, 0], sizes = [32, 32], strides = [1, 1]} : vector<40x32xf32> to vector<32x32xf32>
    %73 = arith.addf %71, %72 : vector<32x32xf32>
    %cst_5 = arith.constant 0.0123456791 : f32
    %74 = vector.broadcast %cst_5 : f32 to vector<32x32xf32>
    %75 = arith.mulf %73, %74 : vector<32x32xf32>
    %76 = arith.mulf %1, %1 : vector<40x40xf32>
    %77 = vector.extract_strided_slice %76 {offsets = [0, 0], sizes = [40, 32], strides = [1, 1]} : vector<40x40xf32> to vector<40x32xf32>
    %78 = vector.extract_strided_slice %76 {offsets = [0, 1], sizes = [40, 32], strides = [1, 1]} : vector<40x40xf32> to vector<40x32xf32>
    %79 = arith.addf %77, %78 : vector<40x32xf32>
    %80 = vector.extract_strided_slice %76 {offsets = [0, 2], sizes = [40, 32], strides = [1, 1]} : vector<40x40xf32> to vector<40x32xf32>
    %81 = arith.addf %79, %80 : vector<40x32xf32>
    %82 = vector.extract_strided_slice %76 {offsets = [0, 3], sizes = [40, 32], strides = [1, 1]} : vector<40x40xf32> to vector<40x32xf32>
    %83 = arith.addf %81, %82 : vector<40x32xf32>
    %84 = vector.extract_strided_slice %76 {offsets = [0, 4], sizes = [40, 32], strides = [1, 1]} : vector<40x40xf32> to vector<40x32xf32>
    %85 = arith.addf %83, %84 : vector<40x32xf32>
    %86 = vector.extract_strided_slice %76 {offsets = [0, 5], sizes = [40, 32], strides = [1, 1]} : vector<40x40xf32> to vector<40x32xf32>
    %87 = arith.addf %85, %86 : vector<40x32xf32>
    %88 = vector.extract_strided_slice %76 {offsets = [0, 6], sizes = [40, 32], strides = [1, 1]} : vector<40x40xf32> to vector<40x32xf32>
    %89 = arith.addf %87, %88 : vector<40x32xf32>
    %90 = vector.extract_strided_slice %76 {offsets = [0, 7], sizes = [40, 32], strides = [1, 1]} : vector<40x40xf32> to vector<40x32xf32>
    %91 = arith.addf %89, %90 : vector<40x32xf32>
    %92 = vector.extract_strided_slice %76 {offsets = [0, 8], sizes = [40, 32], strides = [1, 1]} : vector<40x40xf32> to vector<40x32xf32>
    %93 = arith.addf %91, %92 : vector<40x32xf32>
    %94 = vector.extract_strided_slice %93 {offsets = [0, 0], sizes = [32, 32], strides = [1, 1]} : vector<40x32xf32> to vector<32x32xf32>
    %95 = vector.extract_strided_slice %93 {offsets = [1, 0], sizes = [32, 32], strides = [1, 1]} : vector<40x32xf32> to vector<32x32xf32>
    %96 = arith.addf %94, %95 : vector<32x32xf32>
    %97 = vector.extract_strided_slice %93 {offsets = [2, 0], sizes = [32, 32], strides = [1, 1]} : vector<40x32xf32> to vector<32x32xf32>
    %98 = arith.addf %96, %97 : vector<32x32xf32>
    %99 = vector.extract_strided_slice %93 {offsets = [3, 0], sizes = [32, 32], strides = [1, 1]} : vector<40x32xf32> to vector<32x32xf32>
    %100 = arith.addf %98, %99 : vector<32x32xf32>
    %101 = vector.extract_strided_slice %93 {offsets = [4, 0], sizes = [32, 32], strides = [1, 1]} : vector<40x32xf32> to vector<32x32xf32>
    %102 = arith.addf %100, %101 : vector<32x32xf32>
    %103 = vector.extract_strided_slice %93 {offsets = [5, 0], sizes = [32, 32], strides = [1, 1]} : vector<40x32xf32> to vector<32x32xf32>
    %104 = arith.addf %102, %103 : vector<32x32xf32>
    %105 = vector.extract_strided_slice %93 {offsets = [6, 0], sizes = [32, 32], strides = [1, 1]} : vector<40x32xf32> to vector<32x32xf32>
    %106 = arith.addf %104, %105 : vector<32x32xf32>
    %107 = vector.extract_strided_slice %93 {offsets = [7, 0], sizes = [32, 32], strides = [1, 1]} : vector<40x32xf32> to vector<32x32xf32>
    %108 = arith.addf %106, %107 : vector<32x32xf32>
    %109 = vector.extract_strided_slice %93 {offsets = [8, 0], sizes = [32, 32], strides = [1, 1]} : vector<40x32xf32> to vector<32x32xf32>
    %110 = arith.addf %108, %109 : vector<32x32xf32>
    %cst_6 = arith.constant 0.0123456791 : f32
    %111 = vector.broadcast %cst_6 : f32 to vector<32x32xf32>
    %112 = arith.mulf %110, %111 : vector<32x32xf32>
    %113 = arith.mulf %3, %3 : vector<40x40xf32>
    %114 = vector.extract_strided_slice %113 {offsets = [0, 0], sizes = [40, 32], strides = [1, 1]} : vector<40x40xf32> to vector<40x32xf32>
    %115 = vector.extract_strided_slice %113 {offsets = [0, 1], sizes = [40, 32], strides = [1, 1]} : vector<40x40xf32> to vector<40x32xf32>
    %116 = arith.addf %114, %115 : vector<40x32xf32>
    %117 = vector.extract_strided_slice %113 {offsets = [0, 2], sizes = [40, 32], strides = [1, 1]} : vector<40x40xf32> to vector<40x32xf32>
    %118 = arith.addf %116, %117 : vector<40x32xf32>
    %119 = vector.extract_strided_slice %113 {offsets = [0, 3], sizes = [40, 32], strides = [1, 1]} : vector<40x40xf32> to vector<40x32xf32>
    %120 = arith.addf %118, %119 : vector<40x32xf32>
    %121 = vector.extract_strided_slice %113 {offsets = [0, 4], sizes = [40, 32], strides = [1, 1]} : vector<40x40xf32> to vector<40x32xf32>
    %122 = arith.addf %120, %121 : vector<40x32xf32>
    %123 = vector.extract_strided_slice %113 {offsets = [0, 5], sizes = [40, 32], strides = [1, 1]} : vector<40x40xf32> to vector<40x32xf32>
    %124 = arith.addf %122, %123 : vector<40x32xf32>
    %125 = vector.extract_strided_slice %113 {offsets = [0, 6], sizes = [40, 32], strides = [1, 1]} : vector<40x40xf32> to vector<40x32xf32>
    %126 = arith.addf %124, %125 : vector<40x32xf32>
    %127 = vector.extract_strided_slice %113 {offsets = [0, 7], sizes = [40, 32], strides = [1, 1]} : vector<40x40xf32> to vector<40x32xf32>
    %128 = arith.addf %126, %127 : vector<40x32xf32>
    %129 = vector.extract_strided_slice %113 {offsets = [0, 8], sizes = [40, 32], strides = [1, 1]} : vector<40x40xf32> to vector<40x32xf32>
    %130 = arith.addf %128, %129 : vector<40x32xf32>
    %131 = vector.extract_strided_slice %130 {offsets = [0, 0], sizes = [32, 32], strides = [1, 1]} : vector<40x32xf32> to vector<32x32xf32>
    %132 = vector.extract_strided_slice %130 {offsets = [1, 0], sizes = [32, 32], strides = [1, 1]} : vector<40x32xf32> to vector<32x32xf32>
    %133 = arith.addf %131, %132 : vector<32x32xf32>
    %134 = vector.extract_strided_slice %130 {offsets = [2, 0], sizes = [32, 32], strides = [1, 1]} : vector<40x32xf32> to vector<32x32xf32>
    %135 = arith.addf %133, %134 : vector<32x32xf32>
    %136 = vector.extract_strided_slice %130 {offsets = [3, 0], sizes = [32, 32], strides = [1, 1]} : vector<40x32xf32> to vector<32x32xf32>
    %137 = arith.addf %135, %136 : vector<32x32xf32>
    %138 = vector.extract_strided_slice %130 {offsets = [4, 0], sizes = [32, 32], strides = [1, 1]} : vector<40x32xf32> to vector<32x32xf32>
    %139 = arith.addf %137, %138 : vector<32x32xf32>
    %140 = vector.extract_strided_slice %130 {offsets = [5, 0], sizes = [32, 32], strides = [1, 1]} : vector<40x32xf32> to vector<32x32xf32>
    %141 = arith.addf %139, %140 : vector<32x32xf32>
    %142 = vector.extract_strided_slice %130 {offsets = [6, 0], sizes = [32, 32], strides = [1, 1]} : vector<40x32xf32> to vector<32x32xf32>
    %143 = arith.addf %141, %142 : vector<32x32xf32>
    %144 = vector.extract_strided_slice %130 {offsets = [7, 0], sizes = [32, 32], strides = [1, 1]} : vector<40x32xf32> to vector<32x32xf32>
    %145 = arith.addf %143, %144 : vector<32x32xf32>
    %146 = vector.extract_strided_slice %130 {offsets = [8, 0], sizes = [32, 32], strides = [1, 1]} : vector<40x32xf32> to vector<32x32xf32>
    %147 = arith.addf %145, %146 : vector<32x32xf32>
    %cst_7 = arith.constant 0.0123456791 : f32
    %148 = vector.broadcast %cst_7 : f32 to vector<32x32xf32>
    %149 = arith.mulf %147, %148 : vector<32x32xf32>
    %150 = arith.mulf %1, %3 : vector<40x40xf32>
    %151 = vector.extract_strided_slice %150 {offsets = [0, 0], sizes = [40, 32], strides = [1, 1]} : vector<40x40xf32> to vector<40x32xf32>
    %152 = vector.extract_strided_slice %150 {offsets = [0, 1], sizes = [40, 32], strides = [1, 1]} : vector<40x40xf32> to vector<40x32xf32>
    %153 = arith.addf %151, %152 : vector<40x32xf32>
    %154 = vector.extract_strided_slice %150 {offsets = [0, 2], sizes = [40, 32], strides = [1, 1]} : vector<40x40xf32> to vector<40x32xf32>
    %155 = arith.addf %153, %154 : vector<40x32xf32>
    %156 = vector.extract_strided_slice %150 {offsets = [0, 3], sizes = [40, 32], strides = [1, 1]} : vector<40x40xf32> to vector<40x32xf32>
    %157 = arith.addf %155, %156 : vector<40x32xf32>
    %158 = vector.extract_strided_slice %150 {offsets = [0, 4], sizes = [40, 32], strides = [1, 1]} : vector<40x40xf32> to vector<40x32xf32>
    %159 = arith.addf %157, %158 : vector<40x32xf32>
    %160 = vector.extract_strided_slice %150 {offsets = [0, 5], sizes = [40, 32], strides = [1, 1]} : vector<40x40xf32> to vector<40x32xf32>
    %161 = arith.addf %159, %160 : vector<40x32xf32>
    %162 = vector.extract_strided_slice %150 {offsets = [0, 6], sizes = [40, 32], strides = [1, 1]} : vector<40x40xf32> to vector<40x32xf32>
    %163 = arith.addf %161, %162 : vector<40x32xf32>
    %164 = vector.extract_strided_slice %150 {offsets = [0, 7], sizes = [40, 32], strides = [1, 1]} : vector<40x40xf32> to vector<40x32xf32>
    %165 = arith.addf %163, %164 : vector<40x32xf32>
    %166 = vector.extract_strided_slice %150 {offsets = [0, 8], sizes = [40, 32], strides = [1, 1]} : vector<40x40xf32> to vector<40x32xf32>
    %167 = arith.addf %165, %166 : vector<40x32xf32>
    %168 = vector.extract_strided_slice %167 {offsets = [0, 0], sizes = [32, 32], strides = [1, 1]} : vector<40x32xf32> to vector<32x32xf32>
    %169 = vector.extract_strided_slice %167 {offsets = [1, 0], sizes = [32, 32], strides = [1, 1]} : vector<40x32xf32> to vector<32x32xf32>
    %170 = arith.addf %168, %169 : vector<32x32xf32>
    %171 = vector.extract_strided_slice %167 {offsets = [2, 0], sizes = [32, 32], strides = [1, 1]} : vector<40x32xf32> to vector<32x32xf32>
    %172 = arith.addf %170, %171 : vector<32x32xf32>
    %173 = vector.extract_strided_slice %167 {offsets = [3, 0], sizes = [32, 32], strides = [1, 1]} : vector<40x32xf32> to vector<32x32xf32>
    %174 = arith.addf %172, %173 : vector<32x32xf32>
    %175 = vector.extract_strided_slice %167 {offsets = [4, 0], sizes = [32, 32], strides = [1, 1]} : vector<40x32xf32> to vector<32x32xf32>
    %176 = arith.addf %174, %175 : vector<32x32xf32>
    %177 = vector.extract_strided_slice %167 {offsets = [5, 0], sizes = [32, 32], strides = [1, 1]} : vector<40x32xf32> to vector<32x32xf32>
    %178 = arith.addf %176, %177 : vector<32x32xf32>
    %179 = vector.extract_strided_slice %167 {offsets = [6, 0], sizes = [32, 32], strides = [1, 1]} : vector<40x32xf32> to vector<32x32xf32>
    %180 = arith.addf %178, %179 : vector<32x32xf32>
    %181 = vector.extract_strided_slice %167 {offsets = [7, 0], sizes = [32, 32], strides = [1, 1]} : vector<40x32xf32> to vector<32x32xf32>
    %182 = arith.addf %180, %181 : vector<32x32xf32>
    %183 = vector.extract_strided_slice %167 {offsets = [8, 0], sizes = [32, 32], strides = [1, 1]} : vector<40x32xf32> to vector<32x32xf32>
    %184 = arith.addf %182, %183 : vector<32x32xf32>
    %cst_8 = arith.constant 0.0123456791 : f32
    %185 = vector.broadcast %cst_8 : f32 to vector<32x32xf32>
    %186 = arith.mulf %184, %185 : vector<32x32xf32>
    %c0_9 = arith.constant 0 : index
    %187 = memref.load %arg1[%c0_9] : memref<2xf32, #tpu.memory_space<smem>>
    %c1 = arith.constant 1 : index
    %188 = memref.load %arg1[%c1] : memref<2xf32, #tpu.memory_space<smem>>
    %189 = arith.mulf %39, %39 : vector<32x32xf32>
    %190 = arith.subf %112, %189 : vector<32x32xf32>
    %191 = arith.mulf %75, %75 : vector<32x32xf32>
    %192 = arith.subf %149, %191 : vector<32x32xf32>
    %193 = arith.mulf %39, %75 : vector<32x32xf32>
    %194 = arith.subf %186, %193 : vector<32x32xf32>
    %cst_10 = arith.constant 2.000000e+00 : f32
    %195 = vector.broadcast %cst_10 : f32 to vector<32x32xf32>
    %196 = arith.mulf %195, %39 : vector<32x32xf32>
    %197 = arith.mulf %196, %75 : vector<32x32xf32>
    %198 = vector.broadcast %187 : f32 to vector<32x32xf32>
    %199 = arith.addf %197, %198 : vector<32x32xf32>
    %cst_11 = arith.constant 2.000000e+00 : f32
    %200 = vector.broadcast %cst_11 : f32 to vector<32x32xf32>
    %201 = arith.mulf %200, %194 : vector<32x32xf32>
    %202 = vector.broadcast %188 : f32 to vector<32x32xf32>
    %203 = arith.addf %201, %202 : vector<32x32xf32>
    %204 = arith.mulf %199, %203 : vector<32x32xf32>
    %205 = arith.mulf %39, %39 : vector<32x32xf32>
    %206 = arith.mulf %75, %75 : vector<32x32xf32>
    %207 = arith.addf %205, %206 : vector<32x32xf32>
    %208 = vector.broadcast %187 : f32 to vector<32x32xf32>
    %209 = arith.addf %207, %208 : vector<32x32xf32>
    %210 = arith.addf %190, %192 : vector<32x32xf32>
    %211 = vector.broadcast %188 : f32 to vector<32x32xf32>
    %212 = arith.addf %210, %211 : vector<32x32xf32>
    %213 = arith.mulf %209, %212 : vector<32x32xf32>
    %214 = arith.divf %204, %213 : vector<32x32xf32>
    %c0_12 = arith.constant 0 : index
    %c0_13 = arith.constant 0 : index
    %c0_14 = arith.constant 0 : index
    %215 = vector.load %arg4[%c0_12, %c0_13, %c0_14] : memref<1x32x32xf32, #tpu.memory_space<vmem>>, vector<1x32x32xf32>
    %216 = vector.shape_cast %215 : vector<1x32x32xf32> to vector<32x32xf32>
    %217 = vector.shape_cast %214 : vector<32x32xf32> to vector<1x32x32xf32>
    tpu.vector_store %arg4[%c0_12, %c0_13, %c0_14], %217 {strides = array<i32>} : memref<1x32x32xf32, #tpu.memory_space<vmem>>, vector<1x32x32xf32>,
    return
  }
  func.func @transform_0(%arg0: i32) -> i32 {
    %c0_i32 = arith.constant 0 : i32
    %c0_i32_0 = arith.constant 0 : i32
    return %c0_i32 : i32
  }
  func.func @transform_1(%arg0: i32) -> (i32, i32, i32) {
    %c0_i32 = arith.constant 0 : i32
    %c0_i32_0 = arith.constant 0 : i32
    %c0_i32_1 = arith.constant 0 : i32
    return %arg0, %c0_i32, %c0_i32_0 : i32, i32, i32
  }
  func.func @transform_2(%arg0: i32) -> (i32, i32, i32) {
    %c0_i32 = arith.constant 0 : i32
    %c0_i32_0 = arith.constant 0 : i32
    %c0_i32_1 = arith.constant 0 : i32
    return %arg0, %c0_i32, %c0_i32_0 : i32, i32, i32
  }
  func.func @transform_3(%arg0: i32) -> (i32, i32, i32) {
    %c0_i32 = arith.constant 0 : i32
    %c0_i32_0 = arith.constant 0 : i32
    %c0_i32_1 = arith.constant 0 : i32
    return %arg0, %c0_i32, %c0_i32_0 : i32, i32, i32
  }
}

module attributes {stable_mosaic.version = 11 : i64} {
  func.func @_thrwrite_kernel(%arg0: i32, %arg1: memref<2xf32, #tpu.memory_space<smem>>, %arg2: memref<1x32x32xf32, #tpu.memory_space<vmem>>, %arg3: memref<1x1x32x32xf32, #tpu.memory_space<vmem>>, %arg4: memref<1x1x32x32xf32, #tpu.memory_space<vmem>>) attributes {dimension_semantics = [#tpu.dimension_semantics<parallel>], iteration_bounds = array<i64: 2>, scalar_prefetch = 0 : i64, scratch_operands = 0 : i64, tpu.core_type = #tpu.core_type<tc>, window_params = [{transform_indices = @transform_0, window_bounds = array<i64: 2>}, {transform_indices = @transform_1, window_bounds = array<i64: 1, 32, 32>}, {transform_indices = @transform_2, window_bounds = array<i64: 1, 1, 32, 32>}, {transform_indices = @transform_3, window_bounds = array<i64: 1, 1, 32, 32>}]} {
    %0 = arith.index_cast %arg0 : i32 to index
    %1 = memref.load %arg1[%0] : memref<2xf32, #tpu.memory_space<smem>>
    %c0 = arith.constant 0 : index
    %c0_0 = arith.constant 0 : index
    %c0_1 = arith.constant 0 : index
    %2 = vector.load %arg2[%c0, %c0_0, %c0_1] : memref<1x32x32xf32, #tpu.memory_space<vmem>>, vector<1x32x32xf32>
    %3 = vector.shape_cast %2 : vector<1x32x32xf32> to vector<32x32xf32>
    %c0_2 = arith.constant 0 : index
    %c0_3 = arith.constant 0 : index
    %c0_4 = arith.constant 0 : index
    %c0_5 = arith.constant 0 : index
    %4 = vector.load %arg3[%c0_2, %c0_3, %c0_4, %c0_5] : memref<1x1x32x32xf32, #tpu.memory_space<vmem>>, vector<1x1x32x32xf32>
    %5 = vector.shape_cast %4 : vector<1x1x32x32xf32> to vector<32x32xf32>
    %6 = vector.broadcast %1 : f32 to vector<32x32xf32>
    %7 = arith.cmpf olt, %3, %6 : vector<32x32xf32>
    %8 = arith.extui %7 : vector<32x32xi1> to vector<32x32xi32>
    %9 = arith.sitofp %8 : vector<32x32xi32> to vector<32x32xf32>
    %cst = arith.constant 0.596852541 : f32
    %10 = vector.broadcast %cst : f32 to vector<32x32xf32>
    %11 = arith.subf %9, %10 : vector<32x32xf32>
    %cst_6 = arith.constant 0.160430357 : f32
    %12 = vector.broadcast %cst_6 : f32 to vector<32x32xf32>
    %13 = arith.divf %11, %12 : vector<32x32xf32>
    %14 = tpu.iota {dimensions = array<i32: 0>} : vector<32x32xi32>
    %15 = tpu.iota {dimensions = array<i32: 1>} : vector<32x32xi32>
    %c1_i32 = arith.constant 1 : i32
    %16 = vector.broadcast %c1_i32 : i32 to vector<32x32xi32>
    %17 = arith.cmpi sge, %14, %16 : vector<32x32xi32>
    %c32_i32 = arith.constant 32 : i32
    %18 = vector.broadcast %c32_i32 : i32 to vector<32x32xi32>
    %19 = arith.cmpi slt, %14, %18 : vector<32x32xi32>
    %20 = arith.andi %17, %19 : vector<32x32xi1>
    %c1_i32_7 = arith.constant 1 : i32
    %21 = vector.broadcast %c1_i32_7 : i32 to vector<32x32xi32>
    %22 = arith.cmpi sge, %15, %21 : vector<32x32xi32>
    %23 = arith.andi %20, %22 : vector<32x32xi1>
    %c32_i32_8 = arith.constant 32 : i32
    %24 = vector.broadcast %c32_i32_8 : i32 to vector<32x32xi32>
    %25 = arith.cmpi slt, %15, %24 : vector<32x32xi32>
    %26 = arith.andi %23, %25 : vector<32x32xi1>
    %27 = arith.select %26, %13, %5 : vector<32x32xi1>, vector<32x32xf32>
    %c0_9 = arith.constant 0 : index
    %c0_10 = arith.constant 0 : index
    %c0_11 = arith.constant 0 : index
    %c0_12 = arith.constant 0 : index
    %28 = vector.load %arg4[%c0_9, %c0_10, %c0_11, %c0_12] : memref<1x1x32x32xf32, #tpu.memory_space<vmem>>, vector<1x1x32x32xf32>
    %29 = vector.shape_cast %28 : vector<1x1x32x32xf32> to vector<32x32xf32>
    %30 = vector.shape_cast %27 : vector<32x32xf32> to vector<1x1x32x32xf32>
    tpu.vector_store %arg4[%c0_9, %c0_10, %c0_11, %c0_12], %30 {strides = array<i32>} : memref<1x1x32x32xf32, #tpu.memory_space<vmem>>, vector<1x1x32x32xf32>,
    return
  }
  func.func @transform_0(%arg0: i32) -> i32 {
    %c0_i32 = arith.constant 0 : i32
    %c0_i32_0 = arith.constant 0 : i32
    return %c0_i32 : i32
  }
  func.func @transform_1(%arg0: i32) -> (i32, i32, i32) {
    %c0_i32 = arith.constant 0 : i32
    %c0_i32_0 = arith.constant 0 : i32
    %c0_i32_1 = arith.constant 0 : i32
    return %arg0, %c0_i32, %c0_i32_0 : i32, i32, i32
  }
  func.func @transform_2(%arg0: i32) -> (i32, i32, i32, i32) {
    %c0_i32 = arith.constant 0 : i32
    %c0_i32_0 = arith.constant 0 : i32
    %c0_i32_1 = arith.constant 0 : i32
    %c0_i32_2 = arith.constant 0 : i32
    return %arg0, %c0_i32, %c0_i32_0, %c0_i32_1 : i32, i32, i32, i32
  }
  func.func @transform_3(%arg0: i32) -> (i32, i32, i32, i32) {
    %c0_i32 = arith.constant 0 : i32
    %c0_i32_0 = arith.constant 0 : i32
    %c0_i32_1 = arith.constant 0 : i32
    %c0_i32_2 = arith.constant 0 : i32
    return %arg0, %c0_i32, %c0_i32_0, %c0_i32_1 : i32, i32, i32, i32
  }
}

</mosaic_0001>

<llo_original>
// kernel: segmentation_forward.3
$region0: #{segmentation_forward.3}
  #allocation0 [shape = 'u32[]', space=smem, size = 0x4, offset = 0x4, fixed_abs, tag = 'smem constant byte address 0x4 - core index']
  #allocation1 [shape = 'u32[144,128]{1,0:T(1,128)}', space=vmem, size = 0x12000, scoped, tag = 'internal scratch']
  %s0 = inlined_call_operand.vmem [shape: f32[2,4,1024], index: 0, kind: input, shape index: {}]
  %s1 = inlined_call_operand.vmem [shape: f32[32,4], index: 1, kind: input, shape index: {}]
  %s2 = inlined_call_operand.vmem [shape: f32[32,1], index: 2, kind: input, shape index: {}]
  %s3 = inlined_call_operand.hbm [shape: f32[4,32], index: 3, kind: input, shape index: {}]
  %s4 = inlined_call_operand.vmem [shape: f32[4,1], index: 4, kind: input, shape index: {}]
  %s5 = inlined_call_operand.vmem [shape: f32[2,1,1024], index: 5, kind: output, shape index: {0}]
  %s6 = inlined_call_operand.vmem [shape: f32[2,1,1024], index: 6, kind: output, shape index: {1}]
  %7 = xla_tuple %s5, %s6
  %s8 = sld [smem:[#allocation0]]
  $region65: #{segmentation_forward.3} parent=0
    _
  %s10 = ssub.s32 1, %s8
  %s11 = scalar_select 0, %s10, %s8
  $region1: #{segmentation_forward.3} parent=0
    #allocation2 [shape = 'u8[2048]{0}', space=vmem, size = 0x800, scoped, tag = 'input window, operand 3, single buffered']
    #allocation3 [shape = 's32[2]{0}', space=sflag, size = 0x8, scoped, tag = 'scoped memory for segmentation_forward.3']
    %12 = vsyncpa [#allocation3], 0
    loop: start=0, step=1, limit=4
    $region2: #{segmentation_forward.3} parent=1 // loop_pre_header
      _
    $region3: #{segmentation_forward.3} parent=1 // loop_header
      %s14 = sphi 0, %s18
      %p15 = scmp.ge.s32.totalorder %s14, 4
      %s21 = sphi 0, %s33
      %s22 = sphi 0, %s29
      %s23 = sphi 0, %s21
      %s24 = sphi 0, %s22
      %s25 = sphi 0, %s23
      %s26 = sphi 0, %s24
      %s38 = sphi 0, %s40
      %s41 = sphi 0, %s38
      %s42 = sphi 0, %s41
      %s58 = sphi 0, %s42
      %s62 = sphi 0, %s62
      %s64 = sphi 0, %s62
      %s65 = sphi 0, %s64
      %s79 = sphi 0, %s65
      %s83 = sphi 0, %s83
      %s85 = sphi 0, %s83
      %s86 = sphi 0, %s85
      %s100 = sphi 0, %s86
      %s104 = sphi 0, %s104
      %s106 = sphi 0, %s104
      %s107 = sphi 0, %s106
      %s121 = sphi 0, %s107
      %s125 = sphi 0, %s125
      %s127 = sphi 0, %s125
      %s128 = sphi 0, %s127
      %s142 = sphi 0, %s128
      %s150 = sphi 0, %s152
      %s153 = sphi 0, %s150
      %s154 = sphi 0, %s153
      %s170 = sphi 0, %s154
      %s178 = sphi 0, %s180
      %s181 = sphi 0, %s178
      %s182 = sphi 0, %s181
      %s198 = sphi 0, %s182
    $region4: #{segmentation_forward.3} parent=1 // loop_header_branch
      %17 = sbr.rel (%p15) target = $region8
    $region5: #{segmentation_forward.3} parent=1 // loop_body
      %s19 = ssub.s32 %s14, 1
      %s20 = ssub.s32 %s14, 2
      %s27 = sadd.s32 1, %s22
      %p28 = scmp.ge.s32.totalorder %s27, 1
      %s29 = scalar_select %p28, 0, %s27
      %s30 = sadd.s32 1, %s21
      %s31 = scalar_select %p28, %s30, %s21
      %p32 = scmp.ge.s32.totalorder %s31, 2
      %s33 = scalar_select %p32, 0, %s31
      %s34 = ssub.s32 %s21, %s33
      %s35 = ssub.s32 %s22, %s29
      %s36 = sor.u32 %s34, %s35
      %p37 = scmp.eq.s32.totalorder %s36, 0
      %s39 = sadd.s32 %s38, 1
      %s40 = scalar_select %p37, %s38, %s39
      %p43 = pneg %p37
      %p44 = scmp.eq.s32.totalorder %s14, 1
      %p45 = por %p43, %p44
      %p46 = scmp.ne.s32.totalorder %s38, %s41
      %p47 = scmp.eq.s32.totalorder %s14, 0
      %p48 = por %p46, %p47
      %p49 = scmp.ne.s32.totalorder %s38, %s41
      %p50 = scmp.eq.s32.totalorder %s19, 1
      %p51 = por %p49, %p50
      %p52 = scmp.ne.s32.totalorder %s41, %s42
      %p53 = scmp.eq.s32.totalorder %s19, 0
      %p54 = por %p52, %p53
      %p55 = scmp.ne.s32.totalorder %s41, %s42
      %p56 = scmp.eq.s32.totalorder %s20, 1
      %p57 = por %p55, %p56
      %p59 = scmp.ne.s32.totalorder %s42, %s58
      %p60 = scmp.eq.s32.totalorder %s20, 0
      %p61 = por %p59, %p60
      %s63 = sadd.s32 %s62, 1
      %p66 = scmp.eq.s32.totalorder %s14, 1
      %p67 = scmp.ne.s32.totalorder %s62, %s64
      %p68 = scmp.eq.s32.totalorder %s14, 0
      %p69 = por %p67, %p68
      %p70 = scmp.ne.s32.totalorder %s62, %s64
      %p71 = scmp.eq.s32.totalorder %s19, 1
      %p72 = por %p70, %p71
      %p73 = scmp.ne.s32.totalorder %s64, %s65
      %p74 = scmp.eq.s32.totalorder %s19, 0
      %p75 = por %p73, %p74
      %p76 = scmp.ne.s32.totalorder %s64, %s65
      %p77 = scmp.eq.s32.totalorder %s20, 1
      %p78 = por %p76, %p77
      %p80 = scmp.ne.s32.totalorder %s65, %s79
      %p81 = scmp.eq.s32.totalorder %s20, 0
      %p82 = por %p80, %p81
      %s84 = sadd.s32 %s83, 1
      %p87 = scmp.eq.s32.totalorder %s14, 1
      %p88 = scmp.ne.s32.totalorder %s83, %s85
      %p89 = scmp.eq.s32.totalorder %s14, 0
      %p90 = por %p88, %p89
      %p91 = scmp.ne.s32.totalorder %s83, %s85
      %p92 = scmp.eq.s32.totalorder %s19, 1
      %p93 = por %p91, %p92
      %p94 = scmp.ne.s32.totalorder %s85, %s86
      %p95 = scmp.eq.s32.totalorder %s19, 0
      %p96 = por %p94, %p95
      %p97 = scmp.ne.s32.totalorder %s85, %s86
      %p98 = scmp.eq.s32.totalorder %s20, 1
      %p99 = por %p97, %p98
      %p101 = scmp.ne.s32.totalorder %s86, %s100
      %p102 = scmp.eq.s32.totalorder %s20, 0
      %p103 = por %p101, %p102
      %s105 = sadd.s32 %s104, 1
      %p108 = scmp.eq.s32.totalorder %s14, 1
      %p109 = scmp.ne.s32.totalorder %s104, %s106
      %p110 = scmp.eq.s32.totalorder %s14, 0
      %p111 = por %p109, %p110
      %p112 = scmp.ne.s32.totalorder %s104, %s106
      %p113 = scmp.eq.s32.totalorder %s19, 1
      %p114 = por %p112, %p113
      %p115 = scmp.ne.s32.totalorder %s106, %s107
      %p116 = scmp.eq.s32.totalorder %s19, 0
      %p117 = por %p115, %p116
      %p118 = scmp.ne.s32.totalorder %s106, %s107
      %p119 = scmp.eq.s32.totalorder %s20, 1
      %p120 = por %p118, %p119
      %p122 = scmp.ne.s32.totalorder %s107, %s121
      %p123 = scmp.eq.s32.totalorder %s20, 0
      %p124 = por %p122, %p123
      %s126 = sadd.s32 %s125, 1
      %p129 = scmp.eq.s32.totalorder %s14, 1
      %p130 = scmp.ne.s32.totalorder %s125, %s127
      %p131 = scmp.eq.s32.totalorder %s14, 0
      %p132 = por %p130, %p131
      %p133 = scmp.ne.s32.totalorder %s125, %s127
      %p134 = scmp.eq.s32.totalorder %s19, 1
      %p135 = por %p133, %p134
      %p136 = scmp.ne.s32.totalorder %s127, %s128
      %p137 = scmp.eq.s32.totalorder %s19, 0
      %p138 = por %p136, %p137
      %p139 = scmp.ne.s32.totalorder %s127, %s128
      %p140 = scmp.eq.s32.totalorder %s20, 1
      %p141 = por %p139, %p140
      %p143 = scmp.ne.s32.totalorder %s128, %s142
      %p144 = scmp.eq.s32.totalorder %s20, 0
      %p145 = por %p143, %p144
      %s146 = ssub.s32 %s21, %s33
      %s147 = ssub.s32 %s22, %s29
      %s148 = sor.u32 %s146, %s147
      %p149 = scmp.eq.s32.totalorder %s148, 0
      %s151 = sadd.s32 %s150, 1
      %s152 = scalar_select %p149, %s150, %s151
      %p155 = pneg %p149
      %p156 = scmp.eq.s32.totalorder %s14, 1
      %p157 = por %p155, %p156
      %p158 = scmp.ne.s32.totalorder %s150, %s153
      %p159 = scmp.eq.s32.totalorder %s14, 0
      %p160 = por %p158, %p159
      %p161 = scmp.ne.s32.totalorder %s150, %s153
      %p162 = scmp.eq.s32.totalorder %s19, 1
      %p163 = por %p161, %p162
      %p164 = scmp.ne.s32.totalorder %s153, %s154
      %p165 = scmp.eq.s32.totalorder %s19, 0
      %p166 = por %p164, %p165
      %p167 = scmp.ne.s32.totalorder %s153, %s154
      %p168 = scmp.eq.s32.totalorder %s20, 1
      %p169 = por %p167, %p168
      %p171 = scmp.ne.s32.totalorder %s154, %s170
      %p172 = scmp.eq.s32.totalorder %s20, 0
      %p173 = por %p171, %p172
      %s174 = ssub.s32 %s21, %s33
      %s175 = ssub.s32 %s22, %s29
      %s176 = sor.u32 %s174, %s175
      %p177 = scmp.eq.s32.totalorder %s176, 0
      %s179 = sadd.s32 %s178, 1
      %s180 = scalar_select %p177, %s178, %s179
      %p183 = pneg %p177
      %p184 = scmp.eq.s32.totalorder %s14, 1
      %p185 = por %p183, %p184
      %p186 = scmp.ne.s32.totalorder %s178, %s181
      %p187 = scmp.eq.s32.totalorder %s14, 0
      %p188 = por %p186, %p187
      %p189 = scmp.ne.s32.totalorder %s178, %s181
      %p190 = scmp.eq.s32.totalorder %s19, 1
      %p191 = por %p189, %p190
      %p192 = scmp.ne.s32.totalorder %s181, %s182
      %p193 = scmp.eq.s32.totalorder %s19, 0
      %p194 = por %p192, %p193
      %p195 = scmp.ne.s32.totalorder %s181, %s182
      %p196 = scmp.eq.s32.totalorder %s20, 1
      %p197 = por %p195, %p196
      %p199 = scmp.ne.s32.totalorder %s182, %s198
      %p200 = scmp.eq.s32.totalorder %s20, 0
      %p201 = por %p199, %p200
      %p202 = scmp.le.s32.totalorder 1, %s14
      %p203 = scmp.lt.s32.totalorder %s14, 3
      %p204 = pnand %p202, %p203
      %p205 = pneg %p204
      // Predicated region
      $region9: #{segmentation_forward.3} parent=5 // pred_check
        _
      $region10: #{segmentation_forward.3} parent=5 // pred_check_branch
        %207 = sbr.rel (%p204) target = $region12
      $region11: #{segmentation_forward.3} parent=5 // pred_region
        %s208 = ssub.s32 %s14, 1
        // Predicated region
        $region13: #{segmentation_forward.3} parent=11 // pred_check
          %p209 = pneg %p75
        $region14: #{segmentation_forward.3} parent=11 // pred_check_branch
          %211 = sbr.rel (%p209) target = $region16
        $region15: #{segmentation_forward.3} parent=11 // pred_region
          _
        $region16: #{segmentation_forward.3} parent=11 // pred_fallthru
          _
        // Predicated region
        $region17: #{segmentation_forward.3} parent=11 // pred_check
          %p212 = pneg %p96
        $region18: #{segmentation_forward.3} parent=11 // pred_check_branch
          %214 = sbr.rel (%p212) target = $region20
        $region19: #{segmentation_forward.3} parent=11 // pred_region
          _
        $region20: #{segmentation_forward.3} parent=11 // pred_fallthru
          _
        // Predicated region
        $region21: #{segmentation_forward.3} parent=11 // pred_check
          %p215 = pneg %p117
        $region22: #{segmentation_forward.3} parent=11 // pred_check_branch
          %217 = sbr.rel (%p215) target = $region24
        $region23: #{segmentation_forward.3} parent=11 // pred_region
          %s219 = ssub.s32 64, 64
          %220 = vsyncadd [#allocation3], %s219
          %s222 = sshll.u32 [#allocation2], 4
          %s223 = int_to_ptr.vmem [resolvable:$true] %s222
          %225 = dma.hbm_to_vmem [thread:$0]  %s3, 64, %s223, [#allocation3]
        $region24: #{segmentation_forward.3} parent=11 // pred_fallthru
          _
        // Predicated region
        $region25: #{segmentation_forward.3} parent=11 // pred_check
          %p226 = pneg %p138
        $region26: #{segmentation_forward.3} parent=11 // pred_check_branch
          %228 = sbr.rel (%p226) target = $region28
        $region27: #{segmentation_forward.3} parent=11 // pred_region
          _
        $region28: #{segmentation_forward.3} parent=11 // pred_fallthru
          _
      $region12: #{segmentation_forward.3} parent=5 // pred_fallthru
        _
      %p229 = scmp.lt.s32.totalorder %s14, 2
      // Predicated region
      $region29: #{segmentation_forward.3} parent=5 // pred_check
        %p230 = pneg %p229
      $region30: #{segmentation_forward.3} parent=5 // pred_check_branch
        %232 = sbr.rel (%p230) target = $region32
      $region31: #{segmentation_forward.3} parent=5 // pred_region
        // Predicated region
        $region33: #{segmentation_forward.3} parent=31 // pred_check
          %p233 = pneg %p48
        $region34: #{segmentation_forward.3} parent=31 // pred_check_branch
          %235 = sbr.rel (%p233) target = $region36
        $region35: #{segmentation_forward.3} parent=31 // pred_region
          %s236 = smul.u32 8, %s22
          %p237 = scmp.lt.s32.totalorder %s21, 1
          %s238 = scalar_select %p237, %s21, 1
          %p239 = scmp.lt.s32.totalorder %s236, 7
          %s240 = scalar_select %p239, %s236, 7
          %s241 = smul.addr %s238, 8
          %s242 = sadd.s32 %s240, %s241
          %s243 = smul.addr %s242, 4
          %s244 = scalar_lea.vmem %s0, %s243
          %s245 = smul.u32 8, %s22
        $region36: #{segmentation_forward.3} parent=31 // pred_fallthru
          _
      $region32: #{segmentation_forward.3} parent=5 // pred_fallthru
        _
      %p246 = scmp.le.s32.totalorder 1, %s14
      %p247 = scmp.lt.s32.totalorder %s14, 3
      %p248 = pnand %p246, %p247
      %p249 = pneg %p248
      // Predicated region
      $region37: #{segmentation_forward.3} parent=5 // pred_check
        _
      $region38: #{segmentation_forward.3} parent=5 // pred_check_branch
        %251 = sbr.rel (%p248) target = $region40
      $region39: #{segmentation_forward.3} parent=5 // pred_region
        %s252 = ssub.s32 %s14, 1
        // Predicated region
        $region41: #{segmentation_forward.3} parent=39 // pred_check
          %p253 = pneg %p117
        $region42: #{segmentation_forward.3} parent=39 // pred_check_branch
          %255 = sbr.rel (%p253) target = $region44
        $region43: #{segmentation_forward.3} parent=39 // pred_region
          %256 = dma.done [#allocation3], 64
        $region44: #{segmentation_forward.3} parent=39 // pred_fallthru
          _
        %s257 = smul.u32 8, %s24
        %p258 = scmp.lt.s32.totalorder %s23, 1
        %s259 = scalar_select %p258, %s23, 1
        %p260 = scmp.lt.s32.totalorder %s257, 7
        %s261 = scalar_select %p260, %s257, 7
        %s262 = smul.addr %s259, 8
        %s263 = sadd.s32 %s261, %s262
        %s264 = smul.addr %s263, 4
        %s265 = scalar_lea.vmem %s0, %s264
        %p266 = pneg %p54
        %p267 = pneg %p51
        %p268 = pneg %p75
        %p269 = pneg %p72
        %p270 = pneg %p96
        %p271 = pneg %p93
        %p272 = pneg %p117
        %p273 = pneg %p114
        %p274 = pneg %p138
        %p275 = pneg %p135
        %p276 = pneg %p166
        %p277 = pneg %p163
        %s278 = smul.u32 8, %s24
        %p279 = scmp.lt.s32.totalorder %s23, 1
        %s280 = scalar_select %p279, %s23, 1
        %p281 = scmp.lt.s32.totalorder %s278, 7
        %s282 = scalar_select %p281, %s278, 7
        %s283 = smul.addr %s280, 8
        %s284 = sadd.s32 %s282, %s283
        %s285 = scalar_lea.vmem %s5, %s284
        %p286 = pneg %p194
        %p287 = pneg %p191
        %s288 = smul.u32 8, %s24
        %p289 = scmp.lt.s32.totalorder %s23, 1
        %s290 = scalar_select %p289, %s23, 1
        %p291 = scmp.lt.s32.totalorder %s288, 7
        %s292 = scalar_select %p291, %s288, 7
        %s293 = smul.addr %s290, 8
        %s294 = sadd.s32 %s292, %s293
        %s295 = scalar_lea.vmem %s6, %s294
        %s296 = smul.u32 8, %s24
        %p297 = scmp.lt.s32.totalorder %s23, 1
        %s298 = scalar_select %p297, %s23, 1
        %p299 = scmp.lt.s32.totalorder %s296, 7
        %s300 = scalar_select %p299, %s296, 7
        %s301 = smul.addr %s298, 8
        %s302 = sadd.s32 %s300, %s301
        %s303 = smul.addr %s302, 4
        %s304 = scalar_lea.vmem %s0, %s303
        %s305 = smul.u32 8, %s24
        %s306 = smul.u32 8, %s24
        %p307 = scmp.lt.s32.totalorder %s23, 1
        %s308 = scalar_select %p307, %s23, 1
        %p309 = scmp.lt.s32.totalorder %s306, 7
        %s310 = scalar_select %p309, %s306, 7
        %s311 = smul.addr %s308, 8
        %s312 = sadd.s32 %s310, %s311
        %s313 = scalar_lea.vmem %s5, %s312
        %s314 = smul.u32 8, %s24
        %s315 = smul.u32 8, %s24
        %p316 = scmp.lt.s32.totalorder %s23, 1
        %s317 = scalar_select %p316, %s23, 1
        %p318 = scmp.lt.s32.totalorder %s315, 7
        %s319 = scalar_select %p318, %s315, 7
        %s320 = smul.addr %s317, 8
        %s321 = sadd.s32 %s319, %s320
        %s322 = scalar_lea.vmem %s6, %s321
        %s323 = smul.u32 8, %s24
        %v324 = vld [vmem:[%s304] sm:$0xff]
        %v325 = vld [vmem:[%s304 + $0x8] sm:$0xff]
        %v326 = vld [vmem:[%s304 + $0x10] sm:$0xff]
        %v327 = vld [vmem:[%s304 + $0x18] sm:$0xff]
        %v332 = vcombine.high %v324, %v324
        %v333 = vcombine.high %v325, %v325
        %v334 = vcombine.high %v326, %v326
        %v335 = vcombine.high %v327, %v327
        %vm340 = vcmask 1043456
        %v341 = vsel %vm340, %v324, 0.0
        %v342 = vrot.slane %v341, 4
        %v343 = vadd.f32 %v341, %v342
        %v344 = vrot.slane %v343, 2
        %v345 = vadd.f32 %v343, %v344
        %v346 = vrot.slane %v345, 1
        %v347 = vadd.f32 %v345, %v346
        %v348 = vsel %vm340, %v332, 0.0
        %v349 = vrot.slane %v348, 4
        %v350 = vadd.f32 %v348, %v349
        %v351 = vrot.slane %v350, 2
        %v352 = vadd.f32 %v350, %v351
        %v353 = vrot.slane %v352, 1
        %v354 = vadd.f32 %v352, %v353
        %v355 = vsel %vm340, %v325, 0.0
        %v356 = vrot.slane %v355, 4
        %v357 = vadd.f32 %v355, %v356
        %v358 = vrot.slane %v357, 2
        %v359 = vadd.f32 %v357, %v358
        %v360 = vrot.slane %v359, 1
        %v361 = vadd.f32 %v359, %v360
        %v362 = vsel %vm340, %v333, 0.0
        %v363 = vrot.slane %v362, 4
        %v364 = vadd.f32 %v362, %v363
        %v365 = vrot.slane %v364, 2
        %v366 = vadd.f32 %v364, %v365
        %v367 = vrot.slane %v366, 1
        %v368 = vadd.f32 %v366, %v367
        %v369 = vsel %vm340, %v326, 0.0
        %v370 = vrot.slane %v369, 4
        %v371 = vadd.f32 %v369, %v370
        %v372 = vrot.slane %v371, 2
        %v373 = vadd.f32 %v371, %v372
        %v374 = vrot.slane %v373, 1
        %v375 = vadd.f32 %v373, %v374
        %v376 = vsel %vm340, %v334, 0.0
        %v377 = vrot.slane %v376, 4
        %v378 = vadd.f32 %v376, %v377
        %v379 = vrot.slane %v378, 2
        %v380 = vadd.f32 %v378, %v379
        %v381 = vrot.slane %v380, 1
        %v382 = vadd.f32 %v380, %v381
        %v383 = vsel %vm340, %v327, 0.0
        %v384 = vrot.slane %v383, 4
        %v385 = vadd.f32 %v383, %v384
        %v386 = vrot.slane %v385, 2
        %v387 = vadd.f32 %v385, %v386
        %v388 = vrot.slane %v387, 1
        %v389 = vadd.f32 %v387, %v388
        %v390 = vsel %vm340, %v335, 0.0
        %v391 = vrot.slane %v390, 4
        %v392 = vadd.f32 %v390, %v391
        %v393 = vrot.slane %v392, 2
        %v394 = vadd.f32 %v392, %v393
        %v395 = vrot.slane %v394, 1
        %v396 = vadd.f32 %v394, %v395
        %v397 = vrcp.pop 4.0
        %v398 = vmul.f32 %v347, %v397
        %v399 = vmul.f32 %v354, %v397
        %v400 = vmul.f32 %v361, %v397
        %v401 = vmul.f32 %v368, %v397
        %v402 = vmul.f32 %v375, %v397
        %v403 = vmul.f32 %v382, %v397
        %v404 = vmul.f32 %v389, %v397
        %v405 = vmul.f32 %v396, %v397
        %v414 = vcombine.low %v398, %v399
        %v415 = vcombine.low %v400, %v401
        %v416 = vcombine.low %v402, %v403
        %v417 = vcombine.low %v404, %v405
        %v419 = vunpack.c.l.s4 1966171168
        %v420 = vunpack.c.0.s8 %v419
        %v421 = vlaneseq
        %v422 = vshrl.u32 %v421, 7
        %v423 = vsub.s32 %v420, %v422
        %v424 = vrot.slane %v414, %v423
        %v426 = vunpack.c.l.s4 1966171168
        %v427 = vunpack.c.0.s8 %v426
        %v428 = vlaneseq
        %v429 = vshrl.u32 %v428, 7
        %v430 = vsub.s32 %v427, %v429
        %v431 = vrot.slane %v415, %v430
        %v433 = vunpack.c.l.s4 1966171168
        %v434 = vunpack.c.0.s8 %v433
        %v435 = vlaneseq
        %v436 = vshrl.u32 %v435, 7
        %v437 = vsub.s32 %v434, %v436
        %v438 = vrot.slane %v416, %v437
        %v440 = vunpack.c.l.s4 1966171168
        %v441 = vunpack.c.0.s8 %v440
        %v442 = vlaneseq
        %v443 = vshrl.u32 %v442, 7
        %v444 = vsub.s32 %v441, %v443
        %v445 = vrot.slane %v417, %v444
        %v446 = vcombine.low %v424, %v431
        %v447 = vcombine.low %v438, %v445
        %v449 = vunpack.c.l.s4 1966171168
        %v450 = vunpack.c.0.s8 %v449
        %v451 = vlaneseq
        %v452 = vshrl.u32 %v451, 7
        %v453 = vsub.s32 %v450, %v452
        %v454 = vrot.slane %v446, %v453
        %v456 = vunpack.c.l.s4 1966171168
        %v457 = vunpack.c.0.s8 %v456
        %v458 = vlaneseq
        %v459 = vshrl.u32 %v458, 7
        %v460 = vsub.s32 %v457, %v459
        %v461 = vrot.slane %v447, %v460
        %v462 = vcombine.low %v454, %v461
        %464 = vst [vmem:[%s313] sm:$0xff] %v462
        %v465 = vld [vmem:[%s1] sm:$0xff]
        %v466 = vld [vmem:[%s1 + $0x8] sm:$0xff]
        %v467 = vld [vmem:[%s1 + $0x10] sm:$0xff]
        %v468 = vld [vmem:[%s1 + $0x18] sm:$0xff]
        %v469 = vld [vmem:[%s2] sm:$0xff]
        %v470 = vld [vmem:[%s2 + $0x8] sm:$0xff]
        %v471 = vld [vmem:[%s2 + $0x10] sm:$0xff]
        %v472 = vld [vmem:[%s2 + $0x18] sm:$0xff]
        %474 = vset.pattern.permute.xlu0 0
        %475 = vperm.xlu0 %474, %v469
        %v476 = vpop.permute.xlu0 %475
        %479 = vset.pattern.permute.xlu0 0
        %480 = vperm.xlu0 %479, %v470
        %v481 = vpop.permute.xlu0 %480
        %484 = vset.pattern.permute.xlu0 0
        %485 = vperm.xlu0 %484, %v471
        %v486 = vpop.permute.xlu0 %485
        %489 = vset.pattern.permute.xlu0 0
        %490 = vperm.xlu0 %489, %v472
        %v491 = vpop.permute.xlu0 %490
        %vm493 = vcmask 31744
        %v495 = vsel %vm493, %v465, 0
        %v498 = vsel %vm493, %v466, 0
        %v501 = vsel %vm493, %v467, 0
        %v504 = vsel %vm493, %v468, 0
        %v506 = vsel %vm340, %v324, 0
        %v508 = vsel %vm340, %v332, 0
        %v510 = vsel %vm340, %v325, 0
        %v512 = vsel %vm340, %v333, 0
        %v514 = vsel %vm340, %v326, 0
        %v516 = vsel %vm340, %v334, 0
        %v518 = vsel %vm340, %v327, 0
        %v520 = vsel %vm340, %v335, 0
        %522 = vmatprep.subr.mxu0 %v508
        %523 = vmatpush1.msra.mxu0 %v506
        %524 = vmatprep.subr.mxu0 0.0
        %525 = vmatpush1.msra.mxu0 0.0
        %526 = vmatprep.subr.mxu0 0.0
        %527 = vmatpush1.msra.mxu0 0.0
        %528 = vmatprep.subr.mxu0 0.0
        %529 = vmatpush1.msra.mxu0 0.0
        %530 = vmatprep.subr.mxu0 0.0
        %531 = vmatpush1.msra.mxu0 0.0
        %532 = vmatprep.subr.mxu0 0.0
        %533 = vmatpush1.msra.mxu0 0.0
        %534 = vmatprep.subr.mxu0 0.0
        %535 = vmatpush1.msra.mxu0 0.0
        %536 = vmatprep.subr.mxu0 0.0
        %537 = vmatpush1.msra.mxu0 0.0
        %538 = vmatprep.subr.mxu0 0.0
        %539 = vmatpush1.msra.mxu0 0.0
        %540 = vmatprep.subr.mxu0 0.0
        %541 = vmatpush1.msra.mxu0 0.0
        %542 = vmatprep.subr.mxu0 0.0
        %543 = vmatpush1.msra.mxu0 0.0
        %544 = vmatprep.subr.mxu0 0.0
        %545 = vmatpush1.msra.mxu0 0.0
        %546 = vmatprep.subr.mxu0 0.0
        %547 = vmatpush1.msra.mxu0 0.0
        %548 = vmatprep.subr.mxu0 0.0
        %549 = vmatpush1.msra.mxu0 0.0
        %550 = vmatprep.subr.mxu0 0.0
        %551 = vmatpush1.msra.mxu0 0.0
        %552 = vmatprep.subr.mxu0 0.0
        %553 = vmatpush1.msra.mxu0 0.0
        %554 = vmatprep.subr.mxu0 0.0
        %555 = vmatpush1.msra.mxu0 0.0
        %556 = vmatprep.subr.mxu0 0.0
        %557 = vmatpush1.msra.mxu0 0.0
        %558 = vmatprep.subr.mxu0 0.0
        %559 = vmatpush1.msra.mxu0 0.0
        %560 = vmatprep.subr.mxu0 0.0
        %561 = vmatpush1.msra.mxu0 0.0
        %562 = vmatprep.subr.mxu0 0.0
        %563 = vmatpush1.msra.mxu0 0.0
        %564 = vmatprep.subr.mxu0 0.0
        %565 = vmatpush1.msra.mxu0 0.0
        %566 = vmatprep.subr.mxu0 0.0
        %567 = vmatpush1.msra.mxu0 0.0
        %568 = vmatprep.subr.mxu0 0.0
        %569 = vmatpush1.msra.mxu0 0.0
        %570 = vmatprep.subr.mxu0 0.0
        %571 = vmatpush1.msra.mxu0 0.0
        %572 = vmatprep.subr.mxu0 0.0
        %573 = vmatpush1.msra.mxu0 0.0
        %574 = vmatprep.subr.mxu0 0.0
        %575 = vmatpush1.msra.mxu0 0.0
        %576 = vmatprep.subr.mxu0 0.0
        %577 = vmatpush1.msra.mxu0 0.0
        %578 = vmatprep.subr.mxu0 0.0
        %579 = vmatpush1.msra.mxu0 0.0
        %580 = vmatprep.subr.mxu0 0.0
        %581 = vmatpush1.msra.mxu0 0.0
        %582 = vmatprep.subr.mxu0 0.0
        %583 = vmatpush1.msra.mxu0 0.0
        %584 = vmatprep.subr.mxu0 0.0
        %585 = vmatpush1.msra.mxu0 0.0
        %586 = vmatprep.mubr.f32.mxu0 0.0
        %587 = vmatmul.mubr.f32.gmra.mrb[0].mxu0 %v495
        %v588 = vpop.f32.mrb[0].mxu0
        %v589 = vadd.f32 %v476, %v588
        %v590 = vpop.f32.mrb[0].mxu0
        %v591 = vadd.f32 %v476, %v590
        %592 = vmatprep.mubr.f32.mxu0 0.0
        %593 = vmatmul.mubr.f32.gmra.mrb[0].mxu0 %v498
        %v594 = vpop.f32.mrb[0].mxu0
        %v595 = vadd.f32 %v481, %v594
        %v596 = vpop.f32.mrb[0].mxu0
        %v597 = vadd.f32 %v481, %v596
        %598 = vmatprep.mubr.f32.mxu0 0.0
        %599 = vmatmul.mubr.f32.gmra.mrb[0].mxu0 %v501
        %v600 = vpop.f32.mrb[0].mxu0
        %v601 = vadd.f32 %v486, %v600
        %v602 = vpop.f32.mrb[0].mxu0
        %v603 = vadd.f32 %v486, %v602
        %604 = vmatprep.mubr.f32.mxu0 0.0
        %605 = vmatmul.mubr.f32.gmra.mrb[0].mxu0 %v504
        %v606 = vpop.f32.mrb[0].mxu0
        %v607 = vadd.f32 %v491, %v606
        %v608 = vpop.f32.mrb[0].mxu0
        %v609 = vadd.f32 %v491, %v608
        %610 = vdwg.mxu0
        %611 = vmatprep.subr.mxu0 %v512
        %612 = vmatpush1.msra.mxu0 %v510
        %613 = vmatprep.subr.mxu0 0.0
        %614 = vmatpush1.msra.mxu0 0.0
        %615 = vmatprep.subr.mxu0 0.0
        %616 = vmatpush1.msra.mxu0 0.0
        %617 = vmatprep.subr.mxu0 0.0
        %618 = vmatpush1.msra.mxu0 0.0
        %619 = vmatprep.subr.mxu0 0.0
        %620 = vmatpush1.msra.mxu0 0.0
        %621 = vmatprep.subr.mxu0 0.0
        %622 = vmatpush1.msra.mxu0 0.0
        %623 = vmatprep.subr.mxu0 0.0
        %624 = vmatpush1.msra.mxu0 0.0
        %625 = vmatprep.subr.mxu0 0.0
        %626 = vmatpush1.msra.mxu0 0.0
        %627 = vmatprep.subr.mxu0 0.0
        %628 = vmatpush1.msra.mxu0 0.0
        %629 = vmatprep.subr.mxu0 0.0
        %630 = vmatpush1.msra.mxu0 0.0
        %631 = vmatprep.subr.mxu0 0.0
        %632 = vmatpush1.msra.mxu0 0.0
        %633 = vmatprep.subr.mxu0 0.0
        %634 = vmatpush1.msra.mxu0 0.0
        %635 = vmatprep.subr.mxu0 0.0
        %636 = vmatpush1.msra.mxu0 0.0
        %637 = vmatprep.subr.mxu0 0.0
        %638 = vmatpush1.msra.mxu0 0.0
        %639 = vmatprep.subr.mxu0 0.0
        %640 = vmatpush1.msra.mxu0 0.0
        %641 = vmatprep.subr.mxu0 0.0
        %642 = vmatpush1.msra.mxu0 0.0
        %643 = vmatprep.subr.mxu0 0.0
        %644 = vmatpush1.msra.mxu0 0.0
        %645 = vmatprep.subr.mxu0 0.0
        %646 = vmatpush1.msra.mxu0 0.0
        %647 = vmatprep.subr.mxu0 0.0
        %648 = vmatpush1.msra.mxu0 0.0
        %649 = vmatprep.subr.mxu0 0.0
        %650 = vmatpush1.msra.mxu0 0.0
        %651 = vmatprep.subr.mxu0 0.0
        %652 = vmatpush1.msra.mxu0 0.0
        %653 = vmatprep.subr.mxu0 0.0
        %654 = vmatpush1.msra.mxu0 0.0
        %655 = vmatprep.subr.mxu0 0.0
        %656 = vmatpush1.msra.mxu0 0.0
        %657 = vmatprep.subr.mxu0 0.0
        %658 = vmatpush1.msra.mxu0 0.0
        %659 = vmatprep.subr.mxu0 0.0
        %660 = vmatpush1.msra.mxu0 0.0
        %661 = vmatprep.subr.mxu0 0.0
        %662 = vmatpush1.msra.mxu0 0.0
        %663 = vmatprep.subr.mxu0 0.0
        %664 = vmatpush1.msra.mxu0 0.0
        %665 = vmatprep.subr.mxu0 0.0
        %666 = vmatpush1.msra.mxu0 0.0
        %667 = vmatprep.subr.mxu0 0.0
        %668 = vmatpush1.msra.mxu0 0.0
        %669 = vmatprep.subr.mxu0 0.0
        %670 = vmatpush1.msra.mxu0 0.0
        %671 = vmatprep.subr.mxu0 0.0
        %672 = vmatpush1.msra.mxu0 0.0
        %673 = vmatprep.subr.mxu0 0.0
        %674 = vmatpush1.msra.mxu0 0.0
        %675 = vmatprep.mubr.f32.mxu0 0.0
        %676 = vmatmul.mubr.f32.gmra.mrb[0].mxu0 %v495
        %v677 = vpop.f32.mrb[0].mxu0
        %v678 = vadd.f32 %v476, %v677
        %v679 = vpop.f32.mrb[0].mxu0
        %v680 = vadd.f32 %v476, %v679
        %681 = vmatprep.mubr.f32.mxu0 0.0
        %682 = vmatmul.mubr.f32.gmra.mrb[0].mxu0 %v498
        %v683 = vpop.f32.mrb[0].mxu0
        %v684 = vadd.f32 %v481, %v683
        %v685 = vpop.f32.mrb[0].mxu0
        %v686 = vadd.f32 %v481, %v685
        %687 = vmatprep.mubr.f32.mxu0 0.0
        %688 = vmatmul.mubr.f32.gmra.mrb[0].mxu0 %v501
        %v689 = vpop.f32.mrb[0].mxu0
        %v690 = vadd.f32 %v486, %v689
        %v691 = vpop.f32.mrb[0].mxu0
        %v692 = vadd.f32 %v486, %v691
        %693 = vmatprep.mubr.f32.mxu0 0.0
        %694 = vmatmul.mubr.f32.gmra.mrb[0].mxu0 %v504
        %v695 = vpop.f32.mrb[0].mxu0
        %v696 = vadd.f32 %v491, %v695
        %v697 = vpop.f32.mrb[0].mxu0
        %v698 = vadd.f32 %v491, %v697
        %699 = vdwg.mxu0
        %700 = vmatprep.subr.mxu0 %v516
        %701 = vmatpush1.msra.mxu0 %v514
        %702 = vmatprep.subr.mxu0 0.0
        %703 = vmatpush1.msra.mxu0 0.0
        %704 = vmatprep.subr.mxu0 0.0
        %705 = vmatpush1.msra.mxu0 0.0
        %706 = vmatprep.subr.mxu0 0.0
        %707 = vmatpush1.msra.mxu0 0.0
        %708 = vmatprep.subr.mxu0 0.0
        %709 = vmatpush1.msra.mxu0 0.0
        %710 = vmatprep.subr.mxu0 0.0
        %711 = vmatpush1.msra.mxu0 0.0
        %712 = vmatprep.subr.mxu0 0.0
        %713 = vmatpush1.msra.mxu0 0.0
        %714 = vmatprep.subr.mxu0 0.0
        %715 = vmatpush1.msra.mxu0 0.0
        %716 = vmatprep.subr.mxu0 0.0
        %717 = vmatpush1.msra.mxu0 0.0
        %718 = vmatprep.subr.mxu0 0.0
        %719 = vmatpush1.msra.mxu0 0.0
        %720 = vmatprep.subr.mxu0 0.0
        %721 = vmatpush1.msra.mxu0 0.0
        %722 = vmatprep.subr.mxu0 0.0
        %723 = vmatpush1.msra.mxu0 0.0
        %724 = vmatprep.subr.mxu0 0.0
        %725 = vmatpush1.msra.mxu0 0.0
        %726 = vmatprep.subr.mxu0 0.0
        %727 = vmatpush1.msra.mxu0 0.0
        %728 = vmatprep.subr.mxu0 0.0
        %729 = vmatpush1.msra.mxu0 0.0
        %730 = vmatprep.subr.mxu0 0.0
        %731 = vmatpush1.msra.mxu0 0.0
        %732 = vmatprep.subr.mxu0 0.0
        %733 = vmatpush1.msra.mxu0 0.0
        %734 = vmatprep.subr.mxu0 0.0
        %735 = vmatpush1.msra.mxu0 0.0
        %736 = vmatprep.subr.mxu0 0.0
        %737 = vmatpush1.msra.mxu0 0.0
        %738 = vmatprep.subr.mxu0 0.0
        %739 = vmatpush1.msra.mxu0 0.0
        %740 = vmatprep.subr.mxu0 0.0
        %741 = vmatpush1.msra.mxu0 0.0
        %742 = vmatprep.subr.mxu0 0.0
        %743 = vmatpush1.msra.mxu0 0.0
        %744 = vmatprep.subr.mxu0 0.0
        %745 = vmatpush1.msra.mxu0 0.0
        %746 = vmatprep.subr.mxu0 0.0
        %747 = vmatpush1.msra.mxu0 0.0
        %748 = vmatprep.subr.mxu0 0.0
        %749 = vmatpush1.msra.mxu0 0.0
        %750 = vmatprep.subr.mxu0 0.0
        %751 = vmatpush1.msra.mxu0 0.0
        %752 = vmatprep.subr.mxu0 0.0
        %753 = vmatpush1.msra.mxu0 0.0
        %754 = vmatprep.subr.mxu0 0.0
        %755 = vmatpush1.msra.mxu0 0.0
        %756 = vmatprep.subr.mxu0 0.0
        %757 = vmatpush1.msra.mxu0 0.0
        %758 = vmatprep.subr.mxu0 0.0
        %759 = vmatpush1.msra.mxu0 0.0
        %760 = vmatprep.subr.mxu0 0.0
        %761 = vmatpush1.msra.mxu0 0.0
        %762 = vmatprep.subr.mxu0 0.0
        %763 = vmatpush1.msra.mxu0 0.0
        %764 = vmatprep.mubr.f32.mxu0 0.0
        %765 = vmatmul.mubr.f32.gmra.mrb[0].mxu0 %v495
        %v766 = vpop.f32.mrb[0].mxu0
        %v767 = vadd.f32 %v476, %v766
        %v768 = vpop.f32.mrb[0].mxu0
        %v769 = vadd.f32 %v476, %v768
        %770 = vmatprep.mubr.f32.mxu0 0.0
        %771 = vmatmul.mubr.f32.gmra.mrb[0].mxu0 %v498
        %v772 = vpop.f32.mrb[0].mxu0
        %v773 = vadd.f32 %v481, %v772
        %v774 = vpop.f32.mrb[0].mxu0
        %v775 = vadd.f32 %v481, %v774
        %776 = vmatprep.mubr.f32.mxu0 0.0
        %777 = vmatmul.mubr.f32.gmra.mrb[0].mxu0 %v501
        %v778 = vpop.f32.mrb[0].mxu0
        %v779 = vadd.f32 %v486, %v778
        %v780 = vpop.f32.mrb[0].mxu0
        %v781 = vadd.f32 %v486, %v780
        %782 = vmatprep.mubr.f32.mxu0 0.0
        %783 = vmatmul.mubr.f32.gmra.mrb[0].mxu0 %v504
        %v784 = vpop.f32.mrb[0].mxu0
        %v785 = vadd.f32 %v491, %v784
        %v786 = vpop.f32.mrb[0].mxu0
        %v787 = vadd.f32 %v491, %v786
        %788 = vdwg.mxu0
        %789 = vmatprep.subr.mxu0 %v520
        %790 = vmatpush1.msra.mxu0 %v518
        %791 = vmatprep.subr.mxu0 0.0
        %792 = vmatpush1.msra.mxu0 0.0
        %793 = vmatprep.subr.mxu0 0.0
        %794 = vmatpush1.msra.mxu0 0.0
        %795 = vmatprep.subr.mxu0 0.0
        %796 = vmatpush1.msra.mxu0 0.0
        %797 = vmatprep.subr.mxu0 0.0
        %798 = vmatpush1.msra.mxu0 0.0
        %799 = vmatprep.subr.mxu0 0.0
        %800 = vmatpush1.msra.mxu0 0.0
        %801 = vmatprep.subr.mxu0 0.0
        %802 = vmatpush1.msra.mxu0 0.0
        %803 = vmatprep.subr.mxu0 0.0
        %804 = vmatpush1.msra.mxu0 0.0
        %805 = vmatprep.subr.mxu0 0.0
        %806 = vmatpush1.msra.mxu0 0.0
        %807 = vmatprep.subr.mxu0 0.0
        %808 = vmatpush1.msra.mxu0 0.0
        %809 = vmatprep.subr.mxu0 0.0
        %810 = vmatpush1.msra.mxu0 0.0
        %811 = vmatprep.subr.mxu0 0.0
        %812 = vmatpush1.msra.mxu0 0.0
        %813 = vmatprep.subr.mxu0 0.0
        %814 = vmatpush1.msra.mxu0 0.0
        %815 = vmatprep.subr.mxu0 0.0
        %816 = vmatpush1.msra.mxu0 0.0
        %817 = vmatprep.subr.mxu0 0.0
        %818 = vmatpush1.msra.mxu0 0.0
        %819 = vmatprep.subr.mxu0 0.0
        %820 = vmatpush1.msra.mxu0 0.0
        %821 = vmatprep.subr.mxu0 0.0
        %822 = vmatpush1.msra.mxu0 0.0
        %823 = vmatprep.subr.mxu0 0.0
        %824 = vmatpush1.msra.mxu0 0.0
        %825 = vmatprep.subr.mxu0 0.0
        %826 = vmatpush1.msra.mxu0 0.0
        %827 = vmatprep.subr.mxu0 0.0
        %828 = vmatpush1.msra.mxu0 0.0
        %829 = vmatprep.subr.mxu0 0.0
        %830 = vmatpush1.msra.mxu0 0.0
        %831 = vmatprep.subr.mxu0 0.0
        %832 = vmatpush1.msra.mxu0 0.0
        %833 = vmatprep.subr.mxu0 0.0
        %834 = vmatpush1.msra.mxu0 0.0
        %835 = vmatprep.subr.mxu0 0.0
        %836 = vmatpush1.msra.mxu0 0.0
        %837 = vmatprep.subr.mxu0 0.0
        %838 = vmatpush1.msra.mxu0 0.0
        %839 = vmatprep.subr.mxu0 0.0
        %840 = vmatpush1.msra.mxu0 0.0
        %841 = vmatprep.subr.mxu0 0.0
        %842 = vmatpush1.msra.mxu0 0.0
        %843 = vmatprep.subr.mxu0 0.0
        %844 = vmatpush1.msra.mxu0 0.0
        %845 = vmatprep.subr.mxu0 0.0
        %846 = vmatpush1.msra.mxu0 0.0
        %847 = vmatprep.subr.mxu0 0.0
        %848 = vmatpush1.msra.mxu0 0.0
        %849 = vmatprep.subr.mxu0 0.0
        %850 = vmatpush1.msra.mxu0 0.0
        %851 = vmatprep.subr.mxu0 0.0
        %852 = vmatpush1.msra.mxu0 0.0
        %853 = vmatprep.mubr.f32.mxu0 0.0
        %854 = vmatmul.mubr.f32.gmra.mrb[0].mxu0 %v495
        %v855 = vpop.f32.mrb[0].mxu0
        %v856 = vadd.f32 %v476, %v855
        %v857 = vpop.f32.mrb[0].mxu0
        %v858 = vadd.f32 %v476, %v857
        %859 = vmatprep.mubr.f32.mxu0 0.0
        %860 = vmatmul.mubr.f32.gmra.mrb[0].mxu0 %v498
        %v861 = vpop.f32.mrb[0].mxu0
        %v862 = vadd.f32 %v481, %v861
        %v863 = vpop.f32.mrb[0].mxu0
        %v864 = vadd.f32 %v481, %v863
        %865 = vmatprep.mubr.f32.mxu0 0.0
        %866 = vmatmul.mubr.f32.gmra.mrb[0].mxu0 %v501
        %v867 = vpop.f32.mrb[0].mxu0
        %v868 = vadd.f32 %v486, %v867
        %v869 = vpop.f32.mrb[0].mxu0
        %v870 = vadd.f32 %v486, %v869
        %871 = vmatprep.mubr.f32.mxu0 0.0
        %872 = vmatmul.mubr.f32.gmra.mrb[0].mxu0 %v504
        %v873 = vpop.f32.mrb[0].mxu0
        %v874 = vadd.f32 %v491, %v873
        %v875 = vpop.f32.mrb[0].mxu0
        %v876 = vadd.f32 %v491, %v875
        %877 = vdwg.mxu0
        %v878 = vmax.f32 %v589, 0.0
        %v879 = vmax.f32 %v591, 0.0
        %v880 = vmax.f32 %v678, 0.0
        %v881 = vmax.f32 %v680, 0.0
        %v882 = vmax.f32 %v767, 0.0
        %v883 = vmax.f32 %v769, 0.0
        %v884 = vmax.f32 %v856, 0.0
        %v885 = vmax.f32 %v858, 0.0
        %v886 = vmax.f32 %v595, 0.0
        %v887 = vmax.f32 %v597, 0.0
        %v888 = vmax.f32 %v684, 0.0
        %v889 = vmax.f32 %v686, 0.0
        %v890 = vmax.f32 %v773, 0.0
        %v891 = vmax.f32 %v775, 0.0
        %v892 = vmax.f32 %v862, 0.0
        %v893 = vmax.f32 %v864, 0.0
        %v894 = vmax.f32 %v601, 0.0
        %v895 = vmax.f32 %v603, 0.0
        %v896 = vmax.f32 %v690, 0.0
        %v897 = vmax.f32 %v692, 0.0
        %v898 = vmax.f32 %v779, 0.0
        %v899 = vmax.f32 %v781, 0.0
        %v900 = vmax.f32 %v868, 0.0
        %v901 = vmax.f32 %v870, 0.0
        %v902 = vmax.f32 %v607, 0.0
        %v903 = vmax.f32 %v609, 0.0
        %v904 = vmax.f32 %v696, 0.0
        %v905 = vmax.f32 %v698, 0.0
        %v906 = vmax.f32 %v785, 0.0
        %v907 = vmax.f32 %v787, 0.0
        %v908 = vmax.f32 %v874, 0.0
        %v909 = vmax.f32 %v876, 0.0
        %v910 = vld [vmem:[#allocation2] sm:$0xf]
        %v911 = vld [vmem:[%s4] sm:$0xf]
        %913 = vset.pattern.permute.xlu0 0
        %914 = vperm.xlu0 %913, %v911
        %v915 = vpop.permute.xlu0 %914
        %vm917 = vcmask 261120
        %v919 = vsel %vm917, %v910, 0
        %921 = vmatprep.subr.mxu0 %v879
        %922 = vmatpush1.msra.mxu0 %v878
        %923 = vmatprep.subr.mxu0 %v887
        %924 = vmatpush1.msra.mxu0 %v886
        %925 = vmatprep.subr.mxu0 %v895
        %926 = vmatpush1.msra.mxu0 %v894
        %927 = vmatprep.subr.mxu0 %v903
        %928 = vmatpush1.msra.mxu0 %v902
        %929 = vmatprep.subr.mxu0 0.0
        %930 = vmatpush1.msra.mxu0 0.0
        %931 = vmatprep.subr.mxu0 0.0
        %932 = vmatpush1.msra.mxu0 0.0
        %933 = vmatprep.subr.mxu0 0.0
        %934 = vmatpush1.msra.mxu0 0.0
        %935 = vmatprep.subr.mxu0 0.0
        %936 = vmatpush1.msra.mxu0 0.0
        %937 = vmatprep.subr.mxu0 0.0
        %938 = vmatpush1.msra.mxu0 0.0
        %939 = vmatprep.subr.mxu0 0.0
        %940 = vmatpush1.msra.mxu0 0.0
        %941 = vmatprep.subr.mxu0 0.0
        %942 = vmatpush1.msra.mxu0 0.0
        %943 = vmatprep.subr.mxu0 0.0
        %944 = vmatpush1.msra.mxu0 0.0
        %945 = vmatprep.subr.mxu0 0.0
        %946 = vmatpush1.msra.mxu0 0.0
        %947 = vmatprep.subr.mxu0 0.0
        %948 = vmatpush1.msra.mxu0 0.0
        %949 = vmatprep.subr.mxu0 0.0
        %950 = vmatpush1.msra.mxu0 0.0
        %951 = vmatprep.subr.mxu0 0.0
        %952 = vmatpush1.msra.mxu0 0.0
        %953 = vmatprep.subr.mxu0 0.0
        %954 = vmatpush1.msra.mxu0 0.0
        %955 = vmatprep.subr.mxu0 0.0
        %956 = vmatpush1.msra.mxu0 0.0
        %957 = vmatprep.subr.mxu0 0.0
        %958 = vmatpush1.msra.mxu0 0.0
        %959 = vmatprep.subr.mxu0 0.0
        %960 = vmatpush1.msra.mxu0 0.0
        %961 = vmatprep.subr.mxu0 0.0
        %962 = vmatpush1.msra.mxu0 0.0
        %963 = vmatprep.subr.mxu0 0.0
        %964 = vmatpush1.msra.mxu0 0.0
        %965 = vmatprep.subr.mxu0 0.0
        %966 = vmatpush1.msra.mxu0 0.0
        %967 = vmatprep.subr.mxu0 0.0
        %968 = vmatpush1.msra.mxu0 0.0
        %969 = vmatprep.subr.mxu0 0.0
        %970 = vmatpush1.msra.mxu0 0.0
        %971 = vmatprep.subr.mxu0 0.0
        %972 = vmatpush1.msra.mxu0 0.0
        %973 = vmatprep.subr.mxu0 0.0
        %974 = vmatpush1.msra.mxu0 0.0
        %975 = vmatprep.subr.mxu0 0.0
        %976 = vmatpush1.msra.mxu0 0.0
        %977 = vmatprep.subr.mxu0 0.0
        %978 = vmatpush1.msra.mxu0 0.0
        %979 = vmatprep.subr.mxu0 0.0
        %980 = vmatpush1.msra.mxu0 0.0
        %981 = vmatprep.subr.mxu0 0.0
        %982 = vmatpush1.msra.mxu0 0.0
        %983 = vmatprep.subr.mxu0 0.0
        %984 = vmatpush1.msra.mxu0 0.0
        %985 = vmatprep.mubr.f32.mxu0 0.0
        %986 = vmatmul.mubr.f32.gmra.mrb[0].mxu0 %v919
        %v987 = vpop.f32.mrb[0].mxu0
        %v988 = vadd.f32 %v915, %v987
        %v989 = vpop.f32.mrb[0].mxu0
        %v990 = vadd.f32 %v915, %v989
        %991 = vdwg.mxu0
        %992 = vmatprep.subr.mxu0 %v881
        %993 = vmatpush1.msra.mxu0 %v880
        %994 = vmatprep.subr.mxu0 %v889
        %995 = vmatpush1.msra.mxu0 %v888
        %996 = vmatprep.subr.mxu0 %v897
        %997 = vmatpush1.msra.mxu0 %v896
        %998 = vmatprep.subr.mxu0 %v905
        %999 = vmatpush1.msra.mxu0 %v904
        %1000 = vmatprep.subr.mxu0 0.0
        %1001 = vmatpush1.msra.mxu0 0.0
        %1002 = vmatprep.subr.mxu0 0.0
        %1003 = vmatpush1.msra.mxu0 0.0
        %1004 = vmatprep.subr.mxu0 0.0
        %1005 = vmatpush1.msra.mxu0 0.0
        %1006 = vmatprep.subr.mxu0 0.0
        %1007 = vmatpush1.msra.mxu0 0.0
        %1008 = vmatprep.subr.mxu0 0.0
        %1009 = vmatpush1.msra.mxu0 0.0
        %1010 = vmatprep.subr.mxu0 0.0
        %1011 = vmatpush1.msra.mxu0 0.0
        %1012 = vmatprep.subr.mxu0 0.0
        %1013 = vmatpush1.msra.mxu0 0.0
        %1014 = vmatprep.subr.mxu0 0.0
        %1015 = vmatpush1.msra.mxu0 0.0
        %1016 = vmatprep.subr.mxu0 0.0
        %1017 = vmatpush1.msra.mxu0 0.0
        %1018 = vmatprep.subr.mxu0 0.0
        %1019 = vmatpush1.msra.mxu0 0.0
        %1020 = vmatprep.subr.mxu0 0.0
        %1021 = vmatpush1.msra.mxu0 0.0
        %1022 = vmatprep.subr.mxu0 0.0
        %1023 = vmatpush1.msra.mxu0 0.0
        %1024 = vmatprep.subr.mxu0 0.0
        %1025 = vmatpush1.msra.mxu0 0.0
        %1026 = vmatprep.subr.mxu0 0.0
        %1027 = vmatpush1.msra.mxu0 0.0
        %1028 = vmatprep.subr.mxu0 0.0
        %1029 = vmatpush1.msra.mxu0 0.0
        %1030 = vmatprep.subr.mxu0 0.0
        %1031 = vmatpush1.msra.mxu0 0.0
        %1032 = vmatprep.subr.mxu0 0.0
        %1033 = vmatpush1.msra.mxu0 0.0
        %1034 = vmatprep.subr.mxu0 0.0
        %1035 = vmatpush1.msra.mxu0 0.0
        %1036 = vmatprep.subr.mxu0 0.0
        %1037 = vmatpush1.msra.mxu0 0.0
        %1038 = vmatprep.subr.mxu0 0.0
        %1039 = vmatpush1.msra.mxu0 0.0
        %1040 = vmatprep.subr.mxu0 0.0
        %1041 = vmatpush1.msra.mxu0 0.0
        %1042 = vmatprep.subr.mxu0 0.0
        %1043 = vmatpush1.msra.mxu0 0.0
        %1044 = vmatprep.subr.mxu0 0.0
        %1045 = vmatpush1.msra.mxu0 0.0
        %1046 = vmatprep.subr.mxu0 0.0
        %1047 = vmatpush1.msra.mxu0 0.0
        %1048 = vmatprep.subr.mxu0 0.0
        %1049 = vmatpush1.msra.mxu0 0.0
        %1050 = vmatprep.subr.mxu0 0.0
        %1051 = vmatpush1.msra.mxu0 0.0
        %1052 = vmatprep.subr.mxu0 0.0
        %1053 = vmatpush1.msra.mxu0 0.0
        %1054 = vmatprep.subr.mxu0 0.0
        %1055 = vmatpush1.msra.mxu0 0.0
        %1056 = vmatprep.mubr.f32.mxu0 0.0
        %1057 = vmatmul.mubr.f32.gmra.mrb[0].mxu0 %v919
        %v1058 = vpop.f32.mrb[0].mxu0
        %v1059 = vadd.f32 %v915, %v1058
        %v1060 = vpop.f32.mrb[0].mxu0
        %v1061 = vadd.f32 %v915, %v1060
        %1062 = vdwg.mxu0
        %1063 = vmatprep.subr.mxu0 %v883
        %1064 = vmatpush1.msra.mxu0 %v882
        %1065 = vmatprep.subr.mxu0 %v891
        %1066 = vmatpush1.msra.mxu0 %v890
        %1067 = vmatprep.subr.mxu0 %v899
        %1068 = vmatpush1.msra.mxu0 %v898
        %1069 = vmatprep.subr.mxu0 %v907
        %1070 = vmatpush1.msra.mxu0 %v906
        %1071 = vmatprep.subr.mxu0 0.0
        %1072 = vmatpush1.msra.mxu0 0.0
        %1073 = vmatprep.subr.mxu0 0.0
        %1074 = vmatpush1.msra.mxu0 0.0
        %1075 = vmatprep.subr.mxu0 0.0
        %1076 = vmatpush1.msra.mxu0 0.0
        %1077 = vmatprep.subr.mxu0 0.0
        %1078 = vmatpush1.msra.mxu0 0.0
        %1079 = vmatprep.subr.mxu0 0.0
        %1080 = vmatpush1.msra.mxu0 0.0
        %1081 = vmatprep.subr.mxu0 0.0
        %1082 = vmatpush1.msra.mxu0 0.0
        %1083 = vmatprep.subr.mxu0 0.0
        %1084 = vmatpush1.msra.mxu0 0.0
        %1085 = vmatprep.subr.mxu0 0.0
        %1086 = vmatpush1.msra.mxu0 0.0
        %1087 = vmatprep.subr.mxu0 0.0
        %1088 = vmatpush1.msra.mxu0 0.0
        %1089 = vmatprep.subr.mxu0 0.0
        %1090 = vmatpush1.msra.mxu0 0.0
        %1091 = vmatprep.subr.mxu0 0.0
        %1092 = vmatpush1.msra.mxu0 0.0
        %1093 = vmatprep.subr.mxu0 0.0
        %1094 = vmatpush1.msra.mxu0 0.0
        %1095 = vmatprep.subr.mxu0 0.0
        %1096 = vmatpush1.msra.mxu0 0.0
        %1097 = vmatprep.subr.mxu0 0.0
        %1098 = vmatpush1.msra.mxu0 0.0
        %1099 = vmatprep.subr.mxu0 0.0
        %1100 = vmatpush1.msra.mxu0 0.0
        %1101 = vmatprep.subr.mxu0 0.0
        %1102 = vmatpush1.msra.mxu0 0.0
        %1103 = vmatprep.subr.mxu0 0.0
        %1104 = vmatpush1.msra.mxu0 0.0
        %1105 = vmatprep.subr.mxu0 0.0
        %1106 = vmatpush1.msra.mxu0 0.0
        %1107 = vmatprep.subr.mxu0 0.0
        %1108 = vmatpush1.msra.mxu0 0.0
        %1109 = vmatprep.subr.mxu0 0.0
        %1110 = vmatpush1.msra.mxu0 0.0
        %1111 = vmatprep.subr.mxu0 0.0
        %1112 = vmatpush1.msra.mxu0 0.0
        %1113 = vmatprep.subr.mxu0 0.0
        %1114 = vmatpush1.msra.mxu0 0.0
        %1115 = vmatprep.subr.mxu0 0.0
        %1116 = vmatpush1.msra.mxu0 0.0
        %1117 = vmatprep.subr.mxu0 0.0
        %1118 = vmatpush1.msra.mxu0 0.0
        %1119 = vmatprep.subr.mxu0 0.0
        %1120 = vmatpush1.msra.mxu0 0.0
        %1121 = vmatprep.subr.mxu0 0.0
        %1122 = vmatpush1.msra.mxu0 0.0
        %1123 = vmatprep.subr.mxu0 0.0
        %1124 = vmatpush1.msra.mxu0 0.0
        %1125 = vmatprep.subr.mxu0 0.0
        %1126 = vmatpush1.msra.mxu0 0.0
        %1127 = vmatprep.mubr.f32.mxu0 0.0
        %1128 = vmatmul.mubr.f32.gmra.mrb[0].mxu0 %v919
        %v1129 = vpop.f32.mrb[0].mxu0
        %v1130 = vadd.f32 %v915, %v1129
        %v1131 = vpop.f32.mrb[0].mxu0
        %v1132 = vadd.f32 %v915, %v1131
        %1133 = vdwg.mxu0
        %1134 = vmatprep.subr.mxu0 %v885
        %1135 = vmatpush1.msra.mxu0 %v884
        %1136 = vmatprep.subr.mxu0 %v893
        %1137 = vmatpush1.msra.mxu0 %v892
        %1138 = vmatprep.subr.mxu0 %v901
        %1139 = vmatpush1.msra.mxu0 %v900
        %1140 = vmatprep.subr.mxu0 %v909
        %1141 = vmatpush1.msra.mxu0 %v908
        %1142 = vmatprep.subr.mxu0 0.0
        %1143 = vmatpush1.msra.mxu0 0.0
        %1144 = vmatprep.subr.mxu0 0.0
        %1145 = vmatpush1.msra.mxu0 0.0
        %1146 = vmatprep.subr.mxu0 0.0
        %1147 = vmatpush1.msra.mxu0 0.0
        %1148 = vmatprep.subr.mxu0 0.0
        %1149 = vmatpush1.msra.mxu0 0.0
        %1150 = vmatprep.subr.mxu0 0.0
        %1151 = vmatpush1.msra.mxu0 0.0
        %1152 = vmatprep.subr.mxu0 0.0
        %1153 = vmatpush1.msra.mxu0 0.0
        %1154 = vmatprep.subr.mxu0 0.0
        %1155 = vmatpush1.msra.mxu0 0.0
        %1156 = vmatprep.subr.mxu0 0.0
        %1157 = vmatpush1.msra.mxu0 0.0
        %1158 = vmatprep.subr.mxu0 0.0
        %1159 = vmatpush1.msra.mxu0 0.0
        %1160 = vmatprep.subr.mxu0 0.0
        %1161 = vmatpush1.msra.mxu0 0.0
        %1162 = vmatprep.subr.mxu0 0.0
        %1163 = vmatpush1.msra.mxu0 0.0
        %1164 = vmatprep.subr.mxu0 0.0
        %1165 = vmatpush1.msra.mxu0 0.0
        %1166 = vmatprep.subr.mxu0 0.0
        %1167 = vmatpush1.msra.mxu0 0.0
        %1168 = vmatprep.subr.mxu0 0.0
        %1169 = vmatpush1.msra.mxu0 0.0
        %1170 = vmatprep.subr.mxu0 0.0
        %1171 = vmatpush1.msra.mxu0 0.0
        %1172 = vmatprep.subr.mxu0 0.0
        %1173 = vmatpush1.msra.mxu0 0.0
        %1174 = vmatprep.subr.mxu0 0.0
        %1175 = vmatpush1.msra.mxu0 0.0
        %1176 = vmatprep.subr.mxu0 0.0
        %1177 = vmatpush1.msra.mxu0 0.0
        %1178 = vmatprep.subr.mxu0 0.0
        %1179 = vmatpush1.msra.mxu0 0.0
        %1180 = vmatprep.subr.mxu0 0.0
        %1181 = vmatpush1.msra.mxu0 0.0
        %1182 = vmatprep.subr.mxu0 0.0
        %1183 = vmatpush1.msra.mxu0 0.0
        %1184 = vmatprep.subr.mxu0 0.0
        %1185 = vmatpush1.msra.mxu0 0.0
        %1186 = vmatprep.subr.mxu0 0.0
        %1187 = vmatpush1.msra.mxu0 0.0
        %1188 = vmatprep.subr.mxu0 0.0
        %1189 = vmatpush1.msra.mxu0 0.0
        %1190 = vmatprep.subr.mxu0 0.0
        %1191 = vmatpush1.msra.mxu0 0.0
        %1192 = vmatprep.subr.mxu0 0.0
        %1193 = vmatpush1.msra.mxu0 0.0
        %1194 = vmatprep.subr.mxu0 0.0
        %1195 = vmatpush1.msra.mxu0 0.0
        %1196 = vmatprep.subr.mxu0 0.0
        %1197 = vmatpush1.msra.mxu0 0.0
        %1198 = vmatprep.mubr.f32.mxu0 0.0
        %1199 = vmatmul.mubr.f32.gmra.mrb[0].mxu0 %v919
        %v1200 = vpop.f32.mrb[0].mxu0
        %v1201 = vadd.f32 %v915, %v1200
        %v1202 = vpop.f32.mrb[0].mxu0
        %v1203 = vadd.f32 %v915, %v1202
        %1204 = vdwg.mxu0
        %v1205 = vsel %vm340, %v988, 0.0
        %v1206 = vrot.slane %v1205, 4
        %v1207 = vadd.f32 %v1205, %v1206
        %v1208 = vrot.slane %v1207, 2
        %v1209 = vadd.f32 %v1207, %v1208
        %v1210 = vrot.slane %v1209, 1
        %v1211 = vadd.f32 %v1209, %v1210
        %v1212 = vsel %vm340, %v990, 0.0
        %v1213 = vrot.slane %v1212, 4
        %v1214 = vadd.f32 %v1212, %v1213
        %v1215 = vrot.slane %v1214, 2
        %v1216 = vadd.f32 %v1214, %v1215
        %v1217 = vrot.slane %v1216, 1
        %v1218 = vadd.f32 %v1216, %v1217
        %v1219 = vsel %vm340, %v1059, 0.0
        %v1220 = vrot.slane %v1219, 4
        %v1221 = vadd.f32 %v1219, %v1220
        %v1222 = vrot.slane %v1221, 2
        %v1223 = vadd.f32 %v1221, %v1222
        %v1224 = vrot.slane %v1223, 1
        %v1225 = vadd.f32 %v1223, %v1224
        %v1226 = vsel %vm340, %v1061, 0.0
        %v1227 = vrot.slane %v1226, 4
        %v1228 = vadd.f32 %v1226, %v1227
        %v1229 = vrot.slane %v1228, 2
        %v1230 = vadd.f32 %v1228, %v1229
        %v1231 = vrot.slane %v1230, 1
        %v1232 = vadd.f32 %v1230, %v1231
        %v1233 = vsel %vm340, %v1130, 0.0
        %v1234 = vrot.slane %v1233, 4
        %v1235 = vadd.f32 %v1233, %v1234
        %v1236 = vrot.slane %v1235, 2
        %v1237 = vadd.f32 %v1235, %v1236
        %v1238 = vrot.slane %v1237, 1
        %v1239 = vadd.f32 %v1237, %v1238
        %v1240 = vsel %vm340, %v1132, 0.0
        %v1241 = vrot.slane %v1240, 4
        %v1242 = vadd.f32 %v1240, %v1241
        %v1243 = vrot.slane %v1242, 2
        %v1244 = vadd.f32 %v1242, %v1243
        %v1245 = vrot.slane %v1244, 1
        %v1246 = vadd.f32 %v1244, %v1245
        %v1247 = vsel %vm340, %v1201, 0.0
        %v1248 = vrot.slane %v1247, 4
        %v1249 = vadd.f32 %v1247, %v1248
        %v1250 = vrot.slane %v1249, 2
        %v1251 = vadd.f32 %v1249, %v1250
        %v1252 = vrot.slane %v1251, 1
        %v1253 = vadd.f32 %v1251, %v1252
        %v1254 = vsel %vm340, %v1203, 0.0
        %v1255 = vrot.slane %v1254, 4
        %v1256 = vadd.f32 %v1254, %v1255
        %v1257 = vrot.slane %v1256, 2
        %v1258 = vadd.f32 %v1256, %v1257
        %v1259 = vrot.slane %v1258, 1
        %v1260 = vadd.f32 %v1258, %v1259
        %v1261 = vmul.f32 %v1211, %v397
        %v1262 = vmul.f32 %v1218, %v397
        %v1263 = vmul.f32 %v1225, %v397
        %v1264 = vmul.f32 %v1232, %v397
        %v1265 = vmul.f32 %v1239, %v397
        %v1266 = vmul.f32 %v1246, %v397
        %v1267 = vmul.f32 %v1253, %v397
        %v1268 = vmul.f32 %v1260, %v397
        %v1277 = vcombine.low %v1261, %v1262
        %v1278 = vcombine.low %v1263, %v1264
        %v1279 = vcombine.low %v1265, %v1266
        %v1280 = vcombine.low %v1267, %v1268
        %v1282 = vunpack.c.l.s4 1966171168
        %v1283 = vunpack.c.0.s8 %v1282
        %v1284 = vlaneseq
        %v1285 = vshrl.u32 %v1284, 7
        %v1286 = vsub.s32 %v1283, %v1285
        %v1287 = vrot.slane %v1277, %v1286
        %v1289 = vunpack.c.l.s4 1966171168
        %v1290 = vunpack.c.0.s8 %v1289
        %v1291 = vlaneseq
        %v1292 = vshrl.u32 %v1291, 7
        %v1293 = vsub.s32 %v1290, %v1292
        %v1294 = vrot.slane %v1278, %v1293
        %v1296 = vunpack.c.l.s4 1966171168
        %v1297 = vunpack.c.0.s8 %v1296
        %v1298 = vlaneseq
        %v1299 = vshrl.u32 %v1298, 7
        %v1300 = vsub.s32 %v1297, %v1299
        %v1301 = vrot.slane %v1279, %v1300
        %v1303 = vunpack.c.l.s4 1966171168
        %v1304 = vunpack.c.0.s8 %v1303
        %v1305 = vlaneseq
        %v1306 = vshrl.u32 %v1305, 7
        %v1307 = vsub.s32 %v1304, %v1306
        %v1308 = vrot.slane %v1280, %v1307
        %v1309 = vcombine.low %v1287, %v1294
        %v1310 = vcombine.low %v1301, %v1308
        %v1312 = vunpack.c.l.s4 1966171168
        %v1313 = vunpack.c.0.s8 %v1312
        %v1314 = vlaneseq
        %v1315 = vshrl.u32 %v1314, 7
        %v1316 = vsub.s32 %v1313, %v1315
        %v1317 = vrot.slane %v1309, %v1316
        %v1319 = vunpack.c.l.s4 1966171168
        %v1320 = vunpack.c.0.s8 %v1319
        %v1321 = vlaneseq
        %v1322 = vshrl.u32 %v1321, 7
        %v1323 = vsub.s32 %v1320, %v1322
        %v1324 = vrot.slane %v1310, %v1323
        %v1325 = vcombine.low %v1317, %v1324
        %1327 = vst [vmem:[%s322] sm:$0xff] %v1325
        %s1328 = smul.u32 8, %s24
        %p1329 = scmp.lt.s32.totalorder %s23, 1
        %s1330 = scalar_select %p1329, %s23, 1
        %p1331 = scmp.lt.s32.totalorder %s1328, 7
        %s1332 = scalar_select %p1331, %s1328, 7
        %s1333 = smul.addr %s1330, 8
        %s1334 = sadd.s32 %s1332, %s1333
        %s1335 = scalar_lea.vmem %s5, %s1334
        %s1336 = smul.u32 8, %s24
        %p1337 = scmp.lt.s32.totalorder %s23, 1
        %s1338 = scalar_select %p1337, %s23, 1
        %p1339 = scmp.lt.s32.totalorder %s1336, 7
        %s1340 = scalar_select %p1339, %s1336, 7
        %s1341 = smul.addr %s1338, 8
        %s1342 = sadd.s32 %s1340, %s1341
        %s1343 = scalar_lea.vmem %s6, %s1342
        // Predicated region
        $region45: #{segmentation_forward.3} parent=39 // pred_check
          %p1344 = pneg %p163
        $region46: #{segmentation_forward.3} parent=39 // pred_check_branch
          %1346 = sbr.rel (%p1344) target = $region48
        $region47: #{segmentation_forward.3} parent=39 // pred_region
          %s1347 = smul.u32 8, %s24
        $region48: #{segmentation_forward.3} parent=39 // pred_fallthru
          _
        // Predicated region
        $region49: #{segmentation_forward.3} parent=39 // pred_check
          %p1348 = pneg %p191
        $region50: #{segmentation_forward.3} parent=39 // pred_check_branch
          %1350 = sbr.rel (%p1348) target = $region52
        $region51: #{segmentation_forward.3} parent=39 // pred_region
          %s1351 = smul.u32 8, %s24
        $region52: #{segmentation_forward.3} parent=39 // pred_fallthru
          _
      $region40: #{segmentation_forward.3} parent=5 // pred_fallthru
        _
      %p1352 = scmp.le.s32.totalorder 2, %s14
      // Predicated region
      $region53: #{segmentation_forward.3} parent=5 // pred_check
        %p1353 = pneg %p1352
      $region54: #{segmentation_forward.3} parent=5 // pred_check_branch
        %1355 = sbr.rel (%p1353) target = $region56
      $region55: #{segmentation_forward.3} parent=5 // pred_region
        %s1356 = ssub.s32 %s14, 2
        // Predicated region
        $region57: #{segmentation_forward.3} parent=55 // pred_check
          %p1357 = pneg %p169
        $region58: #{segmentation_forward.3} parent=55 // pred_check_branch
          %1359 = sbr.rel (%p1357) target = $region60
        $region59: #{segmentation_forward.3} parent=55 // pred_region
          %s1360 = smul.u32 8, %s26
          %p1361 = scmp.lt.s32.totalorder %s25, 1
          %s1362 = scalar_select %p1361, %s25, 1
          %p1363 = scmp.lt.s32.totalorder %s1360, 7
          %s1364 = scalar_select %p1363, %s1360, 7
          %s1365 = smul.addr %s1362, 8
          %s1366 = sadd.s32 %s1364, %s1365
          %s1367 = scalar_lea.vmem %s5, %s1366
        $region60: #{segmentation_forward.3} parent=55 // pred_fallthru
          _
        // Predicated region
        $region61: #{segmentation_forward.3} parent=55 // pred_check
          %p1368 = pneg %p197
        $region62: #{segmentation_forward.3} parent=55 // pred_check_branch
          %1370 = sbr.rel (%p1368) target = $region64
        $region63: #{segmentation_forward.3} parent=55 // pred_region
          %s1371 = smul.u32 8, %s26
          %p1372 = scmp.lt.s32.totalorder %s25, 1
          %s1373 = scalar_select %p1372, %s25, 1
          %p1374 = scmp.lt.s32.totalorder %s1371, 7
          %s1375 = scalar_select %p1374, %s1371, 7
          %s1376 = smul.addr %s1373, 8
          %s1377 = sadd.s32 %s1375, %s1376
          %s1378 = scalar_lea.vmem %s6, %s1377
        $region64: #{segmentation_forward.3} parent=55 // pred_fallthru
          _
      $region56: #{segmentation_forward.3} parent=5 // pred_fallthru
        _
    $region6: #{segmentation_forward.3} parent=1 // loop_footer
      %s18 = sadd.s32 1, %s14
    $region7: #{segmentation_forward.3} parent=1 // loop_footer_branch
      %13 = sbr.rel target = $region3
    $region8: #{segmentation_forward.3} parent=1 // loop_exit
      _
    %1379 = vsyncpa [#allocation3], 1
    %s1380 = scalar_lea.sflag [#allocation3], 1
    %1381 = vsyncpa %s1380, 1

// kernel: segmentation_forward.4
$region0: #{segmentation_forward.4}
  #allocation0 [shape = 'u32[]', space=smem, size = 0x4, offset = 0x4, fixed_abs, tag = 'smem constant byte address 0x4 - core index']
  #allocation1 [shape = 'u32[144,128]{1,0:T(1,128)}', space=vmem, size = 0x12000, scoped, tag = 'internal scratch']
  %s0 = inlined_call_operand.vmem [shape: f32[2], index: 0, kind: input, shape index: {}]
  %s1 = inlined_call_operand.vmem [shape: f32[2,40,40], index: 1, kind: input, shape index: {}]
  %s2 = inlined_call_operand.vmem [shape: f32[2,40,40], index: 2, kind: input, shape index: {}]
  %s3 = inlined_call_operand.vmem [shape: f32[2,32,32], index: 3, kind: output, shape index: {}]
  %s4 = sld [smem:[#allocation0]]
  $region49: #{segmentation_forward.4} parent=0
    _
  %s6 = ssub.s32 1, %s4
  %s7 = scalar_select 0, %s6, %s4
  $region1: #{segmentation_forward.4} parent=0
    #allocation2 [shape = 'u8[512]{0}', space=smem, size = 0x200, scoped, tag = 'input window, operand 0, single buffered']
    #allocation3 [shape = 's32[2]{0}', space=sflag, size = 0x8, scoped, tag = 'scoped memory for segmentation_forward.4']
    %8 = vsyncpa [#allocation3], 0
    loop: start=0, step=1, limit=4
    $region2: #{segmentation_forward.4} parent=1 // loop_pre_header
      _
    $region3: #{segmentation_forward.4} parent=1 // loop_header
      %s10 = sphi 0, %s14
      %p11 = scmp.ge.s32.totalorder %s10, 4
      %s18 = sphi 0, %s18
      %s20 = sphi 0, %s18
      %s21 = sphi 0, %s20
      %s35 = sphi 0, %s21
      %s41 = sphi 0, %s43
      %s44 = sphi 0, %s41
      %s45 = sphi 0, %s44
      %s61 = sphi 0, %s45
      %s67 = sphi 0, %s69
      %s70 = sphi 0, %s67
      %s71 = sphi 0, %s70
      %s87 = sphi 0, %s71
      %s93 = sphi 0, %s95
      %s96 = sphi 0, %s93
      %s97 = sphi 0, %s96
      %s113 = sphi 0, %s97
    $region4: #{segmentation_forward.4} parent=1 // loop_header_branch
      %13 = sbr.rel (%p11) target = $region8
    $region5: #{segmentation_forward.4} parent=1 // loop_body
      %s15 = ssub.s32 %s10, 1
      %s16 = ssub.s32 %s10, 2
      %s17 = sadd.s32 %s10, 1
      %s19 = sadd.s32 %s18, 1
      %p22 = scmp.eq.s32.totalorder %s10, 1
      %p23 = scmp.ne.s32.totalorder %s18, %s20
      %p24 = scmp.eq.s32.totalorder %s10, 0
      %p25 = por %p23, %p24
      %p26 = scmp.ne.s32.totalorder %s18, %s20
      %p27 = scmp.eq.s32.totalorder %s15, 1
      %p28 = por %p26, %p27
      %p29 = scmp.ne.s32.totalorder %s20, %s21
      %p30 = scmp.eq.s32.totalorder %s15, 0
      %p31 = por %p29, %p30
      %p32 = scmp.ne.s32.totalorder %s20, %s21
      %p33 = scmp.eq.s32.totalorder %s16, 1
      %p34 = por %p32, %p33
      %p36 = scmp.ne.s32.totalorder %s21, %s35
      %p37 = scmp.eq.s32.totalorder %s16, 0
      %p38 = por %p36, %p37
      %s39 = ssub.s32 %s10, %s17
      %p40 = scmp.eq.s32.totalorder %s39, 0
      %s42 = sadd.s32 %s41, 1
      %s43 = scalar_select %p40, %s41, %s42
      %p46 = pneg %p40
      %p47 = scmp.eq.s32.totalorder %s10, 1
      %p48 = por %p46, %p47
      %p49 = scmp.ne.s32.totalorder %s41, %s44
      %p50 = scmp.eq.s32.totalorder %s10, 0
      %p51 = por %p49, %p50
      %p52 = scmp.ne.s32.totalorder %s41, %s44
      %p53 = scmp.eq.s32.totalorder %s15, 1
      %p54 = por %p52, %p53
      %p55 = scmp.ne.s32.totalorder %s44, %s45
      %p56 = scmp.eq.s32.totalorder %s15, 0
      %p57 = por %p55, %p56
      %p58 = scmp.ne.s32.totalorder %s44, %s45
      %p59 = scmp.eq.s32.totalorder %s16, 1
      %p60 = por %p58, %p59
      %p62 = scmp.ne.s32.totalorder %s45, %s61
      %p63 = scmp.eq.s32.totalorder %s16, 0
      %p64 = por %p62, %p63
      %s65 = ssub.s32 %s10, %s17
      %p66 = scmp.eq.s32.totalorder %s65, 0
      %s68 = sadd.s32 %s67, 1
      %s69 = scalar_select %p66, %s67, %s68
      %p72 = pneg %p66
      %p73 = scmp.eq.s32.totalorder %s10, 1
      %p74 = por %p72, %p73
      %p75 = scmp.ne.s32.totalorder %s67, %s70
      %p76 = scmp.eq.s32.totalorder %s10, 0
      %p77 = por %p75, %p76
      %p78 = scmp.ne.s32.totalorder %s67, %s70
      %p79 = scmp.eq.s32.totalorder %s15, 1
      %p80 = por %p78, %p79
      %p81 = scmp.ne.s32.totalorder %s70, %s71
      %p82 = scmp.eq.s32.totalorder %s15, 0
      %p83 = por %p81, %p82
      %p84 = scmp.ne.s32.totalorder %s70, %s71
      %p85 = scmp.eq.s32.totalorder %s16, 1
      %p86 = por %p84, %p85
      %p88 = scmp.ne.s32.totalorder %s71, %s87
      %p89 = scmp.eq.s32.totalorder %s16, 0
      %p90 = por %p88, %p89
      %s91 = ssub.s32 %s10, %s17
      %p92 = scmp.eq.s32.totalorder %s91, 0
      %s94 = sadd.s32 %s93, 1
      %s95 = scalar_select %p92, %s93, %s94
      %p98 = pneg %p92
      %p99 = scmp.eq.s32.totalorder %s10, 1
      %p100 = por %p98, %p99
      %p101 = scmp.ne.s32.totalorder %s93, %s96
      %p102 = scmp.eq.s32.totalorder %s10, 0
      %p103 = por %p101, %p102
      %p104 = scmp.ne.s32.totalorder %s93, %s96
      %p105 = scmp.eq.s32.totalorder %s15, 1
      %p106 = por %p104, %p105
      %p107 = scmp.ne.s32.totalorder %s96, %s97
      %p108 = scmp.eq.s32.totalorder %s15, 0
      %p109 = por %p107, %p108
      %p110 = scmp.ne.s32.totalorder %s96, %s97
      %p111 = scmp.eq.s32.totalorder %s16, 1
      %p112 = por %p110, %p111
      %p114 = scmp.ne.s32.totalorder %s97, %s113
      %p115 = scmp.eq.s32.totalorder %s16, 0
      %p116 = por %p114, %p115
      %p117 = scmp.le.s32.totalorder 1, %s10
      %p118 = scmp.lt.s32.totalorder %s10, 3
      %p119 = pnand %p117, %p118
      %p120 = pneg %p119
      // Predicated region
      $region9: #{segmentation_forward.4} parent=5 // pred_check
        _
      $region10: #{segmentation_forward.4} parent=5 // pred_check_branch
        %122 = sbr.rel (%p119) target = $region12
      $region11: #{segmentation_forward.4} parent=5 // pred_region
        %s123 = ssub.s32 %s10, 1
        // Predicated region
        $region13: #{segmentation_forward.4} parent=11 // pred_check
          %p124 = pneg %p31
        $region14: #{segmentation_forward.4} parent=11 // pred_check_branch
          %126 = sbr.rel (%p124) target = $region16
        $region15: #{segmentation_forward.4} parent=11 // pred_region
          %s128 = ssub.s32 16, 16
          %129 = vsyncadd [#allocation3], %s128
          %s131 = sshll.u32 %s0, 4
          %s132 = int_to_ptr.vmem [resolvable:$true] %s131
          %134 = dma.vmem_to_smem %s132, 16, [#allocation2], [#allocation3]
        $region16: #{segmentation_forward.4} parent=11 // pred_fallthru
          _
      $region12: #{segmentation_forward.4} parent=5 // pred_fallthru
        _
      %p135 = scmp.lt.s32.totalorder %s10, 2
      // Predicated region
      $region17: #{segmentation_forward.4} parent=5 // pred_check
        %p136 = pneg %p135
      $region18: #{segmentation_forward.4} parent=5 // pred_check_branch
        %138 = sbr.rel (%p136) target = $region20
      $region19: #{segmentation_forward.4} parent=5 // pred_region
        // Predicated region
        $region21: #{segmentation_forward.4} parent=19 // pred_check
          %p139 = pneg %p51
        $region22: #{segmentation_forward.4} parent=19 // pred_check_branch
          %141 = sbr.rel (%p139) target = $region24
        $region23: #{segmentation_forward.4} parent=19 // pred_region
          %p142 = scmp.lt.s32.totalorder %s10, 1
          %s143 = scalar_select %p142, %s10, 1
          %s144 = smul.addr %s143, 5
          %s145 = smul.addr %s144, 8
          %s146 = scalar_lea.vmem %s1, %s145
        $region24: #{segmentation_forward.4} parent=19 // pred_fallthru
          _
        // Predicated region
        $region25: #{segmentation_forward.4} parent=19 // pred_check
          %p147 = pneg %p77
        $region26: #{segmentation_forward.4} parent=19 // pred_check_branch
          %149 = sbr.rel (%p147) target = $region28
        $region27: #{segmentation_forward.4} parent=19 // pred_region
          %p150 = scmp.lt.s32.totalorder %s10, 1
          %s151 = scalar_select %p150, %s10, 1
          %s152 = smul.addr %s151, 5
          %s153 = smul.addr %s152, 8
          %s154 = scalar_lea.vmem %s2, %s153
        $region28: #{segmentation_forward.4} parent=19 // pred_fallthru
          _
      $region20: #{segmentation_forward.4} parent=5 // pred_fallthru
        _
      %p155 = scmp.le.s32.totalorder 1, %s10
      %p156 = scmp.lt.s32.totalorder %s10, 3
      %p157 = pnand %p155, %p156
      %p158 = pneg %p157
      // Predicated region
      $region29: #{segmentation_forward.4} parent=5 // pred_check
        _
      $region30: #{segmentation_forward.4} parent=5 // pred_check_branch
        %160 = sbr.rel (%p157) target = $region32
      $region31: #{segmentation_forward.4} parent=5 // pred_region
        %s161 = ssub.s32 %s10, 1
        // Predicated region
        $region33: #{segmentation_forward.4} parent=31 // pred_check
          %p162 = pneg %p31
        $region34: #{segmentation_forward.4} parent=31 // pred_check_branch
          %164 = sbr.rel (%p162) target = $region36
        $region35: #{segmentation_forward.4} parent=31 // pred_region
          %165 = dma.done [#allocation3], 16
        $region36: #{segmentation_forward.4} parent=31 // pred_fallthru
          _
        %166 = sfence
        %p167 = pneg %p31
        %p168 = pneg %p28
        %p169 = scmp.lt.s32.totalorder %s15, 1
        %s170 = scalar_select %p169, %s15, 1
        %s171 = smul.addr %s170, 5
        %s172 = smul.addr %s171, 8
        %s173 = scalar_lea.vmem %s1, %s172
        %p174 = pneg %p57
        %p175 = pneg %p54
        %p176 = scmp.lt.s32.totalorder %s15, 1
        %s177 = scalar_select %p176, %s15, 1
        %s178 = smul.addr %s177, 5
        %s179 = smul.addr %s178, 8
        %s180 = scalar_lea.vmem %s2, %s179
        %p181 = pneg %p83
        %p182 = pneg %p80
        %p183 = pneg %p109
        %p184 = pneg %p106
        %p185 = scmp.lt.s32.totalorder %s15, 1
        %s186 = scalar_select %p185, %s15, 1
        %s187 = smul.addr %s186, 4
        %s188 = smul.addr %s187, 8
        %s189 = scalar_lea.vmem %s3, %s188
        %p190 = scmp.lt.s32.totalorder %s15, 1
        %s191 = scalar_select %p190, %s15, 1
        %s192 = smul.addr %s191, 5
        %s193 = smul.addr %s192, 8
        %s194 = scalar_lea.vmem %s1, %s193
        %p195 = scmp.lt.s32.totalorder %s15, 1
        %s196 = scalar_select %p195, %s15, 1
        %s197 = smul.addr %s196, 5
        %s198 = smul.addr %s197, 8
        %s199 = scalar_lea.vmem %s2, %s198
        %p200 = scmp.lt.s32.totalorder %s15, 1
        %s201 = scalar_select %p200, %s15, 1
        %s202 = smul.addr %s201, 4
        %s203 = smul.addr %s202, 8
        %s204 = scalar_lea.vmem %s3, %s203
        %v205 = vld [vmem:[%s194] sm:$0xff]
        %v206 = vld [vmem:[%s194 + $0x8] sm:$0xff]
        %v207 = vld [vmem:[%s194 + $0x10] sm:$0xff]
        %v208 = vld [vmem:[%s194 + $0x18] sm:$0xff]
        %v209 = vld [vmem:[%s194 + $0x20] sm:$0xff]
        %v210 = vld [vmem:[%s199] sm:$0xff]
        %v211 = vld [vmem:[%s199 + $0x8] sm:$0xff]
        %v212 = vld [vmem:[%s199 + $0x10] sm:$0xff]
        %v213 = vld [vmem:[%s199 + $0x18] sm:$0xff]
        %v214 = vld [vmem:[%s199 + $0x20] sm:$0xff]
        %220 = vrot.lane.b32.xlu0 %v205, 127
        %v221 = vpop.permute.xlu0 %220
        %222 = vrot.lane.b32.xlu0 %v206, 127
        %v223 = vpop.permute.xlu0 %222
        %224 = vrot.lane.b32.xlu0 %v207, 127
        %v225 = vpop.permute.xlu0 %224
        %226 = vrot.lane.b32.xlu0 %v208, 127
        %v227 = vpop.permute.xlu0 %226
        %228 = vrot.lane.b32.xlu0 %v209, 127
        %v229 = vpop.permute.xlu0 %228
        %v235 = vadd.f32 %v205, %v221
        %v236 = vadd.f32 %v206, %v223
        %v237 = vadd.f32 %v207, %v225
        %v238 = vadd.f32 %v208, %v227
        %v239 = vadd.f32 %v209, %v229
        %240 = vrot.lane.b32.xlu0 %v205, 126
        %v241 = vpop.permute.xlu0 %240
        %242 = vrot.lane.b32.xlu0 %v206, 126
        %v243 = vpop.permute.xlu0 %242
        %244 = vrot.lane.b32.xlu0 %v207, 126
        %v245 = vpop.permute.xlu0 %244
        %246 = vrot.lane.b32.xlu0 %v208, 126
        %v247 = vpop.permute.xlu0 %246
        %248 = vrot.lane.b32.xlu0 %v209, 126
        %v249 = vpop.permute.xlu0 %248
        %v255 = vadd.f32 %v235, %v241
        %v256 = vadd.f32 %v236, %v243
        %v257 = vadd.f32 %v237, %v245
        %v258 = vadd.f32 %v238, %v247
        %v259 = vadd.f32 %v239, %v249
        %260 = vrot.lane.b32.xlu0 %v205, 125
        %v261 = vpop.permute.xlu0 %260
        %262 = vrot.lane.b32.xlu0 %v206, 125
        %v263 = vpop.permute.xlu0 %262
        %264 = vrot.lane.b32.xlu0 %v207, 125
        %v265 = vpop.permute.xlu0 %264
        %266 = vrot.lane.b32.xlu0 %v208, 125
        %v267 = vpop.permute.xlu0 %266
        %268 = vrot.lane.b32.xlu0 %v209, 125
        %v269 = vpop.permute.xlu0 %268
        %v275 = vadd.f32 %v255, %v261
        %v276 = vadd.f32 %v256, %v263
        %v277 = vadd.f32 %v257, %v265
        %v278 = vadd.f32 %v258, %v267
        %v279 = vadd.f32 %v259, %v269
        %280 = vrot.lane.b32.xlu0 %v205, 124
        %v281 = vpop.permute.xlu0 %280
        %282 = vrot.lane.b32.xlu0 %v206, 124
        %v283 = vpop.permute.xlu0 %282
        %284 = vrot.lane.b32.xlu0 %v207, 124
        %v285 = vpop.permute.xlu0 %284
        %286 = vrot.lane.b32.xlu0 %v208, 124
        %v287 = vpop.permute.xlu0 %286
        %288 = vrot.lane.b32.xlu0 %v209, 124
        %v289 = vpop.permute.xlu0 %288
        %v295 = vadd.f32 %v275, %v281
        %v296 = vadd.f32 %v276, %v283
        %v297 = vadd.f32 %v277, %v285
        %v298 = vadd.f32 %v278, %v287
        %v299 = vadd.f32 %v279, %v289
        %300 = vrot.lane.b32.xlu0 %v205, 123
        %v301 = vpop.permute.xlu0 %300
        %302 = vrot.lane.b32.xlu0 %v206, 123
        %v303 = vpop.permute.xlu0 %302
        %304 = vrot.lane.b32.xlu0 %v207, 123
        %v305 = vpop.permute.xlu0 %304
        %306 = vrot.lane.b32.xlu0 %v208, 123
        %v307 = vpop.permute.xlu0 %306
        %308 = vrot.lane.b32.xlu0 %v209, 123
        %v309 = vpop.permute.xlu0 %308
        %v315 = vadd.f32 %v295, %v301
        %v316 = vadd.f32 %v296, %v303
        %v317 = vadd.f32 %v297, %v305
        %v318 = vadd.f32 %v298, %v307
        %v319 = vadd.f32 %v299, %v309
        %320 = vrot.lane.b32.xlu0 %v205, 122
        %v321 = vpop.permute.xlu0 %320
        %322 = vrot.lane.b32.xlu0 %v206, 122
        %v323 = vpop.permute.xlu0 %322
        %324 = vrot.lane.b32.xlu0 %v207, 122
        %v325 = vpop.permute.xlu0 %324
        %326 = vrot.lane.b32.xlu0 %v208, 122
        %v327 = vpop.permute.xlu0 %326
        %328 = vrot.lane.b32.xlu0 %v209, 122
        %v329 = vpop.permute.xlu0 %328
        %v335 = vadd.f32 %v315, %v321
        %v336 = vadd.f32 %v316, %v323
        %v337 = vadd.f32 %v317, %v325
        %v338 = vadd.f32 %v318, %v327
        %v339 = vadd.f32 %v319, %v329
        %340 = vrot.lane.b32.xlu0 %v205, 121
        %v341 = vpop.permute.xlu0 %340
        %342 = vrot.lane.b32.xlu0 %v206, 121
        %v343 = vpop.permute.xlu0 %342
        %344 = vrot.lane.b32.xlu0 %v207, 121
        %v345 = vpop.permute.xlu0 %344
        %346 = vrot.lane.b32.xlu0 %v208, 121
        %v347 = vpop.permute.xlu0 %346
        %348 = vrot.lane.b32.xlu0 %v209, 121
        %v349 = vpop.permute.xlu0 %348
        %v355 = vadd.f32 %v335, %v341
        %v356 = vadd.f32 %v336, %v343
        %v357 = vadd.f32 %v337, %v345
        %v358 = vadd.f32 %v338, %v347
        %v359 = vadd.f32 %v339, %v349
        %360 = vrot.lane.b32.xlu0 %v205, 120
        %v361 = vpop.permute.xlu0 %360
        %362 = vrot.lane.b32.xlu0 %v206, 120
        %v363 = vpop.permute.xlu0 %362
        %364 = vrot.lane.b32.xlu0 %v207, 120
        %v365 = vpop.permute.xlu0 %364
        %366 = vrot.lane.b32.xlu0 %v208, 120
        %v367 = vpop.permute.xlu0 %366
        %368 = vrot.lane.b32.xlu0 %v209, 120
        %v369 = vpop.permute.xlu0 %368
        %v375 = vadd.f32 %v355, %v361
        %v376 = vadd.f32 %v356, %v363
        %v377 = vadd.f32 %v357, %v365
        %v378 = vadd.f32 %v358, %v367
        %v379 = vadd.f32 %v359, %v369
        %vm385 = vcmask 1046528
        %v386 = vrot.slane %v375, 1
        %v387 = vrot.slane %v376, 1
        %v388 = vsel %vm385, %v386, %v387
        %v389 = vrot.slane %v377, 1
        %v390 = vsel %vm385, %v387, %v389
        %v391 = vrot.slane %v378, 1
        %v392 = vsel %vm385, %v389, %v391
        %v393 = vrot.slane %v379, 1
        %v394 = vsel %vm385, %v391, %v393
        %v399 = vadd.f32 %v375, %v388
        %v400 = vadd.f32 %v376, %v390
        %v401 = vadd.f32 %v377, %v392
        %v402 = vadd.f32 %v378, %v394
        %vm403 = vcmask 1045504
        %v404 = vrot.slane %v375, 2
        %v405 = vrot.slane %v376, 2
        %v406 = vsel %vm403, %v404, %v405
        %v407 = vrot.slane %v377, 2
        %v408 = vsel %vm403, %v405, %v407
        %v409 = vrot.slane %v378, 2
        %v410 = vsel %vm403, %v407, %v409
        %v411 = vrot.slane %v379, 2
        %v412 = vsel %vm403, %v409, %v411
        %v417 = vadd.f32 %v399, %v406
        %v418 = vadd.f32 %v400, %v408
        %v419 = vadd.f32 %v401, %v410
        %v420 = vadd.f32 %v402, %v412
        %vm421 = vcmask 1044480
        %v422 = vrot.slane %v375, 3
        %v423 = vrot.slane %v376, 3
        %v424 = vsel %vm421, %v422, %v423
        %v425 = vrot.slane %v377, 3
        %v426 = vsel %vm421, %v423, %v425
        %v427 = vrot.slane %v378, 3
        %v428 = vsel %vm421, %v425, %v427
        %v429 = vrot.slane %v379, 3
        %v430 = vsel %vm421, %v427, %v429
        %v435 = vadd.f32 %v417, %v424
        %v436 = vadd.f32 %v418, %v426
        %v437 = vadd.f32 %v419, %v428
        %v438 = vadd.f32 %v420, %v430
        %vm439 = vcmask 1043456
        %v440 = vrot.slane %v375, 4
        %v441 = vrot.slane %v376, 4
        %v442 = vsel %vm439, %v440, %v441
        %v443 = vrot.slane %v377, 4
        %v444 = vsel %vm439, %v441, %v443
        %v445 = vrot.slane %v378, 4
        %v446 = vsel %vm439, %v443, %v445
        %v447 = vrot.slane %v379, 4
        %v448 = vsel %vm439, %v445, %v447
        %v453 = vadd.f32 %v435, %v442
        %v454 = vadd.f32 %v436, %v444
        %v455 = vadd.f32 %v437, %v446
        %v456 = vadd.f32 %v438, %v448
        %vm457 = vcmask 1042432
        %v458 = vrot.slane %v375, 5
        %v459 = vrot.slane %v376, 5
        %v460 = vsel %vm457, %v458, %v459
        %v461 = vrot.slane %v377, 5
        %v462 = vsel %vm457, %v459, %v461
        %v463 = vrot.slane %v378, 5
        %v464 = vsel %vm457, %v461, %v463
        %v465 = vrot.slane %v379, 5
        %v466 = vsel %vm457, %v463, %v465
        %v471 = vadd.f32 %v453, %v460
        %v472 = vadd.f32 %v454, %v462
        %v473 = vadd.f32 %v455, %v464
        %v474 = vadd.f32 %v456, %v466
        %vm475 = vcmask 1041408
        %v476 = vrot.slane %v375, 6
        %v477 = vrot.slane %v376, 6
        %v478 = vsel %vm475, %v476, %v477
        %v479 = vrot.slane %v377, 6
        %v480 = vsel %vm475, %v477, %v479
        %v481 = vrot.slane %v378, 6
        %v482 = vsel %vm475, %v479, %v481
        %v483 = vrot.slane %v379, 6
        %v484 = vsel %vm475, %v481, %v483
        %v489 = vadd.f32 %v471, %v478
        %v490 = vadd.f32 %v472, %v480
        %v491 = vadd.f32 %v473, %v482
        %v492 = vadd.f32 %v474, %v484
        %vm493 = vcmask 1040384
        %v494 = vrot.slane %v375, 7
        %v495 = vrot.slane %v376, 7
        %v496 = vsel %vm493, %v494, %v495
        %v497 = vrot.slane %v377, 7
        %v498 = vsel %vm493, %v495, %v497
        %v499 = vrot.slane %v378, 7
        %v500 = vsel %vm493, %v497, %v499
        %v501 = vrot.slane %v379, 7
        %v502 = vsel %vm493, %v499, %v501
        %v507 = vadd.f32 %v489, %v496
        %v508 = vadd.f32 %v490, %v498
        %v509 = vadd.f32 %v491, %v500
        %v510 = vadd.f32 %v492, %v502
        %v511 = vadd.f32 %v507, %v376
        %v512 = vadd.f32 %v508, %v377
        %v513 = vadd.f32 %v509, %v378
        %v514 = vadd.f32 %v510, %v379
        %v515 = vmul.f32 %v511, 0.012345679
        %v516 = vmul.f32 %v512, 0.012345679
        %v517 = vmul.f32 %v513, 0.012345679
        %v518 = vmul.f32 %v514, 0.012345679
        %524 = vrot.lane.b32.xlu0 %v210, 127
        %v525 = vpop.permute.xlu0 %524
        %526 = vrot.lane.b32.xlu0 %v211, 127
        %v527 = vpop.permute.xlu0 %526
        %528 = vrot.lane.b32.xlu0 %v212, 127
        %v529 = vpop.permute.xlu0 %528
        %530 = vrot.lane.b32.xlu0 %v213, 127
        %v531 = vpop.permute.xlu0 %530
        %532 = vrot.lane.b32.xlu0 %v214, 127
        %v533 = vpop.permute.xlu0 %532
        %v539 = vadd.f32 %v210, %v525
        %v540 = vadd.f32 %v211, %v527
        %v541 = vadd.f32 %v212, %v529
        %v542 = vadd.f32 %v213, %v531
        %v543 = vadd.f32 %v214, %v533
        %544 = vrot.lane.b32.xlu0 %v210, 126
        %v545 = vpop.permute.xlu0 %544
        %546 = vrot.lane.b32.xlu0 %v211, 126
        %v547 = vpop.permute.xlu0 %546
        %548 = vrot.lane.b32.xlu0 %v212, 126
        %v549 = vpop.permute.xlu0 %548
        %550 = vrot.lane.b32.xlu0 %v213, 126
        %v551 = vpop.permute.xlu0 %550
        %552 = vrot.lane.b32.xlu0 %v214, 126
        %v553 = vpop.permute.xlu0 %552
        %v559 = vadd.f32 %v539, %v545
        %v560 = vadd.f32 %v540, %v547
        %v561 = vadd.f32 %v541, %v549
        %v562 = vadd.f32 %v542, %v551
        %v563 = vadd.f32 %v543, %v553
        %564 = vrot.lane.b32.xlu0 %v210, 125
        %v565 = vpop.permute.xlu0 %564
        %566 = vrot.lane.b32.xlu0 %v211, 125
        %v567 = vpop.permute.xlu0 %566
        %568 = vrot.lane.b32.xlu0 %v212, 125
        %v569 = vpop.permute.xlu0 %568
        %570 = vrot.lane.b32.xlu0 %v213, 125
        %v571 = vpop.permute.xlu0 %570
        %572 = vrot.lane.b32.xlu0 %v214, 125
        %v573 = vpop.permute.xlu0 %572
        %v579 = vadd.f32 %v559, %v565
        %v580 = vadd.f32 %v560, %v567
        %v581 = vadd.f32 %v561, %v569
        %v582 = vadd.f32 %v562, %v571
        %v583 = vadd.f32 %v563, %v573
        %584 = vrot.lane.b32.xlu0 %v210, 124
        %v585 = vpop.permute.xlu0 %584
        %586 = vrot.lane.b32.xlu0 %v211, 124
        %v587 = vpop.permute.xlu0 %586
        %588 = vrot.lane.b32.xlu0 %v212, 124
        %v589 = vpop.permute.xlu0 %588
        %590 = vrot.lane.b32.xlu0 %v213, 124
        %v591 = vpop.permute.xlu0 %590
        %592 = vrot.lane.b32.xlu0 %v214, 124
        %v593 = vpop.permute.xlu0 %592
        %v599 = vadd.f32 %v579, %v585
        %v600 = vadd.f32 %v580, %v587
        %v601 = vadd.f32 %v581, %v589
        %v602 = vadd.f32 %v582, %v591
        %v603 = vadd.f32 %v583, %v593
        %604 = vrot.lane.b32.xlu0 %v210, 123
        %v605 = vpop.permute.xlu0 %604
        %606 = vrot.lane.b32.xlu0 %v211, 123
        %v607 = vpop.permute.xlu0 %606
        %608 = vrot.lane.b32.xlu0 %v212, 123
        %v609 = vpop.permute.xlu0 %608
        %610 = vrot.lane.b32.xlu0 %v213, 123
        %v611 = vpop.permute.xlu0 %610
        %612 = vrot.lane.b32.xlu0 %v214, 123
        %v613 = vpop.permute.xlu0 %612
        %v619 = vadd.f32 %v599, %v605
        %v620 = vadd.f32 %v600, %v607
        %v621 = vadd.f32 %v601, %v609
        %v622 = vadd.f32 %v602, %v611
        %v623 = vadd.f32 %v603, %v613
        %624 = vrot.lane.b32.xlu0 %v210, 122
        %v625 = vpop.permute.xlu0 %624
        %626 = vrot.lane.b32.xlu0 %v211, 122
        %v627 = vpop.permute.xlu0 %626
        %628 = vrot.lane.b32.xlu0 %v212, 122
        %v629 = vpop.permute.xlu0 %628
        %630 = vrot.lane.b32.xlu0 %v213, 122
        %v631 = vpop.permute.xlu0 %630
        %632 = vrot.lane.b32.xlu0 %v214, 122
        %v633 = vpop.permute.xlu0 %632
        %v639 = vadd.f32 %v619, %v625
        %v640 = vadd.f32 %v620, %v627
        %v641 = vadd.f32 %v621, %v629
        %v642 = vadd.f32 %v622, %v631
        %v643 = vadd.f32 %v623, %v633
        %644 = vrot.lane.b32.xlu0 %v210, 121
        %v645 = vpop.permute.xlu0 %644
        %646 = vrot.lane.b32.xlu0 %v211, 121
        %v647 = vpop.permute.xlu0 %646
        %648 = vrot.lane.b32.xlu0 %v212, 121
        %v649 = vpop.permute.xlu0 %648
        %650 = vrot.lane.b32.xlu0 %v213, 121
        %v651 = vpop.permute.xlu0 %650
        %652 = vrot.lane.b32.xlu0 %v214, 121
        %v653 = vpop.permute.xlu0 %652
        %v659 = vadd.f32 %v639, %v645
        %v660 = vadd.f32 %v640, %v647
        %v661 = vadd.f32 %v641, %v649
        %v662 = vadd.f32 %v642, %v651
        %v663 = vadd.f32 %v643, %v653
        %664 = vrot.lane.b32.xlu0 %v210, 120
        %v665 = vpop.permute.xlu0 %664
        %666 = vrot.lane.b32.xlu0 %v211, 120
        %v667 = vpop.permute.xlu0 %666
        %668 = vrot.lane.b32.xlu0 %v212, 120
        %v669 = vpop.permute.xlu0 %668
        %670 = vrot.lane.b32.xlu0 %v213, 120
        %v671 = vpop.permute.xlu0 %670
        %672 = vrot.lane.b32.xlu0 %v214, 120
        %v673 = vpop.permute.xlu0 %672
        %v679 = vadd.f32 %v659, %v665
        %v680 = vadd.f32 %v660, %v667
        %v681 = vadd.f32 %v661, %v669
        %v682 = vadd.f32 %v662, %v671
        %v683 = vadd.f32 %v663, %v673
        %v689 = vrot.slane %v679, 1
        %v690 = vrot.slane %v680, 1
        %v691 = vsel %vm385, %v689, %v690
        %v692 = vrot.slane %v681, 1
        %v693 = vsel %vm385, %v690, %v692
        %v694 = vrot.slane %v682, 1
        %v695 = vsel %vm385, %v692, %v694
        %v696 = vrot.slane %v683, 1
        %v697 = vsel %vm385, %v694, %v696
        %v702 = vadd.f32 %v679, %v691
        %v703 = vadd.f32 %v680, %v693
        %v704 = vadd.f32 %v681, %v695
        %v705 = vadd.f32 %v682, %v697
        %v706 = vrot.slane %v679, 2
        %v707 = vrot.slane %v680, 2
        %v708 = vsel %vm403, %v706, %v707
        %v709 = vrot.slane %v681, 2
        %v710 = vsel %vm403, %v707, %v709
        %v711 = vrot.slane %v682, 2
        %v712 = vsel %vm403, %v709, %v711
        %v713 = vrot.slane %v683, 2
        %v714 = vsel %vm403, %v711, %v713
        %v719 = vadd.f32 %v702, %v708
        %v720 = vadd.f32 %v703, %v710
        %v721 = vadd.f32 %v704, %v712
        %v722 = vadd.f32 %v705, %v714
        %v723 = vrot.slane %v679, 3
        %v724 = vrot.slane %v680, 3
        %v725 = vsel %vm421, %v723, %v724
        %v726 = vrot.slane %v681, 3
        %v727 = vsel %vm421, %v724, %v726
        %v728 = vrot.slane %v682, 3
        %v729 = vsel %vm421, %v726, %v728
        %v730 = vrot.slane %v683, 3
        %v731 = vsel %vm421, %v728, %v730
        %v736 = vadd.f32 %v719, %v725
        %v737 = vadd.f32 %v720, %v727
        %v738 = vadd.f32 %v721, %v729
        %v739 = vadd.f32 %v722, %v731
        %v740 = vrot.slane %v679, 4
        %v741 = vrot.slane %v680, 4
        %v742 = vsel %vm439, %v740, %v741
        %v743 = vrot.slane %v681, 4
        %v744 = vsel %vm439, %v741, %v743
        %v745 = vrot.slane %v682, 4
        %v746 = vsel %vm439, %v743, %v745
        %v747 = vrot.slane %v683, 4
        %v748 = vsel %vm439, %v745, %v747
        %v753 = vadd.f32 %v736, %v742
        %v754 = vadd.f32 %v737, %v744
        %v755 = vadd.f32 %v738, %v746
        %v756 = vadd.f32 %v739, %v748
        %v757 = vrot.slane %v679, 5
        %v758 = vrot.slane %v680, 5
        %v759 = vsel %vm457, %v757, %v758
        %v760 = vrot.slane %v681, 5
        %v761 = vsel %vm457, %v758, %v760
        %v762 = vrot.slane %v682, 5
        %v763 = vsel %vm457, %v760, %v762
        %v764 = vrot.slane %v683, 5
        %v765 = vsel %vm457, %v762, %v764
        %v770 = vadd.f32 %v753, %v759
        %v771 = vadd.f32 %v754, %v761
        %v772 = vadd.f32 %v755, %v763
        %v773 = vadd.f32 %v756, %v765
        %v774 = vrot.slane %v679, 6
        %v775 = vrot.slane %v680, 6
        %v776 = vsel %vm475, %v774, %v775
        %v777 = vrot.slane %v681, 6
        %v778 = vsel %vm475, %v775, %v777
        %v779 = vrot.slane %v682, 6
        %v780 = vsel %vm475, %v777, %v779
        %v781 = vrot.slane %v683, 6
        %v782 = vsel %vm475, %v779, %v781
        %v787 = vadd.f32 %v770, %v776
        %v788 = vadd.f32 %v771, %v778
        %v789 = vadd.f32 %v772, %v780
        %v790 = vadd.f32 %v773, %v782
        %v791 = vrot.slane %v679, 7
        %v792 = vrot.slane %v680, 7
        %v793 = vsel %vm493, %v791, %v792
        %v794 = vrot.slane %v681, 7
        %v795 = vsel %vm493, %v792, %v794
        %v796 = vrot.slane %v682, 7
        %v797 = vsel %vm493, %v794, %v796
        %v798 = vrot.slane %v683, 7
        %v799 = vsel %vm493, %v796, %v798
        %v804 = vadd.f32 %v787, %v793
        %v805 = vadd.f32 %v788, %v795
        %v806 = vadd.f32 %v789, %v797
        %v807 = vadd.f32 %v790, %v799
        %v808 = vadd.f32 %v804, %v680
        %v809 = vadd.f32 %v805, %v681
        %v810 = vadd.f32 %v806, %v682
        %v811 = vadd.f32 %v807, %v683
        %v812 = vmul.f32 %v808, 0.012345679
        %v813 = vmul.f32 %v809, 0.012345679
        %v814 = vmul.f32 %v810, 0.012345679
        %v815 = vmul.f32 %v811, 0.012345679
        %v816 = vmul.f32 %v205, %v205
        %v817 = vmul.f32 %v206, %v206
        %v818 = vmul.f32 %v207, %v207
        %v819 = vmul.f32 %v208, %v208
        %v820 = vmul.f32 %v209, %v209
        %826 = vrot.lane.b32.xlu0 %v816, 127
        %v827 = vpop.permute.xlu0 %826
        %828 = vrot.lane.b32.xlu0 %v817, 127
        %v829 = vpop.permute.xlu0 %828
        %830 = vrot.lane.b32.xlu0 %v818, 127
        %v831 = vpop.permute.xlu0 %830
        %832 = vrot.lane.b32.xlu0 %v819, 127
        %v833 = vpop.permute.xlu0 %832
        %834 = vrot.lane.b32.xlu0 %v820, 127
        %v835 = vpop.permute.xlu0 %834
        %v841 = vadd.f32 %v816, %v827
        %v842 = vadd.f32 %v817, %v829
        %v843 = vadd.f32 %v818, %v831
        %v844 = vadd.f32 %v819, %v833
        %v845 = vadd.f32 %v820, %v835
        %846 = vrot.lane.b32.xlu0 %v816, 126
        %v847 = vpop.permute.xlu0 %846
        %848 = vrot.lane.b32.xlu0 %v817, 126
        %v849 = vpop.permute.xlu0 %848
        %850 = vrot.lane.b32.xlu0 %v818, 126
        %v851 = vpop.permute.xlu0 %850
        %852 = vrot.lane.b32.xlu0 %v819, 126
        %v853 = vpop.permute.xlu0 %852
        %854 = vrot.lane.b32.xlu0 %v820, 126
        %v855 = vpop.permute.xlu0 %854
        %v861 = vadd.f32 %v841, %v847
        %v862 = vadd.f32 %v842, %v849
        %v863 = vadd.f32 %v843, %v851
        %v864 = vadd.f32 %v844, %v853
        %v865 = vadd.f32 %v845, %v855
        %866 = vrot.lane.b32.xlu0 %v816, 125
        %v867 = vpop.permute.xlu0 %866
        %868 = vrot.lane.b32.xlu0 %v817, 125
        %v869 = vpop.permute.xlu0 %868
        %870 = vrot.lane.b32.xlu0 %v818, 125
        %v871 = vpop.permute.xlu0 %870
        %872 = vrot.lane.b32.xlu0 %v819, 125
        %v873 = vpop.permute.xlu0 %872
        %874 = vrot.lane.b32.xlu0 %v820, 125
        %v875 = vpop.permute.xlu0 %874
        %v881 = vadd.f32 %v861, %v867
        %v882 = vadd.f32 %v862, %v869
        %v883 = vadd.f32 %v863, %v871
        %v884 = vadd.f32 %v864, %v873
        %v885 = vadd.f32 %v865, %v875
        %886 = vrot.lane.b32.xlu0 %v816, 124
        %v887 = vpop.permute.xlu0 %886
        %888 = vrot.lane.b32.xlu0 %v817, 124
        %v889 = vpop.permute.xlu0 %888
        %890 = vrot.lane.b32.xlu0 %v818, 124
        %v891 = vpop.permute.xlu0 %890
        %892 = vrot.lane.b32.xlu0 %v819, 124
        %v893 = vpop.permute.xlu0 %892
        %894 = vrot.lane.b32.xlu0 %v820, 124
        %v895 = vpop.permute.xlu0 %894
        %v901 = vadd.f32 %v881, %v887
        %v902 = vadd.f32 %v882, %v889
        %v903 = vadd.f32 %v883, %v891
        %v904 = vadd.f32 %v884, %v893
        %v905 = vadd.f32 %v885, %v895
        %906 = vrot.lane.b32.xlu0 %v816, 123
        %v907 = vpop.permute.xlu0 %906
        %908 = vrot.lane.b32.xlu0 %v817, 123
        %v909 = vpop.permute.xlu0 %908
        %910 = vrot.lane.b32.xlu0 %v818, 123
        %v911 = vpop.permute.xlu0 %910
        %912 = vrot.lane.b32.xlu0 %v819, 123
        %v913 = vpop.permute.xlu0 %912
        %914 = vrot.lane.b32.xlu0 %v820, 123
        %v915 = vpop.permute.xlu0 %914
        %v921 = vadd.f32 %v901, %v907
        %v922 = vadd.f32 %v902, %v909
        %v923 = vadd.f32 %v903, %v911
        %v924 = vadd.f32 %v904, %v913
        %v925 = vadd.f32 %v905, %v915
        %926 = vrot.lane.b32.xlu0 %v816, 122
        %v927 = vpop.permute.xlu0 %926
        %928 = vrot.lane.b32.xlu0 %v817, 122
        %v929 = vpop.permute.xlu0 %928
        %930 = vrot.lane.b32.xlu0 %v818, 122
        %v931 = vpop.permute.xlu0 %930
        %932 = vrot.lane.b32.xlu0 %v819, 122
        %v933 = vpop.permute.xlu0 %932
        %934 = vrot.lane.b32.xlu0 %v820, 122
        %v935 = vpop.permute.xlu0 %934
        %v941 = vadd.f32 %v921, %v927
        %v942 = vadd.f32 %v922, %v929
        %v943 = vadd.f32 %v923, %v931
        %v944 = vadd.f32 %v924, %v933
        %v945 = vadd.f32 %v925, %v935
        %946 = vrot.lane.b32.xlu0 %v816, 121
        %v947 = vpop.permute.xlu0 %946
        %948 = vrot.lane.b32.xlu0 %v817, 121
        %v949 = vpop.permute.xlu0 %948
        %950 = vrot.lane.b32.xlu0 %v818, 121
        %v951 = vpop.permute.xlu0 %950
        %952 = vrot.lane.b32.xlu0 %v819, 121
        %v953 = vpop.permute.xlu0 %952
        %954 = vrot.lane.b32.xlu0 %v820, 121
        %v955 = vpop.permute.xlu0 %954
        %v961 = vadd.f32 %v941, %v947
        %v962 = vadd.f32 %v942, %v949
        %v963 = vadd.f32 %v943, %v951
        %v964 = vadd.f32 %v944, %v953
        %v965 = vadd.f32 %v945, %v955
        %966 = vrot.lane.b32.xlu0 %v816, 120
        %v967 = vpop.permute.xlu0 %966
        %968 = vrot.lane.b32.xlu0 %v817, 120
        %v969 = vpop.permute.xlu0 %968
        %970 = vrot.lane.b32.xlu0 %v818, 120
        %v971 = vpop.permute.xlu0 %970
        %972 = vrot.lane.b32.xlu0 %v819, 120
        %v973 = vpop.permute.xlu0 %972
        %974 = vrot.lane.b32.xlu0 %v820, 120
        %v975 = vpop.permute.xlu0 %974
        %v981 = vadd.f32 %v961, %v967
        %v982 = vadd.f32 %v962, %v969
        %v983 = vadd.f32 %v963, %v971
        %v984 = vadd.f32 %v964, %v973
        %v985 = vadd.f32 %v965, %v975
        %v991 = vrot.slane %v981, 1
        %v992 = vrot.slane %v982, 1
        %v993 = vsel %vm385, %v991, %v992
        %v994 = vrot.slane %v983, 1
        %v995 = vsel %vm385, %v992, %v994
        %v996 = vrot.slane %v984, 1
        %v997 = vsel %vm385, %v994, %v996
        %v998 = vrot.slane %v985, 1
        %v999 = vsel %vm385, %v996, %v998
        %v1004 = vadd.f32 %v981, %v993
        %v1005 = vadd.f32 %v982, %v995
        %v1006 = vadd.f32 %v983, %v997
        %v1007 = vadd.f32 %v984, %v999
        %v1008 = vrot.slane %v981, 2
        %v1009 = vrot.slane %v982, 2
        %v1010 = vsel %vm403, %v1008, %v1009
        %v1011 = vrot.slane %v983, 2
        %v1012 = vsel %vm403, %v1009, %v1011
        %v1013 = vrot.slane %v984, 2
        %v1014 = vsel %vm403, %v1011, %v1013
        %v1015 = vrot.slane %v985, 2
        %v1016 = vsel %vm403, %v1013, %v1015
        %v1021 = vadd.f32 %v1004, %v1010
        %v1022 = vadd.f32 %v1005, %v1012
        %v1023 = vadd.f32 %v1006, %v1014
        %v1024 = vadd.f32 %v1007, %v1016
        %v1025 = vrot.slane %v981, 3
        %v1026 = vrot.slane %v982, 3
        %v1027 = vsel %vm421, %v1025, %v1026
        %v1028 = vrot.slane %v983, 3
        %v1029 = vsel %vm421, %v1026, %v1028
        %v1030 = vrot.slane %v984, 3
        %v1031 = vsel %vm421, %v1028, %v1030
        %v1032 = vrot.slane %v985, 3
        %v1033 = vsel %vm421, %v1030, %v1032
        %v1038 = vadd.f32 %v1021, %v1027
        %v1039 = vadd.f32 %v1022, %v1029
        %v1040 = vadd.f32 %v1023, %v1031
        %v1041 = vadd.f32 %v1024, %v1033
        %v1042 = vrot.slane %v981, 4
        %v1043 = vrot.slane %v982, 4
        %v1044 = vsel %vm439, %v1042, %v1043
        %v1045 = vrot.slane %v983, 4
        %v1046 = vsel %vm439, %v1043, %v1045
        %v1047 = vrot.slane %v984, 4
        %v1048 = vsel %vm439, %v1045, %v1047
        %v1049 = vrot.slane %v985, 4
        %v1050 = vsel %vm439, %v1047, %v1049
        %v1055 = vadd.f32 %v1038, %v1044
        %v1056 = vadd.f32 %v1039, %v1046
        %v1057 = vadd.f32 %v1040, %v1048
        %v1058 = vadd.f32 %v1041, %v1050
        %v1059 = vrot.slane %v981, 5
        %v1060 = vrot.slane %v982, 5
        %v1061 = vsel %vm457, %v1059, %v1060
        %v1062 = vrot.slane %v983, 5
        %v1063 = vsel %vm457, %v1060, %v1062
        %v1064 = vrot.slane %v984, 5
        %v1065 = vsel %vm457, %v1062, %v1064
        %v1066 = vrot.slane %v985, 5
        %v1067 = vsel %vm457, %v1064, %v1066
        %v1072 = vadd.f32 %v1055, %v1061
        %v1073 = vadd.f32 %v1056, %v1063
        %v1074 = vadd.f32 %v1057, %v1065
        %v1075 = vadd.f32 %v1058, %v1067
        %v1076 = vrot.slane %v981, 6
        %v1077 = vrot.slane %v982, 6
        %v1078 = vsel %vm475, %v1076, %v1077
        %v1079 = vrot.slane %v983, 6
        %v1080 = vsel %vm475, %v1077, %v1079
        %v1081 = vrot.slane %v984, 6
        %v1082 = vsel %vm475, %v1079, %v1081
        %v1083 = vrot.slane %v985, 6
        %v1084 = vsel %vm475, %v1081, %v1083
        %v1089 = vadd.f32 %v1072, %v1078
        %v1090 = vadd.f32 %v1073, %v1080
        %v1091 = vadd.f32 %v1074, %v1082
        %v1092 = vadd.f32 %v1075, %v1084
        %v1093 = vrot.slane %v981, 7
        %v1094 = vrot.slane %v982, 7
        %v1095 = vsel %vm493, %v1093, %v1094
        %v1096 = vrot.slane %v983, 7
        %v1097 = vsel %vm493, %v1094, %v1096
        %v1098 = vrot.slane %v984, 7
        %v1099 = vsel %vm493, %v1096, %v1098
        %v1100 = vrot.slane %v985, 7
        %v1101 = vsel %vm493, %v1098, %v1100
        %v1106 = vadd.f32 %v1089, %v1095
        %v1107 = vadd.f32 %v1090, %v1097
        %v1108 = vadd.f32 %v1091, %v1099
        %v1109 = vadd.f32 %v1092, %v1101
        %v1110 = vadd.f32 %v1106, %v982
        %v1111 = vadd.f32 %v1107, %v983
        %v1112 = vadd.f32 %v1108, %v984
        %v1113 = vadd.f32 %v1109, %v985
        %v1114 = vmul.f32 %v1110, 0.012345679
        %v1115 = vmul.f32 %v1111, 0.012345679
        %v1116 = vmul.f32 %v1112, 0.012345679
        %v1117 = vmul.f32 %v1113, 0.012345679
        %v1118 = vmul.f32 %v210, %v210
        %v1119 = vmul.f32 %v211, %v211
        %v1120 = vmul.f32 %v212, %v212
        %v1121 = vmul.f32 %v213, %v213
        %v1122 = vmul.f32 %v214, %v214
        %1128 = vrot.lane.b32.xlu0 %v1118, 127
        %v1129 = vpop.permute.xlu0 %1128
        %1130 = vrot.lane.b32.xlu0 %v1119, 127
        %v1131 = vpop.permute.xlu0 %1130
        %1132 = vrot.lane.b32.xlu0 %v1120, 127
        %v1133 = vpop.permute.xlu0 %1132
        %1134 = vrot.lane.b32.xlu0 %v1121, 127
        %v1135 = vpop.permute.xlu0 %1134
        %1136 = vrot.lane.b32.xlu0 %v1122, 127
        %v1137 = vpop.permute.xlu0 %1136
        %v1143 = vadd.f32 %v1118, %v1129
        %v1144 = vadd.f32 %v1119, %v1131
        %v1145 = vadd.f32 %v1120, %v1133
        %v1146 = vadd.f32 %v1121, %v1135
        %v1147 = vadd.f32 %v1122, %v1137
        %1148 = vrot.lane.b32.xlu0 %v1118, 126
        %v1149 = vpop.permute.xlu0 %1148
        %1150 = vrot.lane.b32.xlu0 %v1119, 126
        %v1151 = vpop.permute.xlu0 %1150
        %1152 = vrot.lane.b32.xlu0 %v1120, 126
        %v1153 = vpop.permute.xlu0 %1152
        %1154 = vrot.lane.b32.xlu0 %v1121, 126
        %v1155 = vpop.permute.xlu0 %1154
        %1156 = vrot.lane.b32.xlu0 %v1122, 126
        %v1157 = vpop.permute.xlu0 %1156
        %v1163 = vadd.f32 %v1143, %v1149
        %v1164 = vadd.f32 %v1144, %v1151
        %v1165 = vadd.f32 %v1145, %v1153
        %v1166 = vadd.f32 %v1146, %v1155
        %v1167 = vadd.f32 %v1147, %v1157
        %1168 = vrot.lane.b32.xlu0 %v1118, 125
        %v1169 = vpop.permute.xlu0 %1168
        %1170 = vrot.lane.b32.xlu0 %v1119, 125
        %v1171 = vpop.permute.xlu0 %1170
        %1172 = vrot.lane.b32.xlu0 %v1120, 125
        %v1173 = vpop.permute.xlu0 %1172
        %1174 = vrot.lane.b32.xlu0 %v1121, 125
        %v1175 = vpop.permute.xlu0 %1174
        %1176 = vrot.lane.b32.xlu0 %v1122, 125
        %v1177 = vpop.permute.xlu0 %1176
        %v1183 = vadd.f32 %v1163, %v1169
        %v1184 = vadd.f32 %v1164, %v1171
        %v1185 = vadd.f32 %v1165, %v1173
        %v1186 = vadd.f32 %v1166, %v1175
        %v1187 = vadd.f32 %v1167, %v1177
        %1188 = vrot.lane.b32.xlu0 %v1118, 124
        %v1189 = vpop.permute.xlu0 %1188
        %1190 = vrot.lane.b32.xlu0 %v1119, 124
        %v1191 = vpop.permute.xlu0 %1190
        %1192 = vrot.lane.b32.xlu0 %v1120, 124
        %v1193 = vpop.permute.xlu0 %1192
        %1194 = vrot.lane.b32.xlu0 %v1121, 124
        %v1195 = vpop.permute.xlu0 %1194
        %1196 = vrot.lane.b32.xlu0 %v1122, 124
        %v1197 = vpop.permute.xlu0 %1196
        %v1203 = vadd.f32 %v1183, %v1189
        %v1204 = vadd.f32 %v1184, %v1191
        %v1205 = vadd.f32 %v1185, %v1193
        %v1206 = vadd.f32 %v1186, %v1195
        %v1207 = vadd.f32 %v1187, %v1197
        %1208 = vrot.lane.b32.xlu0 %v1118, 123
        %v1209 = vpop.permute.xlu0 %1208
        %1210 = vrot.lane.b32.xlu0 %v1119, 123
        %v1211 = vpop.permute.xlu0 %1210
        %1212 = vrot.lane.b32.xlu0 %v1120, 123
        %v1213 = vpop.permute.xlu0 %1212
        %1214 = vrot.lane.b32.xlu0 %v1121, 123
        %v1215 = vpop.permute.xlu0 %1214
        %1216 = vrot.lane.b32.xlu0 %v1122, 123
        %v1217 = vpop.permute.xlu0 %1216
        %v1223 = vadd.f32 %v1203, %v1209
        %v1224 = vadd.f32 %v1204, %v1211
        %v1225 = vadd.f32 %v1205, %v1213
        %v1226 = vadd.f32 %v1206, %v1215
        %v1227 = vadd.f32 %v1207, %v1217
        %1228 = vrot.lane.b32.xlu0 %v1118, 122
        %v1229 = vpop.permute.xlu0 %1228
        %1230 = vrot.lane.b32.xlu0 %v1119, 122
        %v1231 = vpop.permute.xlu0 %1230
        %1232 = vrot.lane.b32.xlu0 %v1120, 122
        %v1233 = vpop.permute.xlu0 %1232
        %1234 = vrot.lane.b32.xlu0 %v1121, 122
        %v1235 = vpop.permute.xlu0 %1234
        %1236 = vrot.lane.b32.xlu0 %v1122, 122
        %v1237 = vpop.permute.xlu0 %1236
        %v1243 = vadd.f32 %v1223, %v1229
        %v1244 = vadd.f32 %v1224, %v1231
        %v1245 = vadd.f32 %v1225, %v1233
        %v1246 = vadd.f32 %v1226, %v1235
        %v1247 = vadd.f32 %v1227, %v1237
        %1248 = vrot.lane.b32.xlu0 %v1118, 121
        %v1249 = vpop.permute.xlu0 %1248
        %1250 = vrot.lane.b32.xlu0 %v1119, 121
        %v1251 = vpop.permute.xlu0 %1250
        %1252 = vrot.lane.b32.xlu0 %v1120, 121
        %v1253 = vpop.permute.xlu0 %1252
        %1254 = vrot.lane.b32.xlu0 %v1121, 121
        %v1255 = vpop.permute.xlu0 %1254
        %1256 = vrot.lane.b32.xlu0 %v1122, 121
        %v1257 = vpop.permute.xlu0 %1256
        %v1263 = vadd.f32 %v1243, %v1249
        %v1264 = vadd.f32 %v1244, %v1251
        %v1265 = vadd.f32 %v1245, %v1253
        %v1266 = vadd.f32 %v1246, %v1255
        %v1267 = vadd.f32 %v1247, %v1257
        %1268 = vrot.lane.b32.xlu0 %v1118, 120
        %v1269 = vpop.permute.xlu0 %1268
        %1270 = vrot.lane.b32.xlu0 %v1119, 120
        %v1271 = vpop.permute.xlu0 %1270
        %1272 = vrot.lane.b32.xlu0 %v1120, 120
        %v1273 = vpop.permute.xlu0 %1272
        %1274 = vrot.lane.b32.xlu0 %v1121, 120
        %v1275 = vpop.permute.xlu0 %1274
        %1276 = vrot.lane.b32.xlu0 %v1122, 120
        %v1277 = vpop.permute.xlu0 %1276
        %v1283 = vadd.f32 %v1263, %v1269
        %v1284 = vadd.f32 %v1264, %v1271
        %v1285 = vadd.f32 %v1265, %v1273
        %v1286 = vadd.f32 %v1266, %v1275
        %v1287 = vadd.f32 %v1267, %v1277
        %v1293 = vrot.slane %v1283, 1
        %v1294 = vrot.slane %v1284, 1
        %v1295 = vsel %vm385, %v1293, %v1294
        %v1296 = vrot.slane %v1285, 1
        %v1297 = vsel %vm385, %v1294, %v1296
        %v1298 = vrot.slane %v1286, 1
        %v1299 = vsel %vm385, %v1296, %v1298
        %v1300 = vrot.slane %v1287, 1
        %v1301 = vsel %vm385, %v1298, %v1300
        %v1306 = vadd.f32 %v1283, %v1295
        %v1307 = vadd.f32 %v1284, %v1297
        %v1308 = vadd.f32 %v1285, %v1299
        %v1309 = vadd.f32 %v1286, %v1301
        %v1310 = vrot.slane %v1283, 2
        %v1311 = vrot.slane %v1284, 2
        %v1312 = vsel %vm403, %v1310, %v1311
        %v1313 = vrot.slane %v1285, 2
        %v1314 = vsel %vm403, %v1311, %v1313
        %v1315 = vrot.slane %v1286, 2
        %v1316 = vsel %vm403, %v1313, %v1315
        %v1317 = vrot.slane %v1287, 2
        %v1318 = vsel %vm403, %v1315, %v1317
        %v1323 = vadd.f32 %v1306, %v1312
        %v1324 = vadd.f32 %v1307, %v1314
        %v1325 = vadd.f32 %v1308, %v1316
        %v1326 = vadd.f32 %v1309, %v1318
        %v1327 = vrot.slane %v1283, 3
        %v1328 = vrot.slane %v1284, 3
        %v1329 = vsel %vm421, %v1327, %v1328
        %v1330 = vrot.slane %v1285, 3
        %v1331 = vsel %vm421, %v1328, %v1330
        %v1332 = vrot.slane %v1286, 3
        %v1333 = vsel %vm421, %v1330, %v1332
        %v1334 = vrot.slane %v1287, 3
        %v1335 = vsel %vm421, %v1332, %v1334
        %v1340 = vadd.f32 %v1323, %v1329
        %v1341 = vadd.f32 %v1324, %v1331
        %v1342 = vadd.f32 %v1325, %v1333
        %v1343 = vadd.f32 %v1326, %v1335
        %v1344 = vrot.slane %v1283, 4
        %v1345 = vrot.slane %v1284, 4
        %v1346 = vsel %vm439, %v1344, %v1345
        %v1347 = vrot.slane %v1285, 4
        %v1348 = vsel %vm439, %v1345, %v1347
        %v1349 = vrot.slane %v1286, 4
        %v1350 = vsel %vm439, %v1347, %v1349
        %v1351 = vrot.slane %v1287, 4
        %v1352 = vsel %vm439, %v1349, %v1351
        %v1357 = vadd.f32 %v1340, %v1346
        %v1358 = vadd.f32 %v1341, %v1348
        %v1359 = vadd.f32 %v1342, %v1350
        %v1360 = vadd.f32 %v1343, %v1352
        %v1361 = vrot.slane %v1283, 5
        %v1362 = vrot.slane %v1284, 5
        %v1363 = vsel %vm457, %v1361, %v1362
        %v1364 = vrot.slane %v1285, 5
        %v1365 = vsel %vm457, %v1362, %v1364
        %v1366 = vrot.slane %v1286, 5
        %v1367 = vsel %vm457, %v1364, %v1366
        %v1368 = vrot.slane %v1287, 5
        %v1369 = vsel %vm457, %v1366, %v1368
        %v1374 = vadd.f32 %v1357, %v1363
        %v1375 = vadd.f32 %v1358, %v1365
        %v1376 = vadd.f32 %v1359, %v1367
        %v1377 = vadd.f32 %v1360, %v1369
        %v1378 = vrot.slane %v1283, 6
        %v1379 = vrot.slane %v1284, 6
        %v1380 = vsel %vm475, %v1378, %v1379
        %v1381 = vrot.slane %v1285, 6
        %v1382 = vsel %vm475, %v1379, %v1381
        %v1383 = vrot.slane %v1286, 6
        %v1384 = vsel %vm475, %v1381, %v1383
        %v1385 = vrot.slane %v1287, 6
        %v1386 = vsel %vm475, %v1383, %v1385
        %v1391 = vadd.f32 %v1374, %v1380
        %v1392 = vadd.f32 %v1375, %v1382
        %v1393 = vadd.f32 %v1376, %v1384
        %v1394 = vadd.f32 %v1377, %v1386
        %v1395 = vrot.slane %v1283, 7
        %v1396 = vrot.slane %v1284, 7
        %v1397 = vsel %vm493, %v1395, %v1396
        %v1398 = vrot.slane %v1285, 7
        %v1399 = vsel %vm493, %v1396, %v1398
        %v1400 = vrot.slane %v1286, 7
        %v1401 = vsel %vm493, %v1398, %v1400
        %v1402 = vrot.slane %v1287, 7
        %v1403 = vsel %vm493, %v1400, %v1402
        %v1408 = vadd.f32 %v1391, %v1397
        %v1409 = vadd.f32 %v1392, %v1399
        %v1410 = vadd.f32 %v1393, %v1401
        %v1411 = vadd.f32 %v1394, %v1403
        %v1412 = vadd.f32 %v1408, %v1284
        %v1413 = vadd.f32 %v1409, %v1285
        %v1414 = vadd.f32 %v1410, %v1286
        %v1415 = vadd.f32 %v1411, %v1287
        %v1416 = vmul.f32 %v1412, 0.012345679
        %v1417 = vmul.f32 %v1413, 0.012345679
        %v1418 = vmul.f32 %v1414, 0.012345679
        %v1419 = vmul.f32 %v1415, 0.012345679
        %v1420 = vmul.f32 %v205, %v210
        %v1421 = vmul.f32 %v206, %v211
        %v1422 = vmul.f32 %v207, %v212
        %v1423 = vmul.f32 %v208, %v213
        %v1424 = vmul.f32 %v209, %v214
        %1430 = vrot.lane.b32.xlu0 %v1420, 127
        %v1431 = vpop.permute.xlu0 %1430
        %1432 = vrot.lane.b32.xlu0 %v1421, 127
        %v1433 = vpop.permute.xlu0 %1432
        %1434 = vrot.lane.b32.xlu0 %v1422, 127
        %v1435 = vpop.permute.xlu0 %1434
        %1436 = vrot.lane.b32.xlu0 %v1423, 127
        %v1437 = vpop.permute.xlu0 %1436
        %1438 = vrot.lane.b32.xlu0 %v1424, 127
        %v1439 = vpop.permute.xlu0 %1438
        %v1445 = vadd.f32 %v1420, %v1431
        %v1446 = vadd.f32 %v1421, %v1433
        %v1447 = vadd.f32 %v1422, %v1435
        %v1448 = vadd.f32 %v1423, %v1437
        %v1449 = vadd.f32 %v1424, %v1439
        %1450 = vrot.lane.b32.xlu0 %v1420, 126
        %v1451 = vpop.permute.xlu0 %1450
        %1452 = vrot.lane.b32.xlu0 %v1421, 126
        %v1453 = vpop.permute.xlu0 %1452
        %1454 = vrot.lane.b32.xlu0 %v1422, 126
        %v1455 = vpop.permute.xlu0 %1454
        %1456 = vrot.lane.b32.xlu0 %v1423, 126
        %v1457 = vpop.permute.xlu0 %1456
        %1458 = vrot.lane.b32.xlu0 %v1424, 126
        %v1459 = vpop.permute.xlu0 %1458
        %v1465 = vadd.f32 %v1445, %v1451
        %v1466 = vadd.f32 %v1446, %v1453
        %v1467 = vadd.f32 %v1447, %v1455
        %v1468 = vadd.f32 %v1448, %v1457
        %v1469 = vadd.f32 %v1449, %v1459
        %1470 = vrot.lane.b32.xlu0 %v1420, 125
        %v1471 = vpop.permute.xlu0 %1470
        %1472 = vrot.lane.b32.xlu0 %v1421, 125
        %v1473 = vpop.permute.xlu0 %1472
        %1474 = vrot.lane.b32.xlu0 %v1422, 125
        %v1475 = vpop.permute.xlu0 %1474
        %1476 = vrot.lane.b32.xlu0 %v1423, 125
        %v1477 = vpop.permute.xlu0 %1476
        %1478 = vrot.lane.b32.xlu0 %v1424, 125
        %v1479 = vpop.permute.xlu0 %1478
        %v1485 = vadd.f32 %v1465, %v1471
        %v1486 = vadd.f32 %v1466, %v1473
        %v1487 = vadd.f32 %v1467, %v1475
        %v1488 = vadd.f32 %v1468, %v1477
        %v1489 = vadd.f32 %v1469, %v1479
        %1490 = vrot.lane.b32.xlu0 %v1420, 124
        %v1491 = vpop.permute.xlu0 %1490
        %1492 = vrot.lane.b32.xlu0 %v1421, 124
        %v1493 = vpop.permute.xlu0 %1492
        %1494 = vrot.lane.b32.xlu0 %v1422, 124
        %v1495 = vpop.permute.xlu0 %1494
        %1496 = vrot.lane.b32.xlu0 %v1423, 124
        %v1497 = vpop.permute.xlu0 %1496
        %1498 = vrot.lane.b32.xlu0 %v1424, 124
        %v1499 = vpop.permute.xlu0 %1498
        %v1505 = vadd.f32 %v1485, %v1491
        %v1506 = vadd.f32 %v1486, %v1493
        %v1507 = vadd.f32 %v1487, %v1495
        %v1508 = vadd.f32 %v1488, %v1497
        %v1509 = vadd.f32 %v1489, %v1499
        %1510 = vrot.lane.b32.xlu0 %v1420, 123
        %v1511 = vpop.permute.xlu0 %1510
        %1512 = vrot.lane.b32.xlu0 %v1421, 123
        %v1513 = vpop.permute.xlu0 %1512
        %1514 = vrot.lane.b32.xlu0 %v1422, 123
        %v1515 = vpop.permute.xlu0 %1514
        %1516 = vrot.lane.b32.xlu0 %v1423, 123
        %v1517 = vpop.permute.xlu0 %1516
        %1518 = vrot.lane.b32.xlu0 %v1424, 123
        %v1519 = vpop.permute.xlu0 %1518
        %v1525 = vadd.f32 %v1505, %v1511
        %v1526 = vadd.f32 %v1506, %v1513
        %v1527 = vadd.f32 %v1507, %v1515
        %v1528 = vadd.f32 %v1508, %v1517
        %v1529 = vadd.f32 %v1509, %v1519
        %1530 = vrot.lane.b32.xlu0 %v1420, 122
        %v1531 = vpop.permute.xlu0 %1530
        %1532 = vrot.lane.b32.xlu0 %v1421, 122
        %v1533 = vpop.permute.xlu0 %1532
        %1534 = vrot.lane.b32.xlu0 %v1422, 122
        %v1535 = vpop.permute.xlu0 %1534
        %1536 = vrot.lane.b32.xlu0 %v1423, 122
        %v1537 = vpop.permute.xlu0 %1536
        %1538 = vrot.lane.b32.xlu0 %v1424, 122
        %v1539 = vpop.permute.xlu0 %1538
        %v1545 = vadd.f32 %v1525, %v1531
        %v1546 = vadd.f32 %v1526, %v1533
        %v1547 = vadd.f32 %v1527, %v1535
        %v1548 = vadd.f32 %v1528, %v1537
        %v1549 = vadd.f32 %v1529, %v1539
        %1550 = vrot.lane.b32.xlu0 %v1420, 121
        %v1551 = vpop.permute.xlu0 %1550
        %1552 = vrot.lane.b32.xlu0 %v1421, 121
        %v1553 = vpop.permute.xlu0 %1552
        %1554 = vrot.lane.b32.xlu0 %v1422, 121
        %v1555 = vpop.permute.xlu0 %1554
        %1556 = vrot.lane.b32.xlu0 %v1423, 121
        %v1557 = vpop.permute.xlu0 %1556
        %1558 = vrot.lane.b32.xlu0 %v1424, 121
        %v1559 = vpop.permute.xlu0 %1558
        %v1565 = vadd.f32 %v1545, %v1551
        %v1566 = vadd.f32 %v1546, %v1553
        %v1567 = vadd.f32 %v1547, %v1555
        %v1568 = vadd.f32 %v1548, %v1557
        %v1569 = vadd.f32 %v1549, %v1559
        %1570 = vrot.lane.b32.xlu0 %v1420, 120
        %v1571 = vpop.permute.xlu0 %1570
        %1572 = vrot.lane.b32.xlu0 %v1421, 120
        %v1573 = vpop.permute.xlu0 %1572
        %1574 = vrot.lane.b32.xlu0 %v1422, 120
        %v1575 = vpop.permute.xlu0 %1574
        %1576 = vrot.lane.b32.xlu0 %v1423, 120
        %v1577 = vpop.permute.xlu0 %1576
        %1578 = vrot.lane.b32.xlu0 %v1424, 120
        %v1579 = vpop.permute.xlu0 %1578
        %v1585 = vadd.f32 %v1565, %v1571
        %v1586 = vadd.f32 %v1566, %v1573
        %v1587 = vadd.f32 %v1567, %v1575
        %v1588 = vadd.f32 %v1568, %v1577
        %v1589 = vadd.f32 %v1569, %v1579
        %v1595 = vrot.slane %v1585, 1
        %v1596 = vrot.slane %v1586, 1
        %v1597 = vsel %vm385, %v1595, %v1596
        %v1598 = vrot.slane %v1587, 1
        %v1599 = vsel %vm385, %v1596, %v1598
        %v1600 = vrot.slane %v1588, 1
        %v1601 = vsel %vm385, %v1598, %v1600
        %v1602 = vrot.slane %v1589, 1
        %v1603 = vsel %vm385, %v1600, %v1602
        %v1608 = vadd.f32 %v1585, %v1597
        %v1609 = vadd.f32 %v1586, %v1599
        %v1610 = vadd.f32 %v1587, %v1601
        %v1611 = vadd.f32 %v1588, %v1603
        %v1612 = vrot.slane %v1585, 2
        %v1613 = vrot.slane %v1586, 2
        %v1614 = vsel %vm403, %v1612, %v1613
        %v1615 = vrot.slane %v1587, 2
        %v1616 = vsel %vm403, %v1613, %v1615
        %v1617 = vrot.slane %v1588, 2
        %v1618 = vsel %vm403, %v1615, %v1617
        %v1619 = vrot.slane %v1589, 2
        %v1620 = vsel %vm403, %v1617, %v1619
        %v1625 = vadd.f32 %v1608, %v1614
        %v1626 = vadd.f32 %v1609, %v1616
        %v1627 = vadd.f32 %v1610, %v1618
        %v1628 = vadd.f32 %v1611, %v1620
        %v1629 = vrot.slane %v1585, 3
        %v1630 = vrot.slane %v1586, 3
        %v1631 = vsel %vm421, %v1629, %v1630
        %v1632 = vrot.slane %v1587, 3
        %v1633 = vsel %vm421, %v1630, %v1632
        %v1634 = vrot.slane %v1588, 3
        %v1635 = vsel %vm421, %v1632, %v1634
        %v1636 = vrot.slane %v1589, 3
        %v1637 = vsel %vm421, %v1634, %v1636
        %v1642 = vadd.f32 %v1625, %v1631
        %v1643 = vadd.f32 %v1626, %v1633
        %v1644 = vadd.f32 %v1627, %v1635
        %v1645 = vadd.f32 %v1628, %v1637
        %v1646 = vrot.slane %v1585, 4
        %v1647 = vrot.slane %v1586, 4
        %v1648 = vsel %vm439, %v1646, %v1647
        %v1649 = vrot.slane %v1587, 4
        %v1650 = vsel %vm439, %v1647, %v1649
        %v1651 = vrot.slane %v1588, 4
        %v1652 = vsel %vm439, %v1649, %v1651
        %v1653 = vrot.slane %v1589, 4
        %v1654 = vsel %vm439, %v1651, %v1653
        %v1659 = vadd.f32 %v1642, %v1648
        %v1660 = vadd.f32 %v1643, %v1650
        %v1661 = vadd.f32 %v1644, %v1652
        %v1662 = vadd.f32 %v1645, %v1654
        %v1663 = vrot.slane %v1585, 5
        %v1664 = vrot.slane %v1586, 5
        %v1665 = vsel %vm457, %v1663, %v1664
        %v1666 = vrot.slane %v1587, 5
        %v1667 = vsel %vm457, %v1664, %v1666
        %v1668 = vrot.slane %v1588, 5
        %v1669 = vsel %vm457, %v1666, %v1668
        %v1670 = vrot.slane %v1589, 5
        %v1671 = vsel %vm457, %v1668, %v1670
        %v1676 = vadd.f32 %v1659, %v1665
        %v1677 = vadd.f32 %v1660, %v1667
        %v1678 = vadd.f32 %v1661, %v1669
        %v1679 = vadd.f32 %v1662, %v1671
        %v1680 = vrot.slane %v1585, 6
        %v1681 = vrot.slane %v1586, 6
        %v1682 = vsel %vm475, %v1680, %v1681
        %v1683 = vrot.slane %v1587, 6
        %v1684 = vsel %vm475, %v1681, %v1683
        %v1685 = vrot.slane %v1588, 6
        %v1686 = vsel %vm475, %v1683, %v1685
        %v1687 = vrot.slane %v1589, 6
        %v1688 = vsel %vm475, %v1685, %v1687
        %v1693 = vadd.f32 %v1676, %v1682
        %v1694 = vadd.f32 %v1677, %v1684
        %v1695 = vadd.f32 %v1678, %v1686
        %v1696 = vadd.f32 %v1679, %v1688
        %v1697 = vrot.slane %v1585, 7
        %v1698 = vrot.slane %v1586, 7
        %v1699 = vsel %vm493, %v1697, %v1698
        %v1700 = vrot.slane %v1587, 7
        %v1701 = vsel %vm493, %v1698, %v1700
        %v1702 = vrot.slane %v1588, 7
        %v1703 = vsel %vm493, %v1700, %v1702
        %v1704 = vrot.slane %v1589, 7
        %v1705 = vsel %vm493, %v1702, %v1704
        %v1710 = vadd.f32 %v1693, %v1699
        %v1711 = vadd.f32 %v1694, %v1701
        %v1712 = vadd.f32 %v1695, %v1703
        %v1713 = vadd.f32 %v1696, %v1705
        %v1714 = vadd.f32 %v1710, %v1586
        %v1715 = vadd.f32 %v1711, %v1587
        %v1716 = vadd.f32 %v1712, %v1588
        %v1717 = vadd.f32 %v1713, %v1589
        %v1718 = vmul.f32 %v1714, 0.012345679
        %v1719 = vmul.f32 %v1715, 0.012345679
        %v1720 = vmul.f32 %v1716, 0.012345679
        %v1721 = vmul.f32 %v1717, 0.012345679
        %s1722 = sld [smem:[#allocation2]]
        %s1723 = sld [smem:[#allocation2 + $0x1]]
        %v1724 = vmul.f32 %v515, %v515
        %v1725 = vmul.f32 %v516, %v516
        %v1726 = vmul.f32 %v517, %v517
        %v1727 = vmul.f32 %v518, %v518
        %v1728 = vsub.f32 %v1114, %v1724
        %v1729 = vsub.f32 %v1115, %v1725
        %v1730 = vsub.f32 %v1116, %v1726
        %v1731 = vsub.f32 %v1117, %v1727
        %v1732 = vmul.f32 %v812, %v812
        %v1733 = vmul.f32 %v813, %v813
        %v1734 = vmul.f32 %v814, %v814
        %v1735 = vmul.f32 %v815, %v815
        %v1736 = vsub.f32 %v1416, %v1732
        %v1737 = vsub.f32 %v1417, %v1733
        %v1738 = vsub.f32 %v1418, %v1734
        %v1739 = vsub.f32 %v1419, %v1735
        %v1740 = vmul.f32 %v515, %v812
        %v1741 = vmul.f32 %v516, %v813
        %v1742 = vmul.f32 %v517, %v814
        %v1743 = vmul.f32 %v518, %v815
        %v1744 = vsub.f32 %v1718, %v1740
        %v1745 = vsub.f32 %v1719, %v1741
        %v1746 = vsub.f32 %v1720, %v1742
        %v1747 = vsub.f32 %v1721, %v1743
        %v1748 = vmul.f32 %v515, 2.0
        %v1749 = vmul.f32 %v516, 2.0
        %v1750 = vmul.f32 %v517, 2.0
        %v1751 = vmul.f32 %v518, 2.0
        %v1752 = vmul.f32 %v1748, %v812
        %v1753 = vmul.f32 %v1749, %v813
        %v1754 = vmul.f32 %v1750, %v814
        %v1755 = vmul.f32 %v1751, %v815
        %v1756 = vstv %s1722
        %v1757 = vadd.f32 %v1752, %v1756
        %v1758 = vadd.f32 %v1753, %v1756
        %v1759 = vadd.f32 %v1754, %v1756
        %v1760 = vadd.f32 %v1755, %v1756
        %v1761 = vmul.f32 %v1744, 2.0
        %v1762 = vmul.f32 %v1745, 2.0
        %v1763 = vmul.f32 %v1746, 2.0
        %v1764 = vmul.f32 %v1747, 2.0
        %v1765 = vstv %s1723
        %v1766 = vadd.f32 %v1761, %v1765
        %v1767 = vadd.f32 %v1762, %v1765
        %v1768 = vadd.f32 %v1763, %v1765
        %v1769 = vadd.f32 %v1764, %v1765
        %v1770 = vmul.f32 %v1757, %v1766
        %v1771 = vmul.f32 %v1758, %v1767
        %v1772 = vmul.f32 %v1759, %v1768
        %v1773 = vmul.f32 %v1760, %v1769
        %v1774 = vadd.f32 %v1724, %v1732
        %v1775 = vadd.f32 %v1725, %v1733
        %v1776 = vadd.f32 %v1726, %v1734
        %v1777 = vadd.f32 %v1727, %v1735
        %v1778 = vadd.f32 %v1774, %v1756
        %v1779 = vadd.f32 %v1775, %v1756
        %v1780 = vadd.f32 %v1776, %v1756
        %v1781 = vadd.f32 %v1777, %v1756
        %v1782 = vadd.f32 %v1728, %v1736
        %v1783 = vadd.f32 %v1729, %v1737
        %v1784 = vadd.f32 %v1730, %v1738
        %v1785 = vadd.f32 %v1731, %v1739
        %v1786 = vadd.f32 %v1782, %v1765
        %v1787 = vadd.f32 %v1783, %v1765
        %v1788 = vadd.f32 %v1784, %v1765
        %v1789 = vadd.f32 %v1785, %v1765
        %v1790 = vmul.f32 %v1778, %v1786
        %v1791 = vmul.f32 %v1779, %v1787
        %v1792 = vmul.f32 %v1780, %v1788
        %v1793 = vmul.f32 %v1781, %v1789
        %v1794 = vrcp.pop %v1790
        %v1795 = vmul.f32 %v1770, %v1794
        %v1796 = vrcp.pop %v1791
        %v1797 = vmul.f32 %v1771, %v1796
        %v1798 = vrcp.pop %v1792
        %v1799 = vmul.f32 %v1772, %v1798
        %v1800 = vrcp.pop %v1793
        %v1801 = vmul.f32 %v1773, %v1800
        %vm1802 = vcmask 261120
        %1803 = vst.msk [vmem:[%s204] sm:$0xff] %vm1802, %v1795
        %1804 = vst.msk [vmem:[%s204 + $0x8] sm:$0xff] %vm1802, %v1797
        %1805 = vst.msk [vmem:[%s204 + $0x10] sm:$0xff] %vm1802, %v1799
        %1806 = vst.msk [vmem:[%s204 + $0x18] sm:$0xff] %vm1802, %v1801
        %p1807 = scmp.lt.s32.totalorder %s15, 1
        %s1808 = scalar_select %p1807, %s15, 1
        %s1809 = smul.addr %s1808, 4
        %s1810 = smul.addr %s1809, 8
        %s1811 = scalar_lea.vmem %s3, %s1810
        // Predicated region
        $region37: #{segmentation_forward.4} parent=31 // pred_check
          %p1812 = pneg %p106
        $region38: #{segmentation_forward.4} parent=31 // pred_check_branch
          %1814 = sbr.rel (%p1812) target = $region40
        $region39: #{segmentation_forward.4} parent=31 // pred_region
          _
        $region40: #{segmentation_forward.4} parent=31 // pred_fallthru
          _
      $region32: #{segmentation_forward.4} parent=5 // pred_fallthru
        _
      %p1815 = scmp.le.s32.totalorder 2, %s10
      // Predicated region
      $region41: #{segmentation_forward.4} parent=5 // pred_check
        %p1816 = pneg %p1815
      $region42: #{segmentation_forward.4} parent=5 // pred_check_branch
        %1818 = sbr.rel (%p1816) target = $region44
      $region43: #{segmentation_forward.4} parent=5 // pred_region
        %s1819 = ssub.s32 %s10, 2
        // Predicated region
        $region45: #{segmentation_forward.4} parent=43 // pred_check
          %p1820 = pneg %p112
        $region46: #{segmentation_forward.4} parent=43 // pred_check_branch
          %1822 = sbr.rel (%p1820) target = $region48
        $region47: #{segmentation_forward.4} parent=43 // pred_region
          %p1823 = scmp.lt.s32.totalorder %s16, 1
          %s1824 = scalar_select %p1823, %s16, 1
          %s1825 = smul.addr %s1824, 4
          %s1826 = smul.addr %s1825, 8
          %s1827 = scalar_lea.vmem %s3, %s1826
        $region48: #{segmentation_forward.4} parent=43 // pred_fallthru
          _
      $region44: #{segmentation_forward.4} parent=5 // pred_fallthru
        _
    $region6: #{segmentation_forward.4} parent=1 // loop_footer
      %s14 = sadd.s32 1, %s10
    $region7: #{segmentation_forward.4} parent=1 // loop_footer_branch
      %9 = sbr.rel target = $region3
    $region8: #{segmentation_forward.4} parent=1 // loop_exit
      _
    %1828 = vsyncpa [#allocation3], 1
    %s1829 = scalar_lea.sflag [#allocation3], 1
    %1830 = vsyncpa %s1829, 1

// kernel: segmentation_forward.5
$region0: #{segmentation_forward.5}
  #allocation0 [shape = 'u32[]', space=smem, size = 0x4, offset = 0x4, fixed_abs, tag = 'smem constant byte address 0x4 - core index']
  #allocation1 [shape = 'u32[144,128]{1,0:T(1,128)}', space=vmem, size = 0x12000, scoped, tag = 'internal scratch']
  %s0 = inlined_call_operand.vmem [shape: f32[2], index: 0, kind: input, shape index: {}]
  %s1 = inlined_call_operand.vmem [shape: f32[2,32,32], index: 1, kind: input, shape index: {}]
  %s2 = inlined_call_operand.hbm [shape: f32[2,4,32,32], index: 2, kind: input, shape index: {}, may-alias: {2,3}]
  %s3 = inlined_call_operand.hbm [shape: f32[2,4,32,32], index: 3, kind: output, shape index: {}, may-alias: {2,3}]
  %s4 = sld [smem:[#allocation0]]
  $region53: #{segmentation_forward.5} parent=0
    _
  %s6 = ssub.s32 1, %s4
  %s7 = scalar_select 0, %s6, %s4
  $region1: #{segmentation_forward.5} parent=0
    #allocation2 [shape = 'u8[512]{0}', space=smem, size = 0x200, scoped, tag = 'input window, operand 0, single buffered']
    #allocation3 [shape = 's32[2]{0}', space=sflag, size = 0x8, scoped, tag = 'scoped memory for segmentation_forward.5']
    #allocation4 [shape = 's32[2]{0}', space=sflag, size = 0x8, scoped, tag = 'scoped memory for segmentation_forward.5']
    #allocation5 [shape = 's32[2]{0}', space=sflag, size = 0x8, scoped, tag = 'scoped memory for segmentation_forward.5']
    #allocation6 [shape = 'u8[32768]{0}', space=vmem, size = 0x8000, scoped, tag = 'input window, operand 2']
    #allocation7 [shape = 'u8[32768]{0}', space=vmem, size = 0x8000, scoped, tag = 'output window, operand 0']
    %8 = vsyncpa [#allocation5], 0
    %9 = vsyncpa [#allocation3], 0
    %s10 = scalar_lea.sflag [#allocation3], 1
    %11 = vsyncpa %s10, 0
    %12 = vsyncpa [#allocation4], 0
    %s13 = scalar_lea.sflag [#allocation4], 1
    %14 = vsyncpa %s13, 0
    loop: start=0, step=1, limit=4
    $region2: #{segmentation_forward.5} parent=1 // loop_pre_header
      _
    $region3: #{segmentation_forward.5} parent=1 // loop_header
      %s16 = sphi 0, %s20
      %p17 = scmp.ge.s32.totalorder %s16, 4
      %s24 = sphi 0, %s24
      %s26 = sphi 0, %s24
      %s27 = sphi 0, %s26
      %s41 = sphi 0, %s27
      %s47 = sphi 0, %s49
      %s50 = sphi 0, %s47
      %s51 = sphi 0, %s50
      %s67 = sphi 0, %s51
      %s73 = sphi 0, %s75
      %s76 = sphi 0, %s73
      %s77 = sphi 0, %s76
      %s93 = sphi 0, %s77
      %s99 = sphi 0, %s101
      %s102 = sphi 0, %s99
      %s103 = sphi 0, %s102
      %s119 = sphi 0, %s103
    $region4: #{segmentation_forward.5} parent=1 // loop_header_branch
      %19 = sbr.rel (%p17) target = $region8
    $region5: #{segmentation_forward.5} parent=1 // loop_body
      %s21 = ssub.s32 %s16, 1
      %s22 = ssub.s32 %s16, 2
      %s23 = sadd.s32 %s16, 1
      %s25 = sadd.s32 %s24, 1
      %p28 = scmp.eq.s32.totalorder %s16, 1
      %p29 = scmp.ne.s32.totalorder %s24, %s26
      %p30 = scmp.eq.s32.totalorder %s16, 0
      %p31 = por %p29, %p30
      %p32 = scmp.ne.s32.totalorder %s24, %s26
      %p33 = scmp.eq.s32.totalorder %s21, 1
      %p34 = por %p32, %p33
      %p35 = scmp.ne.s32.totalorder %s26, %s27
      %p36 = scmp.eq.s32.totalorder %s21, 0
      %p37 = por %p35, %p36
      %p38 = scmp.ne.s32.totalorder %s26, %s27
      %p39 = scmp.eq.s32.totalorder %s22, 1
      %p40 = por %p38, %p39
      %p42 = scmp.ne.s32.totalorder %s27, %s41
      %p43 = scmp.eq.s32.totalorder %s22, 0
      %p44 = por %p42, %p43
      %s45 = ssub.s32 %s16, %s23
      %p46 = scmp.eq.s32.totalorder %s45, 0
      %s48 = sadd.s32 %s47, 1
      %s49 = scalar_select %p46, %s47, %s48
      %p52 = pneg %p46
      %p53 = scmp.eq.s32.totalorder %s16, 1
      %p54 = por %p52, %p53
      %p55 = scmp.ne.s32.totalorder %s47, %s50
      %p56 = scmp.eq.s32.totalorder %s16, 0
      %p57 = por %p55, %p56
      %p58 = scmp.ne.s32.totalorder %s47, %s50
      %p59 = scmp.eq.s32.totalorder %s21, 1
      %p60 = por %p58, %p59
      %p61 = scmp.ne.s32.totalorder %s50, %s51
      %p62 = scmp.eq.s32.totalorder %s21, 0
      %p63 = por %p61, %p62
      %p64 = scmp.ne.s32.totalorder %s50, %s51
      %p65 = scmp.eq.s32.totalorder %s22, 1
      %p66 = por %p64, %p65
      %p68 = scmp.ne.s32.totalorder %s51, %s67
      %p69 = scmp.eq.s32.totalorder %s22, 0
      %p70 = por %p68, %p69
      %s71 = ssub.s32 %s16, %s23
      %p72 = scmp.eq.s32.totalorder %s71, 0
      %s74 = sadd.s32 %s73, 1
      %s75 = scalar_select %p72, %s73, %s74
      %p78 = pneg %p72
      %p79 = scmp.eq.s32.totalorder %s16, 1
      %p80 = por %p78, %p79
      %p81 = scmp.ne.s32.totalorder %s73, %s76
      %p82 = scmp.eq.s32.totalorder %s16, 0
      %p83 = por %p81, %p82
      %p84 = scmp.ne.s32.totalorder %s73, %s76
      %p85 = scmp.eq.s32.totalorder %s21, 1
      %p86 = por %p84, %p85
      %p87 = scmp.ne.s32.totalorder %s76, %s77
      %p88 = scmp.eq.s32.totalorder %s21, 0
      %p89 = por %p87, %p88
      %p90 = scmp.ne.s32.totalorder %s76, %s77
      %p91 = scmp.eq.s32.totalorder %s22, 1
      %p92 = por %p90, %p91
      %p94 = scmp.ne.s32.totalorder %s77, %s93
      %p95 = scmp.eq.s32.totalorder %s22, 0
      %p96 = por %p94, %p95
      %s97 = ssub.s32 %s16, %s23
      %p98 = scmp.eq.s32.totalorder %s97, 0
      %s100 = sadd.s32 %s99, 1
      %s101 = scalar_select %p98, %s99, %s100
      %p104 = pneg %p98
      %p105 = scmp.eq.s32.totalorder %s16, 1
      %p106 = por %p104, %p105
      %p107 = scmp.ne.s32.totalorder %s99, %s102
      %p108 = scmp.eq.s32.totalorder %s16, 0
      %p109 = por %p107, %p108
      %p110 = scmp.ne.s32.totalorder %s99, %s102
      %p111 = scmp.eq.s32.totalorder %s21, 1
      %p112 = por %p110, %p111
      %p113 = scmp.ne.s32.totalorder %s102, %s103
      %p114 = scmp.eq.s32.totalorder %s21, 0
      %p115 = por %p113, %p114
      %p116 = scmp.ne.s32.totalorder %s102, %s103
      %p117 = scmp.eq.s32.totalorder %s22, 1
      %p118 = por %p116, %p117
      %p120 = scmp.ne.s32.totalorder %s103, %s119
      %p121 = scmp.eq.s32.totalorder %s22, 0
      %p122 = por %p120, %p121
      %p123 = scmp.le.s32.totalorder 1, %s16
      %p124 = scmp.lt.s32.totalorder %s16, 3
      %p125 = pnand %p123, %p124
      %p126 = pneg %p125
      // Predicated region
      $region9: #{segmentation_forward.5} parent=5 // pred_check
        _
      $region10: #{segmentation_forward.5} parent=5 // pred_check_branch
        %128 = sbr.rel (%p125) target = $region12
      $region11: #{segmentation_forward.5} parent=5 // pred_region
        %s129 = ssub.s32 %s16, 1
        // Predicated region
        $region13: #{segmentation_forward.5} parent=11 // pred_check
          %p130 = pneg %p37
        $region14: #{segmentation_forward.5} parent=11 // pred_check_branch
          %132 = sbr.rel (%p130) target = $region16
        $region15: #{segmentation_forward.5} parent=11 // pred_region
          %s134 = ssub.s32 16, 16
          %135 = vsyncadd [#allocation5], %s134
          %s137 = sshll.u32 %s0, 4
          %s138 = int_to_ptr.vmem [resolvable:$true] %s137
          %140 = dma.vmem_to_smem %s138, 16, [#allocation2], [#allocation5]
        $region16: #{segmentation_forward.5} parent=11 // pred_fallthru
          _
      $region12: #{segmentation_forward.5} parent=5 // pred_fallthru
        _
      %p141 = scmp.lt.s32.totalorder %s16, 2
      // Predicated region
      $region17: #{segmentation_forward.5} parent=5 // pred_check
        %p142 = pneg %p141
      $region18: #{segmentation_forward.5} parent=5 // pred_check_branch
        %144 = sbr.rel (%p142) target = $region20
      $region19: #{segmentation_forward.5} parent=5 // pred_region
        // Predicated region
        $region21: #{segmentation_forward.5} parent=19 // pred_check
          %p145 = pneg %p57
        $region22: #{segmentation_forward.5} parent=19 // pred_check_branch
          %147 = sbr.rel (%p145) target = $region24
        $region23: #{segmentation_forward.5} parent=19 // pred_region
          %p148 = scmp.lt.s32.totalorder %s16, 1
          %s149 = scalar_select %p148, %s16, 1
          %s150 = smul.addr %s149, 4
          %s151 = smul.addr %s150, 8
          %s152 = scalar_lea.vmem %s1, %s151
        $region24: #{segmentation_forward.5} parent=19 // pred_fallthru
          _
        // Predicated region
        $region25: #{segmentation_forward.5} parent=19 // pred_check
          %p153 = pneg %p83
        $region26: #{segmentation_forward.5} parent=19 // pred_check_branch
          %155 = sbr.rel (%p153) target = $region28
        $region27: #{segmentation_forward.5} parent=19 // pred_region
          %s156 = sand.u32 %s73, 1
          %s157 = scalar_lea.sflag [#allocation3], %s156
          %s158 = sand.u32 %s73, 1
          %s159 = smul.addr %s158, 32
          %s160 = scalar_lea.vmem [#allocation6], %s159
          %s162 = ssub.s32 512, 512
          %163 = vsyncadd %s157, %s162
          %s164 = smul.addr %s16, 16
          %s165 = smul.addr %s164, 128
          %s166 = scalar_lea.hbm %s2, %s165
          %s167 = sshll.u32 %s160, 4
          %s168 = int_to_ptr.vmem [resolvable:$true] %s167
          %173 = dma.hbm_to_vmem [thread:$0]  %s166, 512, %s168, %s157, 128, 128, 8
        $region28: #{segmentation_forward.5} parent=19 // pred_fallthru
          _
      $region20: #{segmentation_forward.5} parent=5 // pred_fallthru
        _
      %p174 = scmp.le.s32.totalorder 1, %s16
      %p175 = scmp.lt.s32.totalorder %s16, 3
      %p176 = pnand %p174, %p175
      %p177 = pneg %p176
      // Predicated region
      $region29: #{segmentation_forward.5} parent=5 // pred_check
        _
      $region30: #{segmentation_forward.5} parent=5 // pred_check_branch
        %179 = sbr.rel (%p176) target = $region32
      $region31: #{segmentation_forward.5} parent=5 // pred_region
        %s180 = ssub.s32 %s16, 1
        // Predicated region
        $region33: #{segmentation_forward.5} parent=31 // pred_check
          %p181 = pneg %p37
        $region34: #{segmentation_forward.5} parent=31 // pred_check_branch
          %183 = sbr.rel (%p181) target = $region36
        $region35: #{segmentation_forward.5} parent=31 // pred_region
          %184 = dma.done [#allocation5], 16
        $region36: #{segmentation_forward.5} parent=31 // pred_fallthru
          _
        %s185 = sand.u32 %s76, 1
        %s186 = scalar_lea.sflag [#allocation3], %s185
        %s187 = sand.u32 %s76, 1
        %s188 = smul.addr %s187, 32
        %s189 = scalar_lea.vmem [#allocation6], %s188
        // Predicated region
        $region37: #{segmentation_forward.5} parent=31 // pred_check
          %p190 = pneg %p89
        $region38: #{segmentation_forward.5} parent=31 // pred_check_branch
          %192 = sbr.rel (%p190) target = $region40
        $region39: #{segmentation_forward.5} parent=31 // pred_region
          %193 = dma.done %s186, 512
        $region40: #{segmentation_forward.5} parent=31 // pred_fallthru
          _
        %194 = sfence
        %p195 = pneg %p37
        %p196 = pneg %p34
        %p197 = scmp.lt.s32.totalorder %s21, 1
        %s198 = scalar_select %p197, %s21, 1
        %s199 = smul.addr %s198, 4
        %s200 = smul.addr %s199, 8
        %s201 = scalar_lea.vmem %s1, %s200
        %p202 = pneg %p63
        %p203 = pneg %p60
        %s204 = sand.u32 %s76, 1
        %s205 = scalar_lea.sflag [#allocation3], %s204
        %s206 = sand.u32 %s76, 1
        %s207 = smul.addr %s206, 32
        %s208 = scalar_lea.vmem [#allocation6], %s207
        %p209 = pneg %p89
        %p210 = pneg %p86
        %p211 = pneg %p115
        %p212 = pneg %p112
        %s213 = sand.u32 %s102, 1
        %s214 = scalar_lea.sflag [#allocation4], %s213
        %s215 = sand.u32 %s102, 1
        %s216 = smul.addr %s215, 32
        %s217 = scalar_lea.vmem [#allocation7], %s216
        %p218 = scmp.lt.s32.totalorder %s21, 1
        %s219 = scalar_select %p218, %s21, 1
        %s220 = smul.addr %s219, 4
        %s221 = smul.addr %s220, 8
        %s222 = scalar_lea.vmem %s1, %s221
        %s223 = sld [smem:[#allocation2 + %s21]]
        %v224 = vld [vmem:[%s222] sm:$0xff]
        %v225 = vld [vmem:[%s222 + $0x8] sm:$0xff]
        %v226 = vld [vmem:[%s222 + $0x10] sm:$0xff]
        %v227 = vld [vmem:[%s222 + $0x18] sm:$0xff]
        %v228 = vld [vmem:[%s189] sm:$0xff]
        %v229 = vld [vmem:[%s189 + $0x8] sm:$0xff]
        %v230 = vld [vmem:[%s189 + $0x10] sm:$0xff]
        %v231 = vld [vmem:[%s189 + $0x18] sm:$0xff]
        %v232 = vstv %s223
        %vm233 = vcmp.lt.f32.partialorder %v224, %v232
        %vm234 = vcmp.lt.f32.partialorder %v225, %v232
        %vm235 = vcmp.lt.f32.partialorder %v226, %v232
        %vm236 = vcmp.lt.f32.partialorder %v227, %v232
        %v237 = vsel %vm233, 1, 0
        %v238 = vsel %vm234, 1, 0
        %v239 = vsel %vm235, 1, 0
        %v240 = vsel %vm236, 1, 0
        %v241 = vcvt.s32.f32 %v237
        %v242 = vcvt.s32.f32 %v238
        %v243 = vcvt.s32.f32 %v239
        %v244 = vcvt.s32.f32 %v240
        %v245 = vsub.f32 %v241, 0.59685254
        %v246 = vsub.f32 %v242, 0.59685254
        %v247 = vsub.f32 %v243, 0.59685254
        %v248 = vsub.f32 %v244, 0.59685254
        %v249 = vrcp.pop 0.16043036
        %v250 = vmul.f32 %v245, %v249
        %v251 = vmul.f32 %v246, %v249
        %v252 = vmul.f32 %v247, %v249
        %v253 = vmul.f32 %v248, %v249
        %v254 = vlaneseq
        %v255 = vshrl.u32 %v254, 7
        %v256 = vadd.s32 %v255, 8
        %v257 = vadd.s32 %v255, 16
        %v258 = vadd.s32 %v255, 24
        %v259 = vlaneseq
        %v260 = vand.u32 %v259, 127
        %vm261 = vcmp.ge.s32.totalorder %v255, 1
        %vm262 = vcmp.ge.s32.totalorder %v256, 1
        %vm263 = vcmp.ge.s32.totalorder %v257, 1
        %vm264 = vcmp.ge.s32.totalorder %v258, 1
        %vm265 = vcmp.lt.s32.totalorder %v255, 32
        %vm266 = vcmp.lt.s32.totalorder %v256, 32
        %vm267 = vcmp.lt.s32.totalorder %v257, 32
        %vm268 = vcmp.lt.s32.totalorder %v258, 32
        %vm269 = vmand %vm261, %vm265
        %vm270 = vmand %vm262, %vm266
        %vm271 = vmand %vm263, %vm267
        %vm272 = vmand %vm264, %vm268
        %vm273 = vcmp.ge.s32.totalorder %v260, 1
        %vm274 = vmand %vm269, %vm273
        %vm275 = vmand %vm270, %vm273
        %vm276 = vmand %vm271, %vm273
        %vm277 = vmand %vm272, %vm273
        %vm278 = vcmp.lt.s32.totalorder %v260, 32
        %vm279 = vmand %vm274, %vm278
        %vm280 = vmand %vm275, %vm278
        %vm281 = vmand %vm276, %vm278
        %vm282 = vmand %vm277, %vm278
        %v283 = vsel %vm279, %v250, %v228
        %v284 = vsel %vm280, %v251, %v229
        %v285 = vsel %vm281, %v252, %v230
        %v286 = vsel %vm282, %v253, %v231
        %vm287 = vcmask 261120
        %288 = vst.msk [vmem:[%s217] sm:$0xff] %vm287, %v283
        %289 = vst.msk [vmem:[%s217 + $0x8] sm:$0xff] %vm287, %v284
        %290 = vst.msk [vmem:[%s217 + $0x10] sm:$0xff] %vm287, %v285
        %291 = vst.msk [vmem:[%s217 + $0x18] sm:$0xff] %vm287, %v286
        %s292 = sand.u32 %s102, 1
        %s293 = scalar_lea.sflag [#allocation4], %s292
        %s294 = sand.u32 %s102, 1
        %s295 = smul.addr %s294, 32
        %s296 = scalar_lea.vmem [#allocation7], %s295
        // Predicated region
        $region41: #{segmentation_forward.5} parent=31 // pred_check
          %p297 = pneg %p112
        $region42: #{segmentation_forward.5} parent=31 // pred_check_branch
          %299 = sbr.rel (%p297) target = $region44
        $region43: #{segmentation_forward.5} parent=31 // pred_region
          %s301 = ssub.s32 512, 512
          %302 = vsyncadd %s293, %s301
          %s303 = smul.addr %s21, 16
          %s304 = smul.addr %s303, 128
          %s305 = scalar_lea.hbm %s3, %s304
          %s306 = sshll.u32 %s296, 4
          %s307 = int_to_ptr.vmem [resolvable:$true] %s306
          %312 = dma.vmem_to_hbm [thread:$0]  %s307, 512, %s305, %s293, 128, 128, 8
        $region44: #{segmentation_forward.5} parent=31 // pred_fallthru
          _
      $region32: #{segmentation_forward.5} parent=5 // pred_fallthru
        _
      %p313 = scmp.le.s32.totalorder 2, %s16
      // Predicated region
      $region45: #{segmentation_forward.5} parent=5 // pred_check
        %p314 = pneg %p313
      $region46: #{segmentation_forward.5} parent=5 // pred_check_branch
        %316 = sbr.rel (%p314) target = $region48
      $region47: #{segmentation_forward.5} parent=5 // pred_region
        %s317 = ssub.s32 %s16, 2
        // Predicated region
        $region49: #{segmentation_forward.5} parent=47 // pred_check
          %p318 = pneg %p118
        $region50: #{segmentation_forward.5} parent=47 // pred_check_branch
          %320 = sbr.rel (%p318) target = $region52
        $region51: #{segmentation_forward.5} parent=47 // pred_region
          %s321 = sand.u32 %s103, 1
          %s322 = scalar_lea.sflag [#allocation4], %s321
          %s323 = sand.u32 %s103, 1
          %s324 = smul.addr %s323, 32
          %s325 = scalar_lea.vmem [#allocation7], %s324
          %326 = dma.done %s322, 512
        $region52: #{segmentation_forward.5} parent=47 // pred_fallthru
          _
      $region48: #{segmentation_forward.5} parent=5 // pred_fallthru
        _
    $region6: #{segmentation_forward.5} parent=1 // loop_footer
      %s20 = sadd.s32 1, %s16
    $region7: #{segmentation_forward.5} parent=1 // loop_footer_branch
      %15 = sbr.rel target = $region3
    $region8: #{segmentation_forward.5} parent=1 // loop_exit
      _
    %327 = vsyncpa [#allocation3], 1
    %s328 = scalar_lea.sflag [#allocation3], 1
    %329 = vsyncpa %s328, 1
    %330 = vsyncpa [#allocation4], 1
    %s331 = scalar_lea.sflag [#allocation4], 1
    %332 = vsyncpa %s331, 1
    %333 = vsyncpa [#allocation5], 1
    %s334 = scalar_lea.sflag [#allocation5], 1
    %335 = vsyncpa %s334, 1

</llo_original>
